<compile_context>
chip_gen: v6e
topology: v6e:2x2x1
jax: 0.10.0
libtpu: 0.0.40
codegen_flags: <defaults>
</compile_context>

<pallas_src>
import jax
import jax.numpy as jnp
from jax import lax
from jax.experimental import pallas as pl
from jax.experimental.pallas import tpu as pltpu

_HIGH = lax.Precision.HIGHEST     # reference path only
_BN_EPS = 1e-5


# ------------------------------ fused kernel ------------------------------- #

def fused_net_kernel(s_ref, wrow_ref, brow_ref, gamma_ref, beta_ref,
                     w1_ref, b1_ref, w2_ref, b2_ref, o_ref):
    """conv3x3 + maxpool2x2 + BatchNorm1d(batch stats) + relu(fc1) + relu(fc2).

    s_ref    : (4*9, B, F) f32  channel-replicated conv patches; slab index is
                                (pool_phase * 9 + tap); lane index is the NCHW
                                flatten feature (c*Hp*Wp + hp*Wp + wp).
    wrow_ref : (9, 1, F)  f32   conv weight replicated along each channel's
                                Hp*Wp lane block (wrow[t, 0, c*HpWp+j] = W[c,t]).
    brow_ref : (1, F)     f32   conv bias replicated the same way.
    gamma/beta: (1, F)    f32   BatchNorm1d affine parameters.
    w1_ref   : (F, H1)    bf16 ; b1_ref (1, H1) f32
    w2_ref   : (H1, H2)   bf16 ; b2_ref (1, H2) f32
    o_ref    : (B, H2)    f32
    """
    n_tap = wrow_ref.shape[0]
    n_phase = s_ref.shape[0] // n_tap

    # ---- conv 3x3 (VPU FMAs, f32) + 2x2/2 max pool (max over pool phases) --
    pooled = None
    for ph in range(n_phase):
        acc = wrow_ref[0] * s_ref[ph * n_tap]
        for t in range(1, n_tap):
            acc = acc + wrow_ref[t] * s_ref[ph * n_tap + t]
        pooled = acc if pooled is None else jnp.maximum(pooled, acc)
    z = pooled + brow_ref[...]                         # (B, F), NCHW flatten

    # ---- BatchNorm1d, training mode (biased batch variance, torch-style) ---
    mean = jnp.mean(z, axis=0, keepdims=True)
    d = z - mean
    var = jnp.mean(d * d, axis=0, keepdims=True)
    zn = d * lax.rsqrt(var + _BN_EPS) * gamma_ref[...] + beta_ref[...]

    # ---- relu(fc1) -> relu(fc2): bf16 operands, f32 accumulation (MXU) -----
    h1 = jnp.dot(zn.astype(jnp.bfloat16), w1_ref[...],
                 preferred_element_type=jnp.float32) + b1_ref[...]
    h1 = jnp.maximum(h1, 0.0)
    h2 = jnp.dot(h1.astype(jnp.bfloat16), w2_ref[...],
                 preferred_element_type=jnp.float32) + b2_ref[...]
    o_ref[...] = jnp.maximum(h2, 0.0)


# --------------------------- host-side layout glue -------------------------- #

def _conv_pool_patches(x, cout):
    """(B,1,H,W) -> (4*9, B, cout*Hp*Wp) f32.

    For each 2x2 pool phase (ph,pw) and 3x3 tap (kh,kw), the padded input
    values feeding pooled output position (hp,wp), replicated across the
    `cout` channel lane-blocks.  Pure layout glue (static slices); the review
    notes that moving this in-kernel only matters at large B/H/W.
    """
    B, cin, H, W = x.shape
    assert cin == 1, "module spec: Conv2d(in_channels=1, ...)"
    Hp, Wp = H // 2, W // 2
    xp = jnp.pad(x[:, 0], ((0, 0), (1, 1), (1, 1)))           # (B, H+2, W+2)
    slabs = []
    for ph in range(2):
        for pw in range(2):
            for kh in range(3):
                for kw in range(3):
                    s = xp[:, ph + kh: ph + kh + H - 1: 2,
                           pw + kw: pw + kw + W - 1: 2]        # (B, Hp, Wp)
                    slabs.append(s.reshape(B, Hp * Wp))
    patches = jnp.stack(slabs, axis=0)                         # (36, B, Hp*Wp)
    return jnp.tile(patches, (1, 1, cout))                     # (36, B, F)


def net_forward(x, kernel_params):
    """x: (B, 1, H, W) float32 NCHW.  Returns (B, hidden2).  One fused kernel."""
    wrow, brow, gamma, beta, w1, b1, w2, b2 = kernel_params
    B, _, H, W = x.shape
    hp_wp = (H // 2) * (W // 2)
    cout = wrow.shape[-1] // hp_wp
    hidden2 = w2.shape[1]

    patches = _conv_pool_patches(x, cout)                      # (36, B, F)

    vmem = pl.BlockSpec(memory_space=pltpu.MemorySpace.VMEM)
    args = (patches, wrow, brow, gamma, beta, w1, b1, w2, b2)

    flops = (2 * patches.size                                  # conv FMAs
             + 2 * B * w1.shape[0] * w1.shape[1]               # fc1
             + 2 * B * w2.shape[0] * w2.shape[1]               # fc2
             + 10 * B * gamma.size)                            # pool/BN/relu
    bytes_accessed = (sum(int(a.size) * a.dtype.itemsize for a in args)
                      + B * hidden2 * 4)

    return pl.pallas_call(
        fused_net_kernel,
        out_shape=jax.ShapeDtypeStruct((B, hidden2), jnp.float32),
        in_specs=[vmem] * len(args),
        out_specs=vmem,
        cost_estimate=pl.CostEstimate(flops=int(flops),
                                      transcendentals=int(gamma.size),
                                      bytes_accessed=int(bytes_accessed)),
    )(*args)


# --------------------------- params & reference ----------------------------- #

def init_torch_params(key, Cin, Cout, input_size, hidden1, hidden2):
    """Deterministic parameters in PyTorch layouts (OIHW conv, (out,in) linear)."""
    ks = jax.random.split(key, 6)
    wc = 0.1 * jax.random.normal(ks[0], (Cout, Cin, 3, 3), jnp.float32)
    bc = 0.1 * jax.random.normal(ks[1], (Cout,), jnp.float32)
    w1 = 0.1 * jax.random.normal(ks[2], (hidden1, input_size), jnp.float32)
    b1 = 0.1 * jax.random.normal(ks[3], (hidden1,), jnp.float32)
    w2 = 0.1 * jax.random.normal(ks[4], (hidden2, hidden1), jnp.float32)
    b2 = 0.1 * jax.random.normal(ks[5], (hidden2,), jnp.float32)
    gamma = jnp.ones((input_size,), jnp.float32)   # BatchNorm1d default init
    beta = jnp.zeros((input_size,), jnp.float32)
    # fc3 (output layer) is defined in __init__ but unused by forward -> omitted.
    return wc, bc, gamma, beta, w1, b1, w2, b2


def pack_params(torch_params, Hp, Wp):
    """One-time host packing of PyTorch-layout params into kernel layouts.

    The kernel's feature order equals PyTorch's NCHW flatten, so gamma/beta/w1
    need no permutation; fc weights become lane-dense bf16 RHS matrices and the
    conv weight/bias become channel-replicated lane rows.
    """
    wc, bc, gamma, beta, w1, b1, w2, b2 = torch_params
    cout = wc.shape[0]
    n = Hp * Wp
    wrow = jnp.repeat(wc.reshape(cout, 9).T.reshape(9, cout, 1), n, axis=2)
    wrow = wrow.reshape(9, 1, cout * n)                        # (9, 1, F)
    brow = jnp.repeat(bc.reshape(cout, 1), n, axis=1).reshape(1, cout * n)
    return (wrow, brow,
            gamma.reshape(1, -1), beta.reshape(1, -1),
            w1.T.astype(jnp.bfloat16), b1.reshape(1, -1),
            w2.T.astype(jnp.bfloat16), b2.reshape(1, -1))


def reference_forward(x, torch_params):
    """Pure-JAX f32 reference mirroring the PyTorch forward exactly."""
    wc, bc, gamma, beta, w1, b1, w2, b2 = torch_params
    y = lax.conv_general_dilated(
        x, wc, window_strides=(1, 1), padding=((1, 1), (1, 1)),
        dimension_numbers=("NCHW", "OIHW", "NCHW"), precision=_HIGH)
    y = y + bc.reshape(1, -1, 1, 1)
    y = lax.reduce_window(y, -jnp.inf, lax.max,
                          (1, 1, 2, 2), (1, 1, 2, 2), "VALID")
    z = y.reshape(y.shape[0], -1)
    mean = z.mean(axis=0, keepdims=True)
    var = ((z - mean) ** 2).mean(axis=0, keepdims=True)
    zn = (z - mean) / jnp.sqrt(var + _BN_EPS) * gamma + beta
    h1 = jax.nn.relu(jnp.dot(zn, w1.T, precision=_HIGH) + b1)
    h2 = jax.nn.relu(jnp.dot(h1, w2.T, precision=_HIGH) + b2)
    return h2


# ---------------------------------- main ------------------------------------ #

if __name__ == "__main__":
    B, Cin, H, W = 2, 1, 16, 16
    Cout = 4
    Hp, Wp = H // 2, W // 2
    input_size = Cout * Hp * Wp                    # 256 (flattened conv+pool)
    hidden1, hidden2 = 32, 32
    # output_size / fc3 are defined in the module but unused by forward.

    key = jax.random.PRNGKey(0)
    kx, kp = jax.random.split(key)
    x = jax.random.normal(kx, (B, Cin, H, W), jnp.float32)

    torch_params = init_torch_params(kp, Cin, Cout, input_size, hidden1, hidden2)
    kernel_params = pack_params(torch_params, Hp, Wp)

    fwd = jax.jit(net_forward)
    out = jax.block_until_ready(fwd(x, kernel_params))

    ref = reference_forward(x, torch_params)
    assert out.shape == (B, hidden2), out.shape
    # fc1/fc2 run with bf16 operands (f32 accumulation) inside the kernel, so
    # allow ~1e-2 of bf16 rounding noise against the all-f32 reference.
    if not bool(jnp.allclose(out, ref, rtol=3e-2, atol=3e-2)):
        max_err = float(jnp.max(jnp.abs(out - ref)))
        raise AssertionError(
            f"Pallas kernel mismatch vs reference, max abs err={max_err}")

    print("KERNEL_OK")
</pallas_src>

<mosaic_0001>
module attributes {stable_mosaic.version = 11 : i64} {
  func.func @fused_net_kernel(%arg0: memref<36x2x256xf32, #tpu.memory_space<vmem>>, %arg1: memref<9x1x256xf32, #tpu.memory_space<vmem>>, %arg2: memref<1x256xf32, #tpu.memory_space<vmem>>, %arg3: memref<1x256xf32, #tpu.memory_space<vmem>>, %arg4: memref<1x256xf32, #tpu.memory_space<vmem>>, %arg5: memref<256x32xbf16, #tpu.memory_space<vmem>>, %arg6: memref<1x32xf32, #tpu.memory_space<vmem>>, %arg7: memref<32x32xbf16, #tpu.memory_space<vmem>>, %arg8: memref<1x32xf32, #tpu.memory_space<vmem>>, %arg9: memref<2x32xf32, #tpu.memory_space<vmem>>) attributes {dimension_semantics = [], scalar_prefetch = 0 : i64, scratch_operands = 0 : i64, tpu.core_type = #tpu.core_type<tc>} {
    %c0 = arith.constant 0 : index
    %c0_0 = arith.constant 0 : index
    %c0_1 = arith.constant 0 : index
    %0 = vector.load %arg1[%c0, %c0_0, %c0_1] : memref<9x1x256xf32, #tpu.memory_space<vmem>>, vector<1x1x256xf32>
    %1 = vector.shape_cast %0 : vector<1x1x256xf32> to vector<1x256xf32>
    %c0_2 = arith.constant 0 : index
    %c0_3 = arith.constant 0 : index
    %c0_4 = arith.constant 0 : index
    %2 = vector.load %arg0[%c0_2, %c0_3, %c0_4] : memref<36x2x256xf32, #tpu.memory_space<vmem>>, vector<1x2x256xf32>
    %3 = vector.shape_cast %2 : vector<1x2x256xf32> to vector<2x256xf32>
    %4 = vector.broadcast %1 : vector<1x256xf32> to vector<2x256xf32>
    %5 = arith.mulf %4, %3 : vector<2x256xf32>
    %c1 = arith.constant 1 : index
    %c0_5 = arith.constant 0 : index
    %c0_6 = arith.constant 0 : index
    %6 = vector.load %arg1[%c1, %c0_5, %c0_6] : memref<9x1x256xf32, #tpu.memory_space<vmem>>, vector<1x1x256xf32>
    %7 = vector.shape_cast %6 : vector<1x1x256xf32> to vector<1x256xf32>
    %c1_7 = arith.constant 1 : index
    %c0_8 = arith.constant 0 : index
    %c0_9 = arith.constant 0 : index
    %8 = vector.load %arg0[%c1_7, %c0_8, %c0_9] : memref<36x2x256xf32, #tpu.memory_space<vmem>>, vector<1x2x256xf32>
    %9 = vector.shape_cast %8 : vector<1x2x256xf32> to vector<2x256xf32>
    %10 = vector.broadcast %7 : vector<1x256xf32> to vector<2x256xf32>
    %11 = arith.mulf %10, %9 : vector<2x256xf32>
    %12 = arith.addf %5, %11 : vector<2x256xf32>
    %c2 = arith.constant 2 : index
    %c0_10 = arith.constant 0 : index
    %c0_11 = arith.constant 0 : index
    %13 = vector.load %arg1[%c2, %c0_10, %c0_11] : memref<9x1x256xf32, #tpu.memory_space<vmem>>, vector<1x1x256xf32>
    %14 = vector.shape_cast %13 : vector<1x1x256xf32> to vector<1x256xf32>
    %c2_12 = arith.constant 2 : index
    %c0_13 = arith.constant 0 : index
    %c0_14 = arith.constant 0 : index
    %15 = vector.load %arg0[%c2_12, %c0_13, %c0_14] : memref<36x2x256xf32, #tpu.memory_space<vmem>>, vector<1x2x256xf32>
    %16 = vector.shape_cast %15 : vector<1x2x256xf32> to vector<2x256xf32>
    %17 = vector.broadcast %14 : vector<1x256xf32> to vector<2x256xf32>
    %18 = arith.mulf %17, %16 : vector<2x256xf32>
    %19 = arith.addf %12, %18 : vector<2x256xf32>
    %c3 = arith.constant 3 : index
    %c0_15 = arith.constant 0 : index
    %c0_16 = arith.constant 0 : index
    %20 = vector.load %arg1[%c3, %c0_15, %c0_16] : memref<9x1x256xf32, #tpu.memory_space<vmem>>, vector<1x1x256xf32>
    %21 = vector.shape_cast %20 : vector<1x1x256xf32> to vector<1x256xf32>
    %c3_17 = arith.constant 3 : index
    %c0_18 = arith.constant 0 : index
    %c0_19 = arith.constant 0 : index
    %22 = vector.load %arg0[%c3_17, %c0_18, %c0_19] : memref<36x2x256xf32, #tpu.memory_space<vmem>>, vector<1x2x256xf32>
    %23 = vector.shape_cast %22 : vector<1x2x256xf32> to vector<2x256xf32>
    %24 = vector.broadcast %21 : vector<1x256xf32> to vector<2x256xf32>
    %25 = arith.mulf %24, %23 : vector<2x256xf32>
    %26 = arith.addf %19, %25 : vector<2x256xf32>
    %c4 = arith.constant 4 : index
    %c0_20 = arith.constant 0 : index
    %c0_21 = arith.constant 0 : index
    %27 = vector.load %arg1[%c4, %c0_20, %c0_21] : memref<9x1x256xf32, #tpu.memory_space<vmem>>, vector<1x1x256xf32>
    %28 = vector.shape_cast %27 : vector<1x1x256xf32> to vector<1x256xf32>
    %c4_22 = arith.constant 4 : index
    %c0_23 = arith.constant 0 : index
    %c0_24 = arith.constant 0 : index
    %29 = vector.load %arg0[%c4_22, %c0_23, %c0_24] : memref<36x2x256xf32, #tpu.memory_space<vmem>>, vector<1x2x256xf32>
    %30 = vector.shape_cast %29 : vector<1x2x256xf32> to vector<2x256xf32>
    %31 = vector.broadcast %28 : vector<1x256xf32> to vector<2x256xf32>
    %32 = arith.mulf %31, %30 : vector<2x256xf32>
    %33 = arith.addf %26, %32 : vector<2x256xf32>
    %c5 = arith.constant 5 : index
    %c0_25 = arith.constant 0 : index
    %c0_26 = arith.constant 0 : index
    %34 = vector.load %arg1[%c5, %c0_25, %c0_26] : memref<9x1x256xf32, #tpu.memory_space<vmem>>, vector<1x1x256xf32>
    %35 = vector.shape_cast %34 : vector<1x1x256xf32> to vector<1x256xf32>
    %c5_27 = arith.constant 5 : index
    %c0_28 = arith.constant 0 : index
    %c0_29 = arith.constant 0 : index
    %36 = vector.load %arg0[%c5_27, %c0_28, %c0_29] : memref<36x2x256xf32, #tpu.memory_space<vmem>>, vector<1x2x256xf32>
    %37 = vector.shape_cast %36 : vector<1x2x256xf32> to vector<2x256xf32>
    %38 = vector.broadcast %35 : vector<1x256xf32> to vector<2x256xf32>
    %39 = arith.mulf %38, %37 : vector<2x256xf32>
    %40 = arith.addf %33, %39 : vector<2x256xf32>
    %c6 = arith.constant 6 : index
    %c0_30 = arith.constant 0 : index
    %c0_31 = arith.constant 0 : index
    %41 = vector.load %arg1[%c6, %c0_30, %c0_31] : memref<9x1x256xf32, #tpu.memory_space<vmem>>, vector<1x1x256xf32>
    %42 = vector.shape_cast %41 : vector<1x1x256xf32> to vector<1x256xf32>
    %c6_32 = arith.constant 6 : index
    %c0_33 = arith.constant 0 : index
    %c0_34 = arith.constant 0 : index
    %43 = vector.load %arg0[%c6_32, %c0_33, %c0_34] : memref<36x2x256xf32, #tpu.memory_space<vmem>>, vector<1x2x256xf32>
    %44 = vector.shape_cast %43 : vector<1x2x256xf32> to vector<2x256xf32>
    %45 = vector.broadcast %42 : vector<1x256xf32> to vector<2x256xf32>
    %46 = arith.mulf %45, %44 : vector<2x256xf32>
    %47 = arith.addf %40, %46 : vector<2x256xf32>
    %c7 = arith.constant 7 : index
    %c0_35 = arith.constant 0 : index
    %c0_36 = arith.constant 0 : index
    %48 = vector.load %arg1[%c7, %c0_35, %c0_36] : memref<9x1x256xf32, #tpu.memory_space<vmem>>, vector<1x1x256xf32>
    %49 = vector.shape_cast %48 : vector<1x1x256xf32> to vector<1x256xf32>
    %c7_37 = arith.constant 7 : index
    %c0_38 = arith.constant 0 : index
    %c0_39 = arith.constant 0 : index
    %50 = vector.load %arg0[%c7_37, %c0_38, %c0_39] : memref<36x2x256xf32, #tpu.memory_space<vmem>>, vector<1x2x256xf32>
    %51 = vector.shape_cast %50 : vector<1x2x256xf32> to vector<2x256xf32>
    %52 = vector.broadcast %49 : vector<1x256xf32> to vector<2x256xf32>
    %53 = arith.mulf %52, %51 : vector<2x256xf32>
    %54 = arith.addf %47, %53 : vector<2x256xf32>
    %c8 = arith.constant 8 : index
    %c0_40 = arith.constant 0 : index
    %c0_41 = arith.constant 0 : index
    %55 = vector.load %arg1[%c8, %c0_40, %c0_41] : memref<9x1x256xf32, #tpu.memory_space<vmem>>, vector<1x1x256xf32>
    %56 = vector.shape_cast %55 : vector<1x1x256xf32> to vector<1x256xf32>
    %c8_42 = arith.constant 8 : index
    %c0_43 = arith.constant 0 : index
    %c0_44 = arith.constant 0 : index
    %57 = vector.load %arg0[%c8_42, %c0_43, %c0_44] : memref<36x2x256xf32, #tpu.memory_space<vmem>>, vector<1x2x256xf32>
    %58 = vector.shape_cast %57 : vector<1x2x256xf32> to vector<2x256xf32>
    %59 = vector.broadcast %56 : vector<1x256xf32> to vector<2x256xf32>
    %60 = arith.mulf %59, %58 : vector<2x256xf32>
    %61 = arith.addf %54, %60 : vector<2x256xf32>
    %c0_45 = arith.constant 0 : index
    %c0_46 = arith.constant 0 : index
    %c0_47 = arith.constant 0 : index
    %62 = vector.load %arg1[%c0_45, %c0_46, %c0_47] : memref<9x1x256xf32, #tpu.memory_space<vmem>>, vector<1x1x256xf32>
    %63 = vector.shape_cast %62 : vector<1x1x256xf32> to vector<1x256xf32>
    %c9 = arith.constant 9 : index
    %c0_48 = arith.constant 0 : index
    %c0_49 = arith.constant 0 : index
    %64 = vector.load %arg0[%c9, %c0_48, %c0_49] : memref<36x2x256xf32, #tpu.memory_space<vmem>>, vector<1x2x256xf32>
    %65 = vector.shape_cast %64 : vector<1x2x256xf32> to vector<2x256xf32>
    %66 = vector.broadcast %63 : vector<1x256xf32> to vector<2x256xf32>
    %67 = arith.mulf %66, %65 : vector<2x256xf32>
    %c1_50 = arith.constant 1 : index
    %c0_51 = arith.constant 0 : index
    %c0_52 = arith.constant 0 : index
    %68 = vector.load %arg1[%c1_50, %c0_51, %c0_52] : memref<9x1x256xf32, #tpu.memory_space<vmem>>, vector<1x1x256xf32>
    %69 = vector.shape_cast %68 : vector<1x1x256xf32> to vector<1x256xf32>
    %c10 = arith.constant 10 : index
    %c0_53 = arith.constant 0 : index
    %c0_54 = arith.constant 0 : index
    %70 = vector.load %arg0[%c10, %c0_53, %c0_54] : memref<36x2x256xf32, #tpu.memory_space<vmem>>, vector<1x2x256xf32>
    %71 = vector.shape_cast %70 : vector<1x2x256xf32> to vector<2x256xf32>
    %72 = vector.broadcast %69 : vector<1x256xf32> to vector<2x256xf32>
    %73 = arith.mulf %72, %71 : vector<2x256xf32>
    %74 = arith.addf %67, %73 : vector<2x256xf32>
    %c2_55 = arith.constant 2 : index
    %c0_56 = arith.constant 0 : index
    %c0_57 = arith.constant 0 : index
    %75 = vector.load %arg1[%c2_55, %c0_56, %c0_57] : memref<9x1x256xf32, #tpu.memory_space<vmem>>, vector<1x1x256xf32>
    %76 = vector.shape_cast %75 : vector<1x1x256xf32> to vector<1x256xf32>
    %c11 = arith.constant 11 : index
    %c0_58 = arith.constant 0 : index
    %c0_59 = arith.constant 0 : index
    %77 = vector.load %arg0[%c11, %c0_58, %c0_59] : memref<36x2x256xf32, #tpu.memory_space<vmem>>, vector<1x2x256xf32>
    %78 = vector.shape_cast %77 : vector<1x2x256xf32> to vector<2x256xf32>
    %79 = vector.broadcast %76 : vector<1x256xf32> to vector<2x256xf32>
    %80 = arith.mulf %79, %78 : vector<2x256xf32>
    %81 = arith.addf %74, %80 : vector<2x256xf32>
    %c3_60 = arith.constant 3 : index
    %c0_61 = arith.constant 0 : index
    %c0_62 = arith.constant 0 : index
    %82 = vector.load %arg1[%c3_60, %c0_61, %c0_62] : memref<9x1x256xf32, #tpu.memory_space<vmem>>, vector<1x1x256xf32>
    %83 = vector.shape_cast %82 : vector<1x1x256xf32> to vector<1x256xf32>
    %c12 = arith.constant 12 : index
    %c0_63 = arith.constant 0 : index
    %c0_64 = arith.constant 0 : index
    %84 = vector.load %arg0[%c12, %c0_63, %c0_64] : memref<36x2x256xf32, #tpu.memory_space<vmem>>, vector<1x2x256xf32>
    %85 = vector.shape_cast %84 : vector<1x2x256xf32> to vector<2x256xf32>
    %86 = vector.broadcast %83 : vector<1x256xf32> to vector<2x256xf32>
    %87 = arith.mulf %86, %85 : vector<2x256xf32>
    %88 = arith.addf %81, %87 : vector<2x256xf32>
    %c4_65 = arith.constant 4 : index
    %c0_66 = arith.constant 0 : index
    %c0_67 = arith.constant 0 : index
    %89 = vector.load %arg1[%c4_65, %c0_66, %c0_67] : memref<9x1x256xf32, #tpu.memory_space<vmem>>, vector<1x1x256xf32>
    %90 = vector.shape_cast %89 : vector<1x1x256xf32> to vector<1x256xf32>
    %c13 = arith.constant 13 : index
    %c0_68 = arith.constant 0 : index
    %c0_69 = arith.constant 0 : index
    %91 = vector.load %arg0[%c13, %c0_68, %c0_69] : memref<36x2x256xf32, #tpu.memory_space<vmem>>, vector<1x2x256xf32>
    %92 = vector.shape_cast %91 : vector<1x2x256xf32> to vector<2x256xf32>
    %93 = vector.broadcast %90 : vector<1x256xf32> to vector<2x256xf32>
    %94 = arith.mulf %93, %92 : vector<2x256xf32>
    %95 = arith.addf %88, %94 : vector<2x256xf32>
    %c5_70 = arith.constant 5 : index
    %c0_71 = arith.constant 0 : index
    %c0_72 = arith.constant 0 : index
    %96 = vector.load %arg1[%c5_70, %c0_71, %c0_72] : memref<9x1x256xf32, #tpu.memory_space<vmem>>, vector<1x1x256xf32>
    %97 = vector.shape_cast %96 : vector<1x1x256xf32> to vector<1x256xf32>
    %c14 = arith.constant 14 : index
    %c0_73 = arith.constant 0 : index
    %c0_74 = arith.constant 0 : index
    %98 = vector.load %arg0[%c14, %c0_73, %c0_74] : memref<36x2x256xf32, #tpu.memory_space<vmem>>, vector<1x2x256xf32>
    %99 = vector.shape_cast %98 : vector<1x2x256xf32> to vector<2x256xf32>
    %100 = vector.broadcast %97 : vector<1x256xf32> to vector<2x256xf32>
    %101 = arith.mulf %100, %99 : vector<2x256xf32>
    %102 = arith.addf %95, %101 : vector<2x256xf32>
    %c6_75 = arith.constant 6 : index
    %c0_76 = arith.constant 0 : index
    %c0_77 = arith.constant 0 : index
    %103 = vector.load %arg1[%c6_75, %c0_76, %c0_77] : memref<9x1x256xf32, #tpu.memory_space<vmem>>, vector<1x1x256xf32>
    %104 = vector.shape_cast %103 : vector<1x1x256xf32> to vector<1x256xf32>
    %c15 = arith.constant 15 : index
    %c0_78 = arith.constant 0 : index
    %c0_79 = arith.constant 0 : index
    %105 = vector.load %arg0[%c15, %c0_78, %c0_79] : memref<36x2x256xf32, #tpu.memory_space<vmem>>, vector<1x2x256xf32>
    %106 = vector.shape_cast %105 : vector<1x2x256xf32> to vector<2x256xf32>
    %107 = vector.broadcast %104 : vector<1x256xf32> to vector<2x256xf32>
    %108 = arith.mulf %107, %106 : vector<2x256xf32>
    %109 = arith.addf %102, %108 : vector<2x256xf32>
    %c7_80 = arith.constant 7 : index
    %c0_81 = arith.constant 0 : index
    %c0_82 = arith.constant 0 : index
    %110 = vector.load %arg1[%c7_80, %c0_81, %c0_82] : memref<9x1x256xf32, #tpu.memory_space<vmem>>, vector<1x1x256xf32>
    %111 = vector.shape_cast %110 : vector<1x1x256xf32> to vector<1x256xf32>
    %c16 = arith.constant 16 : index
    %c0_83 = arith.constant 0 : index
    %c0_84 = arith.constant 0 : index
    %112 = vector.load %arg0[%c16, %c0_83, %c0_84] : memref<36x2x256xf32, #tpu.memory_space<vmem>>, vector<1x2x256xf32>
    %113 = vector.shape_cast %112 : vector<1x2x256xf32> to vector<2x256xf32>
    %114 = vector.broadcast %111 : vector<1x256xf32> to vector<2x256xf32>
    %115 = arith.mulf %114, %113 : vector<2x256xf32>
    %116 = arith.addf %109, %115 : vector<2x256xf32>
    %c8_85 = arith.constant 8 : index
    %c0_86 = arith.constant 0 : index
    %c0_87 = arith.constant 0 : index
    %117 = vector.load %arg1[%c8_85, %c0_86, %c0_87] : memref<9x1x256xf32, #tpu.memory_space<vmem>>, vector<1x1x256xf32>
    %118 = vector.shape_cast %117 : vector<1x1x256xf32> to vector<1x256xf32>
    %c17 = arith.constant 17 : index
    %c0_88 = arith.constant 0 : index
    %c0_89 = arith.constant 0 : index
    %119 = vector.load %arg0[%c17, %c0_88, %c0_89] : memref<36x2x256xf32, #tpu.memory_space<vmem>>, vector<1x2x256xf32>
    %120 = vector.shape_cast %119 : vector<1x2x256xf32> to vector<2x256xf32>
    %121 = vector.broadcast %118 : vector<1x256xf32> to vector<2x256xf32>
    %122 = arith.mulf %121, %120 : vector<2x256xf32>
    %123 = arith.addf %116, %122 : vector<2x256xf32>
    %124 = arith.maximumf %61, %123 : vector<2x256xf32>
    %c0_90 = arith.constant 0 : index
    %c0_91 = arith.constant 0 : index
    %c0_92 = arith.constant 0 : index
    %125 = vector.load %arg1[%c0_90, %c0_91, %c0_92] : memref<9x1x256xf32, #tpu.memory_space<vmem>>, vector<1x1x256xf32>
    %126 = vector.shape_cast %125 : vector<1x1x256xf32> to vector<1x256xf32>
    %c18 = arith.constant 18 : index
    %c0_93 = arith.constant 0 : index
    %c0_94 = arith.constant 0 : index
    %127 = vector.load %arg0[%c18, %c0_93, %c0_94] : memref<36x2x256xf32, #tpu.memory_space<vmem>>, vector<1x2x256xf32>
    %128 = vector.shape_cast %127 : vector<1x2x256xf32> to vector<2x256xf32>
    %129 = vector.broadcast %126 : vector<1x256xf32> to vector<2x256xf32>
    %130 = arith.mulf %129, %128 : vector<2x256xf32>
    %c1_95 = arith.constant 1 : index
    %c0_96 = arith.constant 0 : index
    %c0_97 = arith.constant 0 : index
    %131 = vector.load %arg1[%c1_95, %c0_96, %c0_97] : memref<9x1x256xf32, #tpu.memory_space<vmem>>, vector<1x1x256xf32>
    %132 = vector.shape_cast %131 : vector<1x1x256xf32> to vector<1x256xf32>
    %c19 = arith.constant 19 : index
    %c0_98 = arith.constant 0 : index
    %c0_99 = arith.constant 0 : index
    %133 = vector.load %arg0[%c19, %c0_98, %c0_99] : memref<36x2x256xf32, #tpu.memory_space<vmem>>, vector<1x2x256xf32>
    %134 = vector.shape_cast %133 : vector<1x2x256xf32> to vector<2x256xf32>
    %135 = vector.broadcast %132 : vector<1x256xf32> to vector<2x256xf32>
    %136 = arith.mulf %135, %134 : vector<2x256xf32>
    %137 = arith.addf %130, %136 : vector<2x256xf32>
    %c2_100 = arith.constant 2 : index
    %c0_101 = arith.constant 0 : index
    %c0_102 = arith.constant 0 : index
    %138 = vector.load %arg1[%c2_100, %c0_101, %c0_102] : memref<9x1x256xf32, #tpu.memory_space<vmem>>, vector<1x1x256xf32>
    %139 = vector.shape_cast %138 : vector<1x1x256xf32> to vector<1x256xf32>
    %c20 = arith.constant 20 : index
    %c0_103 = arith.constant 0 : index
    %c0_104 = arith.constant 0 : index
    %140 = vector.load %arg0[%c20, %c0_103, %c0_104] : memref<36x2x256xf32, #tpu.memory_space<vmem>>, vector<1x2x256xf32>
    %141 = vector.shape_cast %140 : vector<1x2x256xf32> to vector<2x256xf32>
    %142 = vector.broadcast %139 : vector<1x256xf32> to vector<2x256xf32>
    %143 = arith.mulf %142, %141 : vector<2x256xf32>
    %144 = arith.addf %137, %143 : vector<2x256xf32>
    %c3_105 = arith.constant 3 : index
    %c0_106 = arith.constant 0 : index
    %c0_107 = arith.constant 0 : index
    %145 = vector.load %arg1[%c3_105, %c0_106, %c0_107] : memref<9x1x256xf32, #tpu.memory_space<vmem>>, vector<1x1x256xf32>
    %146 = vector.shape_cast %145 : vector<1x1x256xf32> to vector<1x256xf32>
    %c21 = arith.constant 21 : index
    %c0_108 = arith.constant 0 : index
    %c0_109 = arith.constant 0 : index
    %147 = vector.load %arg0[%c21, %c0_108, %c0_109] : memref<36x2x256xf32, #tpu.memory_space<vmem>>, vector<1x2x256xf32>
    %148 = vector.shape_cast %147 : vector<1x2x256xf32> to vector<2x256xf32>
    %149 = vector.broadcast %146 : vector<1x256xf32> to vector<2x256xf32>
    %150 = arith.mulf %149, %148 : vector<2x256xf32>
    %151 = arith.addf %144, %150 : vector<2x256xf32>
    %c4_110 = arith.constant 4 : index
    %c0_111 = arith.constant 0 : index
    %c0_112 = arith.constant 0 : index
    %152 = vector.load %arg1[%c4_110, %c0_111, %c0_112] : memref<9x1x256xf32, #tpu.memory_space<vmem>>, vector<1x1x256xf32>
    %153 = vector.shape_cast %152 : vector<1x1x256xf32> to vector<1x256xf32>
    %c22 = arith.constant 22 : index
    %c0_113 = arith.constant 0 : index
    %c0_114 = arith.constant 0 : index
    %154 = vector.load %arg0[%c22, %c0_113, %c0_114] : memref<36x2x256xf32, #tpu.memory_space<vmem>>, vector<1x2x256xf32>
    %155 = vector.shape_cast %154 : vector<1x2x256xf32> to vector<2x256xf32>
    %156 = vector.broadcast %153 : vector<1x256xf32> to vector<2x256xf32>
    %157 = arith.mulf %156, %155 : vector<2x256xf32>
    %158 = arith.addf %151, %157 : vector<2x256xf32>
    %c5_115 = arith.constant 5 : index
    %c0_116 = arith.constant 0 : index
    %c0_117 = arith.constant 0 : index
    %159 = vector.load %arg1[%c5_115, %c0_116, %c0_117] : memref<9x1x256xf32, #tpu.memory_space<vmem>>, vector<1x1x256xf32>
    %160 = vector.shape_cast %159 : vector<1x1x256xf32> to vector<1x256xf32>
    %c23 = arith.constant 23 : index
    %c0_118 = arith.constant 0 : index
    %c0_119 = arith.constant 0 : index
    %161 = vector.load %arg0[%c23, %c0_118, %c0_119] : memref<36x2x256xf32, #tpu.memory_space<vmem>>, vector<1x2x256xf32>
    %162 = vector.shape_cast %161 : vector<1x2x256xf32> to vector<2x256xf32>
    %163 = vector.broadcast %160 : vector<1x256xf32> to vector<2x256xf32>
    %164 = arith.mulf %163, %162 : vector<2x256xf32>
    %165 = arith.addf %158, %164 : vector<2x256xf32>
    %c6_120 = arith.constant 6 : index
    %c0_121 = arith.constant 0 : index
    %c0_122 = arith.constant 0 : index
    %166 = vector.load %arg1[%c6_120, %c0_121, %c0_122] : memref<9x1x256xf32, #tpu.memory_space<vmem>>, vector<1x1x256xf32>
    %167 = vector.shape_cast %166 : vector<1x1x256xf32> to vector<1x256xf32>
    %c24 = arith.constant 24 : index
    %c0_123 = arith.constant 0 : index
    %c0_124 = arith.constant 0 : index
    %168 = vector.load %arg0[%c24, %c0_123, %c0_124] : memref<36x2x256xf32, #tpu.memory_space<vmem>>, vector<1x2x256xf32>
    %169 = vector.shape_cast %168 : vector<1x2x256xf32> to vector<2x256xf32>
    %170 = vector.broadcast %167 : vector<1x256xf32> to vector<2x256xf32>
    %171 = arith.mulf %170, %169 : vector<2x256xf32>
    %172 = arith.addf %165, %171 : vector<2x256xf32>
    %c7_125 = arith.constant 7 : index
    %c0_126 = arith.constant 0 : index
    %c0_127 = arith.constant 0 : index
    %173 = vector.load %arg1[%c7_125, %c0_126, %c0_127] : memref<9x1x256xf32, #tpu.memory_space<vmem>>, vector<1x1x256xf32>
    %174 = vector.shape_cast %173 : vector<1x1x256xf32> to vector<1x256xf32>
    %c25 = arith.constant 25 : index
    %c0_128 = arith.constant 0 : index
    %c0_129 = arith.constant 0 : index
    %175 = vector.load %arg0[%c25, %c0_128, %c0_129] : memref<36x2x256xf32, #tpu.memory_space<vmem>>, vector<1x2x256xf32>
    %176 = vector.shape_cast %175 : vector<1x2x256xf32> to vector<2x256xf32>
    %177 = vector.broadcast %174 : vector<1x256xf32> to vector<2x256xf32>
    %178 = arith.mulf %177, %176 : vector<2x256xf32>
    %179 = arith.addf %172, %178 : vector<2x256xf32>
    %c8_130 = arith.constant 8 : index
    %c0_131 = arith.constant 0 : index
    %c0_132 = arith.constant 0 : index
    %180 = vector.load %arg1[%c8_130, %c0_131, %c0_132] : memref<9x1x256xf32, #tpu.memory_space<vmem>>, vector<1x1x256xf32>
    %181 = vector.shape_cast %180 : vector<1x1x256xf32> to vector<1x256xf32>
    %c26 = arith.constant 26 : index
    %c0_133 = arith.constant 0 : index
    %c0_134 = arith.constant 0 : index
    %182 = vector.load %arg0[%c26, %c0_133, %c0_134] : memref<36x2x256xf32, #tpu.memory_space<vmem>>, vector<1x2x256xf32>
    %183 = vector.shape_cast %182 : vector<1x2x256xf32> to vector<2x256xf32>
    %184 = vector.broadcast %181 : vector<1x256xf32> to vector<2x256xf32>
    %185 = arith.mulf %184, %183 : vector<2x256xf32>
    %186 = arith.addf %179, %185 : vector<2x256xf32>
    %187 = arith.maximumf %124, %186 : vector<2x256xf32>
    %c0_135 = arith.constant 0 : index
    %c0_136 = arith.constant 0 : index
    %c0_137 = arith.constant 0 : index
    %188 = vector.load %arg1[%c0_135, %c0_136, %c0_137] : memref<9x1x256xf32, #tpu.memory_space<vmem>>, vector<1x1x256xf32>
    %189 = vector.shape_cast %188 : vector<1x1x256xf32> to vector<1x256xf32>
    %c27 = arith.constant 27 : index
    %c0_138 = arith.constant 0 : index
    %c0_139 = arith.constant 0 : index
    %190 = vector.load %arg0[%c27, %c0_138, %c0_139] : memref<36x2x256xf32, #tpu.memory_space<vmem>>, vector<1x2x256xf32>
    %191 = vector.shape_cast %190 : vector<1x2x256xf32> to vector<2x256xf32>
    %192 = vector.broadcast %189 : vector<1x256xf32> to vector<2x256xf32>
    %193 = arith.mulf %192, %191 : vector<2x256xf32>
    %c1_140 = arith.constant 1 : index
    %c0_141 = arith.constant 0 : index
    %c0_142 = arith.constant 0 : index
    %194 = vector.load %arg1[%c1_140, %c0_141, %c0_142] : memref<9x1x256xf32, #tpu.memory_space<vmem>>, vector<1x1x256xf32>
    %195 = vector.shape_cast %194 : vector<1x1x256xf32> to vector<1x256xf32>
    %c28 = arith.constant 28 : index
    %c0_143 = arith.constant 0 : index
    %c0_144 = arith.constant 0 : index
    %196 = vector.load %arg0[%c28, %c0_143, %c0_144] : memref<36x2x256xf32, #tpu.memory_space<vmem>>, vector<1x2x256xf32>
    %197 = vector.shape_cast %196 : vector<1x2x256xf32> to vector<2x256xf32>
    %198 = vector.broadcast %195 : vector<1x256xf32> to vector<2x256xf32>
    %199 = arith.mulf %198, %197 : vector<2x256xf32>
    %200 = arith.addf %193, %199 : vector<2x256xf32>
    %c2_145 = arith.constant 2 : index
    %c0_146 = arith.constant 0 : index
    %c0_147 = arith.constant 0 : index
    %201 = vector.load %arg1[%c2_145, %c0_146, %c0_147] : memref<9x1x256xf32, #tpu.memory_space<vmem>>, vector<1x1x256xf32>
    %202 = vector.shape_cast %201 : vector<1x1x256xf32> to vector<1x256xf32>
    %c29 = arith.constant 29 : index
    %c0_148 = arith.constant 0 : index
    %c0_149 = arith.constant 0 : index
    %203 = vector.load %arg0[%c29, %c0_148, %c0_149] : memref<36x2x256xf32, #tpu.memory_space<vmem>>, vector<1x2x256xf32>
    %204 = vector.shape_cast %203 : vector<1x2x256xf32> to vector<2x256xf32>
    %205 = vector.broadcast %202 : vector<1x256xf32> to vector<2x256xf32>
    %206 = arith.mulf %205, %204 : vector<2x256xf32>
    %207 = arith.addf %200, %206 : vector<2x256xf32>
    %c3_150 = arith.constant 3 : index
    %c0_151 = arith.constant 0 : index
    %c0_152 = arith.constant 0 : index
    %208 = vector.load %arg1[%c3_150, %c0_151, %c0_152] : memref<9x1x256xf32, #tpu.memory_space<vmem>>, vector<1x1x256xf32>
    %209 = vector.shape_cast %208 : vector<1x1x256xf32> to vector<1x256xf32>
    %c30 = arith.constant 30 : index
    %c0_153 = arith.constant 0 : index
    %c0_154 = arith.constant 0 : index
    %210 = vector.load %arg0[%c30, %c0_153, %c0_154] : memref<36x2x256xf32, #tpu.memory_space<vmem>>, vector<1x2x256xf32>
    %211 = vector.shape_cast %210 : vector<1x2x256xf32> to vector<2x256xf32>
    %212 = vector.broadcast %209 : vector<1x256xf32> to vector<2x256xf32>
    %213 = arith.mulf %212, %211 : vector<2x256xf32>
    %214 = arith.addf %207, %213 : vector<2x256xf32>
    %c4_155 = arith.constant 4 : index
    %c0_156 = arith.constant 0 : index
    %c0_157 = arith.constant 0 : index
    %215 = vector.load %arg1[%c4_155, %c0_156, %c0_157] : memref<9x1x256xf32, #tpu.memory_space<vmem>>, vector<1x1x256xf32>
    %216 = vector.shape_cast %215 : vector<1x1x256xf32> to vector<1x256xf32>
    %c31 = arith.constant 31 : index
    %c0_158 = arith.constant 0 : index
    %c0_159 = arith.constant 0 : index
    %217 = vector.load %arg0[%c31, %c0_158, %c0_159] : memref<36x2x256xf32, #tpu.memory_space<vmem>>, vector<1x2x256xf32>
    %218 = vector.shape_cast %217 : vector<1x2x256xf32> to vector<2x256xf32>
    %219 = vector.broadcast %216 : vector<1x256xf32> to vector<2x256xf32>
    %220 = arith.mulf %219, %218 : vector<2x256xf32>
    %221 = arith.addf %214, %220 : vector<2x256xf32>
    %c5_160 = arith.constant 5 : index
    %c0_161 = arith.constant 0 : index
    %c0_162 = arith.constant 0 : index
    %222 = vector.load %arg1[%c5_160, %c0_161, %c0_162] : memref<9x1x256xf32, #tpu.memory_space<vmem>>, vector<1x1x256xf32>
    %223 = vector.shape_cast %222 : vector<1x1x256xf32> to vector<1x256xf32>
    %c32 = arith.constant 32 : index
    %c0_163 = arith.constant 0 : index
    %c0_164 = arith.constant 0 : index
    %224 = vector.load %arg0[%c32, %c0_163, %c0_164] : memref<36x2x256xf32, #tpu.memory_space<vmem>>, vector<1x2x256xf32>
    %225 = vector.shape_cast %224 : vector<1x2x256xf32> to vector<2x256xf32>
    %226 = vector.broadcast %223 : vector<1x256xf32> to vector<2x256xf32>
    %227 = arith.mulf %226, %225 : vector<2x256xf32>
    %228 = arith.addf %221, %227 : vector<2x256xf32>
    %c6_165 = arith.constant 6 : index
    %c0_166 = arith.constant 0 : index
    %c0_167 = arith.constant 0 : index
    %229 = vector.load %arg1[%c6_165, %c0_166, %c0_167] : memref<9x1x256xf32, #tpu.memory_space<vmem>>, vector<1x1x256xf32>
    %230 = vector.shape_cast %229 : vector<1x1x256xf32> to vector<1x256xf32>
    %c33 = arith.constant 33 : index
    %c0_168 = arith.constant 0 : index
    %c0_169 = arith.constant 0 : index
    %231 = vector.load %arg0[%c33, %c0_168, %c0_169] : memref<36x2x256xf32, #tpu.memory_space<vmem>>, vector<1x2x256xf32>
    %232 = vector.shape_cast %231 : vector<1x2x256xf32> to vector<2x256xf32>
    %233 = vector.broadcast %230 : vector<1x256xf32> to vector<2x256xf32>
    %234 = arith.mulf %233, %232 : vector<2x256xf32>
    %235 = arith.addf %228, %234 : vector<2x256xf32>
    %c7_170 = arith.constant 7 : index
    %c0_171 = arith.constant 0 : index
    %c0_172 = arith.constant 0 : index
    %236 = vector.load %arg1[%c7_170, %c0_171, %c0_172] : memref<9x1x256xf32, #tpu.memory_space<vmem>>, vector<1x1x256xf32>
    %237 = vector.shape_cast %236 : vector<1x1x256xf32> to vector<1x256xf32>
    %c34 = arith.constant 34 : index
    %c0_173 = arith.constant 0 : index
    %c0_174 = arith.constant 0 : index
    %238 = vector.load %arg0[%c34, %c0_173, %c0_174] : memref<36x2x256xf32, #tpu.memory_space<vmem>>, vector<1x2x256xf32>
    %239 = vector.shape_cast %238 : vector<1x2x256xf32> to vector<2x256xf32>
    %240 = vector.broadcast %237 : vector<1x256xf32> to vector<2x256xf32>
    %241 = arith.mulf %240, %239 : vector<2x256xf32>
    %242 = arith.addf %235, %241 : vector<2x256xf32>
    %c8_175 = arith.constant 8 : index
    %c0_176 = arith.constant 0 : index
    %c0_177 = arith.constant 0 : index
    %243 = vector.load %arg1[%c8_175, %c0_176, %c0_177] : memref<9x1x256xf32, #tpu.memory_space<vmem>>, vector<1x1x256xf32>
    %244 = vector.shape_cast %243 : vector<1x1x256xf32> to vector<1x256xf32>
    %c35 = arith.constant 35 : index
    %c0_178 = arith.constant 0 : index
    %c0_179 = arith.constant 0 : index
    %245 = vector.load %arg0[%c35, %c0_178, %c0_179] : memref<36x2x256xf32, #tpu.memory_space<vmem>>, vector<1x2x256xf32>
    %246 = vector.shape_cast %245 : vector<1x2x256xf32> to vector<2x256xf32>
    %247 = vector.broadcast %244 : vector<1x256xf32> to vector<2x256xf32>
    %248 = arith.mulf %247, %246 : vector<2x256xf32>
    %249 = arith.addf %242, %248 : vector<2x256xf32>
    %250 = arith.maximumf %187, %249 : vector<2x256xf32>
    %c0_180 = arith.constant 0 : index
    %c0_181 = arith.constant 0 : index
    %251 = vector.load %arg2[%c0_180, %c0_181] : memref<1x256xf32, #tpu.memory_space<vmem>>, vector<1x256xf32>
    %252 = vector.broadcast %251 : vector<1x256xf32> to vector<2x256xf32>
    %253 = arith.addf %250, %252 : vector<2x256xf32>
    %cst = arith.constant dense<0.000000e+00> : vector<256xf32>
    %254 = vector.multi_reduction <add>, %253, %cst [0] : vector<2x256xf32> to vector<256xf32>
    %255 = vector.shape_cast %254 : vector<256xf32> to vector<1x256xf32>
    %cst_182 = arith.constant 2.000000e+00 : f32
    %256 = vector.broadcast %cst_182 : f32 to vector<1x256xf32>
    %257 = arith.divf %255, %256 : vector<1x256xf32>
    %258 = vector.broadcast %257 : vector<1x256xf32> to vector<2x256xf32>
    %259 = arith.subf %253, %258 : vector<2x256xf32>
    %260 = arith.mulf %259, %259 : vector<2x256xf32>
    %cst_183 = arith.constant dense<0.000000e+00> : vector<256xf32>
    %261 = vector.multi_reduction <add>, %260, %cst_183 [0] : vector<2x256xf32> to vector<256xf32>
    %262 = vector.shape_cast %261 : vector<256xf32> to vector<1x256xf32>
    %cst_184 = arith.constant 2.000000e+00 : f32
    %263 = vector.broadcast %cst_184 : f32 to vector<1x256xf32>
    %264 = arith.divf %262, %263 : vector<1x256xf32>
    %cst_185 = arith.constant 9.99999974E-6 : f32
    %265 = vector.broadcast %cst_185 : f32 to vector<1x256xf32>
    %266 = arith.addf %264, %265 : vector<1x256xf32>
    %267 = math.rsqrt %266 : vector<1x256xf32>
    %268 = vector.broadcast %267 : vector<1x256xf32> to vector<2x256xf32>
    %269 = arith.mulf %259, %268 : vector<2x256xf32>
    %c0_186 = arith.constant 0 : index
    %c0_187 = arith.constant 0 : index
    %270 = vector.load %arg3[%c0_186, %c0_187] : memref<1x256xf32, #tpu.memory_space<vmem>>, vector<1x256xf32>
    %271 = vector.broadcast %270 : vector<1x256xf32> to vector<2x256xf32>
    %272 = arith.mulf %269, %271 : vector<2x256xf32>
    %c0_188 = arith.constant 0 : index
    %c0_189 = arith.constant 0 : index
    %273 = vector.load %arg4[%c0_188, %c0_189] : memref<1x256xf32, #tpu.memory_space<vmem>>, vector<1x256xf32>
    %274 = vector.broadcast %273 : vector<1x256xf32> to vector<2x256xf32>
    %275 = arith.addf %272, %274 : vector<2x256xf32>
    %276 = arith.truncf %275 : vector<2x256xf32> to vector<2x256xbf16>
    %c0_190 = arith.constant 0 : index
    %c0_191 = arith.constant 0 : index
    %277 = vector.load %arg5[%c0_190, %c0_191] : memref<256x32xbf16, #tpu.memory_space<vmem>>, vector<256x32xbf16>
    %cst_192 = arith.constant dense<0.000000e+00> : vector<2x32xf32>
    %278 = tpu.matmul %276, %277, %cst_192 {dimension_numbers = #tpu.dot_dimension_numbers<[1], [0], [0], [1], [0, 0, 1, 1], [], []>} : vector<2x256xbf16>, vector<256x32xbf16>, vector<2x32xf32> -> vector<2x32xf32>
    %c0_193 = arith.constant 0 : index
    %c0_194 = arith.constant 0 : index
    %279 = vector.load %arg6[%c0_193, %c0_194] : memref<1x32xf32, #tpu.memory_space<vmem>>, vector<1x32xf32>
    %280 = vector.broadcast %279 : vector<1x32xf32> to vector<2x32xf32>
    %281 = arith.addf %278, %280 : vector<2x32xf32>
    %cst_195 = arith.constant 0.000000e+00 : f32
    %282 = vector.broadcast %cst_195 : f32 to vector<2x32xf32>
    %283 = arith.maximumf %281, %282 : vector<2x32xf32>
    %284 = arith.truncf %283 : vector<2x32xf32> to vector<2x32xbf16>
    %c0_196 = arith.constant 0 : index
    %c0_197 = arith.constant 0 : index
    %285 = vector.load %arg7[%c0_196, %c0_197] : memref<32x32xbf16, #tpu.memory_space<vmem>>, vector<32x32xbf16>
    %cst_198 = arith.constant dense<0.000000e+00> : vector<2x32xf32>
    %286 = tpu.matmul %284, %285, %cst_198 {dimension_numbers = #tpu.dot_dimension_numbers<[1], [0], [0], [1], [0, 0, 1, 1], [], []>} : vector<2x32xbf16>, vector<32x32xbf16>, vector<2x32xf32> -> vector<2x32xf32>
    %c0_199 = arith.constant 0 : index
    %c0_200 = arith.constant 0 : index
    %287 = vector.load %arg8[%c0_199, %c0_200] : memref<1x32xf32, #tpu.memory_space<vmem>>, vector<1x32xf32>
    %288 = vector.broadcast %287 : vector<1x32xf32> to vector<2x32xf32>
    %289 = arith.addf %286, %288 : vector<2x32xf32>
    %cst_201 = arith.constant 0.000000e+00 : f32
    %290 = vector.broadcast %cst_201 : f32 to vector<2x32xf32>
    %291 = arith.maximumf %289, %290 : vector<2x32xf32>
    %c0_202 = arith.constant 0 : index
    %c0_203 = arith.constant 0 : index
    %292 = vector.load %arg9[%c0_202, %c0_203] : memref<2x32xf32, #tpu.memory_space<vmem>>, vector<2x32xf32>
    tpu.vector_store %arg9[%c0_202, %c0_203], %291 {strides = array<i32>} : memref<2x32xf32, #tpu.memory_space<vmem>>, vector<2x32xf32>,
    return
  }
}

</mosaic_0001>

<llo_original>
// kernel: tile.9
$region0: #{tile.9}
  %s0 = inlined_call_operand.vmem [shape: f32[36,2,4,64], index: 0, kind: input, shape index: {}]
  %s1 = inlined_call_operand.vmem [shape: f32[36,2,256], index: 1, kind: output, shape index: {}]
  $region1: #{tile.9} parent=0
    #allocation0 [shape = 'u8[294912]{0}', space=vmem, size = 0x48000, scoped, tag = 'scoped mem for output reshape']
    #allocation1 [shape = 'u8[294912]{0}', space=vmem, size = 0x48000, scoped, tag = 'scoped mem for input reshape']
    %s3 = sshll.u32 1, 4
    %s4 = ssub.s32 %s3, 1
    %s5 = smul.addr 4, 71
    %s6 = scalar_lea.vmem %s0, %s5
    %v7 = vld [vmem:[%s6] sm:%s4]
    %s8 = scalar_lea.vmem [#allocation1], 568
    %9 = vst [vmem:[%s8] sm:%s4] %v7
    %s10 = smul.addr 4, 70
    %s11 = scalar_lea.vmem %s0, %s10
    %v12 = vld [vmem:[%s11] sm:%s4]
    %s13 = scalar_lea.vmem [#allocation1], 560
    %14 = vst [vmem:[%s13] sm:%s4] %v12
    %s15 = smul.addr 4, 69
    %s16 = scalar_lea.vmem %s0, %s15
    %v17 = vld [vmem:[%s16] sm:%s4]
    %s18 = scalar_lea.vmem [#allocation1], 552
    %19 = vst [vmem:[%s18] sm:%s4] %v17
    %s20 = smul.addr 4, 68
    %s21 = scalar_lea.vmem %s0, %s20
    %v22 = vld [vmem:[%s21] sm:%s4]
    %s23 = scalar_lea.vmem [#allocation1], 544
    %24 = vst [vmem:[%s23] sm:%s4] %v22
    %s25 = smul.addr 4, 67
    %s26 = scalar_lea.vmem %s0, %s25
    %v27 = vld [vmem:[%s26] sm:%s4]
    %s28 = scalar_lea.vmem [#allocation1], 536
    %29 = vst [vmem:[%s28] sm:%s4] %v27
    %s30 = smul.addr 4, 66
    %s31 = scalar_lea.vmem %s0, %s30
    %v32 = vld [vmem:[%s31] sm:%s4]
    %s33 = scalar_lea.vmem [#allocation1], 528
    %34 = vst [vmem:[%s33] sm:%s4] %v32
    %s35 = smul.addr 4, 65
    %s36 = scalar_lea.vmem %s0, %s35
    %v37 = vld [vmem:[%s36] sm:%s4]
    %s38 = scalar_lea.vmem [#allocation1], 520
    %39 = vst [vmem:[%s38] sm:%s4] %v37
    %s40 = smul.addr 4, 64
    %s41 = scalar_lea.vmem %s0, %s40
    %v42 = vld [vmem:[%s41] sm:%s4]
    %s43 = scalar_lea.vmem [#allocation1], 512
    %44 = vst [vmem:[%s43] sm:%s4] %v42
    %s45 = smul.addr 4, 63
    %s46 = scalar_lea.vmem %s0, %s45
    %v47 = vld [vmem:[%s46] sm:%s4]
    %s48 = scalar_lea.vmem [#allocation1], 504
    %49 = vst [vmem:[%s48] sm:%s4] %v47
    %s50 = smul.addr 4, 62
    %s51 = scalar_lea.vmem %s0, %s50
    %v52 = vld [vmem:[%s51] sm:%s4]
    %s53 = scalar_lea.vmem [#allocation1], 496
    %54 = vst [vmem:[%s53] sm:%s4] %v52
    %s55 = smul.addr 4, 61
    %s56 = scalar_lea.vmem %s0, %s55
    %v57 = vld [vmem:[%s56] sm:%s4]
    %s58 = scalar_lea.vmem [#allocation1], 488
    %59 = vst [vmem:[%s58] sm:%s4] %v57
    %s60 = smul.addr 4, 60
    %s61 = scalar_lea.vmem %s0, %s60
    %v62 = vld [vmem:[%s61] sm:%s4]
    %s63 = scalar_lea.vmem [#allocation1], 480
    %64 = vst [vmem:[%s63] sm:%s4] %v62
    %s65 = smul.addr 4, 59
    %s66 = scalar_lea.vmem %s0, %s65
    %v67 = vld [vmem:[%s66] sm:%s4]
    %s68 = scalar_lea.vmem [#allocation1], 472
    %69 = vst [vmem:[%s68] sm:%s4] %v67
    %s70 = smul.addr 4, 58
    %s71 = scalar_lea.vmem %s0, %s70
    %v72 = vld [vmem:[%s71] sm:%s4]
    %s73 = scalar_lea.vmem [#allocation1], 464
    %74 = vst [vmem:[%s73] sm:%s4] %v72
    %s75 = smul.addr 4, 57
    %s76 = scalar_lea.vmem %s0, %s75
    %v77 = vld [vmem:[%s76] sm:%s4]
    %s78 = scalar_lea.vmem [#allocation1], 456
    %79 = vst [vmem:[%s78] sm:%s4] %v77
    %s80 = smul.addr 4, 56
    %s81 = scalar_lea.vmem %s0, %s80
    %v82 = vld [vmem:[%s81] sm:%s4]
    %s83 = scalar_lea.vmem [#allocation1], 448
    %84 = vst [vmem:[%s83] sm:%s4] %v82
    %s85 = smul.addr 4, 55
    %s86 = scalar_lea.vmem %s0, %s85
    %v87 = vld [vmem:[%s86] sm:%s4]
    %s88 = scalar_lea.vmem [#allocation1], 440
    %89 = vst [vmem:[%s88] sm:%s4] %v87
    %s90 = smul.addr 4, 54
    %s91 = scalar_lea.vmem %s0, %s90
    %v92 = vld [vmem:[%s91] sm:%s4]
    %s93 = scalar_lea.vmem [#allocation1], 432
    %94 = vst [vmem:[%s93] sm:%s4] %v92
    %s95 = smul.addr 4, 53
    %s96 = scalar_lea.vmem %s0, %s95
    %v97 = vld [vmem:[%s96] sm:%s4]
    %s98 = scalar_lea.vmem [#allocation1], 424
    %99 = vst [vmem:[%s98] sm:%s4] %v97
    %s100 = smul.addr 4, 52
    %s101 = scalar_lea.vmem %s0, %s100
    %v102 = vld [vmem:[%s101] sm:%s4]
    %s103 = scalar_lea.vmem [#allocation1], 416
    %104 = vst [vmem:[%s103] sm:%s4] %v102
    %s105 = smul.addr 4, 51
    %s106 = scalar_lea.vmem %s0, %s105
    %v107 = vld [vmem:[%s106] sm:%s4]
    %s108 = scalar_lea.vmem [#allocation1], 408
    %109 = vst [vmem:[%s108] sm:%s4] %v107
    %s110 = smul.addr 4, 50
    %s111 = scalar_lea.vmem %s0, %s110
    %v112 = vld [vmem:[%s111] sm:%s4]
    %s113 = scalar_lea.vmem [#allocation1], 400
    %114 = vst [vmem:[%s113] sm:%s4] %v112
    %s115 = smul.addr 4, 49
    %s116 = scalar_lea.vmem %s0, %s115
    %v117 = vld [vmem:[%s116] sm:%s4]
    %s118 = scalar_lea.vmem [#allocation1], 392
    %119 = vst [vmem:[%s118] sm:%s4] %v117
    %s120 = smul.addr 4, 48
    %s121 = scalar_lea.vmem %s0, %s120
    %v122 = vld [vmem:[%s121] sm:%s4]
    %s123 = scalar_lea.vmem [#allocation1], 384
    %124 = vst [vmem:[%s123] sm:%s4] %v122
    %s125 = smul.addr 4, 47
    %s126 = scalar_lea.vmem %s0, %s125
    %v127 = vld [vmem:[%s126] sm:%s4]
    %s128 = scalar_lea.vmem [#allocation1], 376
    %129 = vst [vmem:[%s128] sm:%s4] %v127
    %s130 = smul.addr 4, 46
    %s131 = scalar_lea.vmem %s0, %s130
    %v132 = vld [vmem:[%s131] sm:%s4]
    %s133 = scalar_lea.vmem [#allocation1], 368
    %134 = vst [vmem:[%s133] sm:%s4] %v132
    %s135 = smul.addr 4, 45
    %s136 = scalar_lea.vmem %s0, %s135
    %v137 = vld [vmem:[%s136] sm:%s4]
    %s138 = scalar_lea.vmem [#allocation1], 360
    %139 = vst [vmem:[%s138] sm:%s4] %v137
    %s140 = smul.addr 4, 44
    %s141 = scalar_lea.vmem %s0, %s140
    %v142 = vld [vmem:[%s141] sm:%s4]
    %s143 = scalar_lea.vmem [#allocation1], 352
    %144 = vst [vmem:[%s143] sm:%s4] %v142
    %s145 = smul.addr 4, 43
    %s146 = scalar_lea.vmem %s0, %s145
    %v147 = vld [vmem:[%s146] sm:%s4]
    %s148 = scalar_lea.vmem [#allocation1], 344
    %149 = vst [vmem:[%s148] sm:%s4] %v147
    %s150 = smul.addr 4, 42
    %s151 = scalar_lea.vmem %s0, %s150
    %v152 = vld [vmem:[%s151] sm:%s4]
    %s153 = scalar_lea.vmem [#allocation1], 336
    %154 = vst [vmem:[%s153] sm:%s4] %v152
    %s155 = smul.addr 4, 41
    %s156 = scalar_lea.vmem %s0, %s155
    %v157 = vld [vmem:[%s156] sm:%s4]
    %s158 = scalar_lea.vmem [#allocation1], 328
    %159 = vst [vmem:[%s158] sm:%s4] %v157
    %s160 = smul.addr 4, 40
    %s161 = scalar_lea.vmem %s0, %s160
    %v162 = vld [vmem:[%s161] sm:%s4]
    %s163 = scalar_lea.vmem [#allocation1], 320
    %164 = vst [vmem:[%s163] sm:%s4] %v162
    %s165 = smul.addr 4, 39
    %s166 = scalar_lea.vmem %s0, %s165
    %v167 = vld [vmem:[%s166] sm:%s4]
    %s168 = scalar_lea.vmem [#allocation1], 312
    %169 = vst [vmem:[%s168] sm:%s4] %v167
    %s170 = smul.addr 4, 38
    %s171 = scalar_lea.vmem %s0, %s170
    %v172 = vld [vmem:[%s171] sm:%s4]
    %s173 = scalar_lea.vmem [#allocation1], 304
    %174 = vst [vmem:[%s173] sm:%s4] %v172
    %s175 = smul.addr 4, 37
    %s176 = scalar_lea.vmem %s0, %s175
    %v177 = vld [vmem:[%s176] sm:%s4]
    %s178 = scalar_lea.vmem [#allocation1], 296
    %179 = vst [vmem:[%s178] sm:%s4] %v177
    %s180 = smul.addr 4, 36
    %s181 = scalar_lea.vmem %s0, %s180
    %v182 = vld [vmem:[%s181] sm:%s4]
    %s183 = scalar_lea.vmem [#allocation1], 288
    %184 = vst [vmem:[%s183] sm:%s4] %v182
    %s185 = smul.addr 4, 35
    %s186 = scalar_lea.vmem %s0, %s185
    %v187 = vld [vmem:[%s186] sm:%s4]
    %s188 = scalar_lea.vmem [#allocation1], 280
    %189 = vst [vmem:[%s188] sm:%s4] %v187
    %s190 = smul.addr 4, 34
    %s191 = scalar_lea.vmem %s0, %s190
    %v192 = vld [vmem:[%s191] sm:%s4]
    %s193 = scalar_lea.vmem [#allocation1], 272
    %194 = vst [vmem:[%s193] sm:%s4] %v192
    %s195 = smul.addr 4, 33
    %s196 = scalar_lea.vmem %s0, %s195
    %v197 = vld [vmem:[%s196] sm:%s4]
    %s198 = scalar_lea.vmem [#allocation1], 264
    %199 = vst [vmem:[%s198] sm:%s4] %v197
    %s200 = smul.addr 4, 32
    %s201 = scalar_lea.vmem %s0, %s200
    %v202 = vld [vmem:[%s201] sm:%s4]
    %s203 = scalar_lea.vmem [#allocation1], 256
    %204 = vst [vmem:[%s203] sm:%s4] %v202
    %s205 = smul.addr 4, 31
    %s206 = scalar_lea.vmem %s0, %s205
    %v207 = vld [vmem:[%s206] sm:%s4]
    %s208 = scalar_lea.vmem [#allocation1], 248
    %209 = vst [vmem:[%s208] sm:%s4] %v207
    %s210 = smul.addr 4, 30
    %s211 = scalar_lea.vmem %s0, %s210
    %v212 = vld [vmem:[%s211] sm:%s4]
    %s213 = scalar_lea.vmem [#allocation1], 240
    %214 = vst [vmem:[%s213] sm:%s4] %v212
    %s215 = smul.addr 4, 29
    %s216 = scalar_lea.vmem %s0, %s215
    %v217 = vld [vmem:[%s216] sm:%s4]
    %s218 = scalar_lea.vmem [#allocation1], 232
    %219 = vst [vmem:[%s218] sm:%s4] %v217
    %s220 = smul.addr 4, 28
    %s221 = scalar_lea.vmem %s0, %s220
    %v222 = vld [vmem:[%s221] sm:%s4]
    %s223 = scalar_lea.vmem [#allocation1], 224
    %224 = vst [vmem:[%s223] sm:%s4] %v222
    %s225 = smul.addr 4, 27
    %s226 = scalar_lea.vmem %s0, %s225
    %v227 = vld [vmem:[%s226] sm:%s4]
    %s228 = scalar_lea.vmem [#allocation1], 216
    %229 = vst [vmem:[%s228] sm:%s4] %v227
    %s230 = smul.addr 4, 26
    %s231 = scalar_lea.vmem %s0, %s230
    %v232 = vld [vmem:[%s231] sm:%s4]
    %s233 = scalar_lea.vmem [#allocation1], 208
    %234 = vst [vmem:[%s233] sm:%s4] %v232
    %s235 = smul.addr 4, 25
    %s236 = scalar_lea.vmem %s0, %s235
    %v237 = vld [vmem:[%s236] sm:%s4]
    %s238 = scalar_lea.vmem [#allocation1], 200
    %239 = vst [vmem:[%s238] sm:%s4] %v237
    %s240 = smul.addr 4, 24
    %s241 = scalar_lea.vmem %s0, %s240
    %v242 = vld [vmem:[%s241] sm:%s4]
    %s243 = scalar_lea.vmem [#allocation1], 192
    %244 = vst [vmem:[%s243] sm:%s4] %v242
    %s245 = smul.addr 4, 23
    %s246 = scalar_lea.vmem %s0, %s245
    %v247 = vld [vmem:[%s246] sm:%s4]
    %s248 = scalar_lea.vmem [#allocation1], 184
    %249 = vst [vmem:[%s248] sm:%s4] %v247
    %s250 = smul.addr 4, 22
    %s251 = scalar_lea.vmem %s0, %s250
    %v252 = vld [vmem:[%s251] sm:%s4]
    %s253 = scalar_lea.vmem [#allocation1], 176
    %254 = vst [vmem:[%s253] sm:%s4] %v252
    %s255 = smul.addr 4, 21
    %s256 = scalar_lea.vmem %s0, %s255
    %v257 = vld [vmem:[%s256] sm:%s4]
    %s258 = scalar_lea.vmem [#allocation1], 168
    %259 = vst [vmem:[%s258] sm:%s4] %v257
    %s260 = smul.addr 4, 20
    %s261 = scalar_lea.vmem %s0, %s260
    %v262 = vld [vmem:[%s261] sm:%s4]
    %s263 = scalar_lea.vmem [#allocation1], 160
    %264 = vst [vmem:[%s263] sm:%s4] %v262
    %s265 = smul.addr 4, 19
    %s266 = scalar_lea.vmem %s0, %s265
    %v267 = vld [vmem:[%s266] sm:%s4]
    %s268 = scalar_lea.vmem [#allocation1], 152
    %269 = vst [vmem:[%s268] sm:%s4] %v267
    %s270 = smul.addr 4, 18
    %s271 = scalar_lea.vmem %s0, %s270
    %v272 = vld [vmem:[%s271] sm:%s4]
    %s273 = scalar_lea.vmem [#allocation1], 144
    %274 = vst [vmem:[%s273] sm:%s4] %v272
    %s275 = smul.addr 4, 17
    %s276 = scalar_lea.vmem %s0, %s275
    %v277 = vld [vmem:[%s276] sm:%s4]
    %s278 = scalar_lea.vmem [#allocation1], 136
    %279 = vst [vmem:[%s278] sm:%s4] %v277
    %s280 = smul.addr 4, 16
    %s281 = scalar_lea.vmem %s0, %s280
    %v282 = vld [vmem:[%s281] sm:%s4]
    %s283 = scalar_lea.vmem [#allocation1], 128
    %284 = vst [vmem:[%s283] sm:%s4] %v282
    %s285 = smul.addr 4, 15
    %s286 = scalar_lea.vmem %s0, %s285
    %v287 = vld [vmem:[%s286] sm:%s4]
    %s288 = scalar_lea.vmem [#allocation1], 120
    %289 = vst [vmem:[%s288] sm:%s4] %v287
    %s290 = smul.addr 4, 14
    %s291 = scalar_lea.vmem %s0, %s290
    %v292 = vld [vmem:[%s291] sm:%s4]
    %s293 = scalar_lea.vmem [#allocation1], 112
    %294 = vst [vmem:[%s293] sm:%s4] %v292
    %s295 = smul.addr 4, 13
    %s296 = scalar_lea.vmem %s0, %s295
    %v297 = vld [vmem:[%s296] sm:%s4]
    %s298 = scalar_lea.vmem [#allocation1], 104
    %299 = vst [vmem:[%s298] sm:%s4] %v297
    %s300 = smul.addr 4, 12
    %s301 = scalar_lea.vmem %s0, %s300
    %v302 = vld [vmem:[%s301] sm:%s4]
    %s303 = scalar_lea.vmem [#allocation1], 96
    %304 = vst [vmem:[%s303] sm:%s4] %v302
    %s305 = smul.addr 4, 11
    %s306 = scalar_lea.vmem %s0, %s305
    %v307 = vld [vmem:[%s306] sm:%s4]
    %s308 = scalar_lea.vmem [#allocation1], 88
    %309 = vst [vmem:[%s308] sm:%s4] %v307
    %s310 = smul.addr 4, 10
    %s311 = scalar_lea.vmem %s0, %s310
    %v312 = vld [vmem:[%s311] sm:%s4]
    %s313 = scalar_lea.vmem [#allocation1], 80
    %314 = vst [vmem:[%s313] sm:%s4] %v312
    %s315 = smul.addr 4, 9
    %s316 = scalar_lea.vmem %s0, %s315
    %v317 = vld [vmem:[%s316] sm:%s4]
    %s318 = scalar_lea.vmem [#allocation1], 72
    %319 = vst [vmem:[%s318] sm:%s4] %v317
    %s320 = smul.addr 4, 8
    %s321 = scalar_lea.vmem %s0, %s320
    %v322 = vld [vmem:[%s321] sm:%s4]
    %s323 = scalar_lea.vmem [#allocation1], 64
    %324 = vst [vmem:[%s323] sm:%s4] %v322
    %s325 = smul.addr 4, 7
    %s326 = scalar_lea.vmem %s0, %s325
    %v327 = vld [vmem:[%s326] sm:%s4]
    %s328 = scalar_lea.vmem [#allocation1], 56
    %329 = vst [vmem:[%s328] sm:%s4] %v327
    %s330 = smul.addr 4, 6
    %s331 = scalar_lea.vmem %s0, %s330
    %v332 = vld [vmem:[%s331] sm:%s4]
    %s333 = scalar_lea.vmem [#allocation1], 48
    %334 = vst [vmem:[%s333] sm:%s4] %v332
    %s335 = smul.addr 4, 5
    %s336 = scalar_lea.vmem %s0, %s335
    %v337 = vld [vmem:[%s336] sm:%s4]
    %s338 = scalar_lea.vmem [#allocation1], 40
    %339 = vst [vmem:[%s338] sm:%s4] %v337
    %s340 = smul.addr 4, 4
    %s341 = scalar_lea.vmem %s0, %s340
    %v342 = vld [vmem:[%s341] sm:%s4]
    %s343 = scalar_lea.vmem [#allocation1], 32
    %344 = vst [vmem:[%s343] sm:%s4] %v342
    %s345 = smul.addr 4, 3
    %s346 = scalar_lea.vmem %s0, %s345
    %v347 = vld [vmem:[%s346] sm:%s4]
    %s348 = scalar_lea.vmem [#allocation1], 24
    %349 = vst [vmem:[%s348] sm:%s4] %v347
    %s350 = smul.addr 4, 2
    %s351 = scalar_lea.vmem %s0, %s350
    %v352 = vld [vmem:[%s351] sm:%s4]
    %s353 = scalar_lea.vmem [#allocation1], 16
    %354 = vst [vmem:[%s353] sm:%s4] %v352
    %s355 = scalar_lea.vmem %s0, 4
    %v356 = vld [vmem:[%s355] sm:%s4]
    %s357 = scalar_lea.vmem [#allocation1], 8
    %358 = vst [vmem:[%s357] sm:%s4] %v356
    %v359 = vld [vmem:[%s0] sm:%s4]
    %360 = vst [vmem:[#allocation1] sm:%s4] %v359
    %s361 = smov 3
    %v362 = vld [vmem:[#allocation1] ss:$2 sm:%s361]
    %vm363 = vcmask 523264
    %364 = vst.msk [vmem:[#allocation0] ss:$8 sm:$0x3] %vm363, %v362
    %s365 = scalar_lea.vmem [#allocation1], 8
    %s366 = smov 3
    %v367 = vld [vmem:[%s365] ss:$2 sm:%s366]
    %vm368 = vcmask 523264
    %s369 = scalar_lea.vmem [#allocation0], 1
    %370 = vst.msk [vmem:[%s369] ss:$8 sm:$0x3] %vm368, %v367
    %s371 = scalar_lea.vmem [#allocation1], 16
    %s372 = smov 3
    %v373 = vld [vmem:[%s371] ss:$2 sm:%s372]
    %vm374 = vcmask 523264
    %s375 = scalar_lea.vmem [#allocation0], 16
    %376 = vst.msk [vmem:[%s375] ss:$8 sm:$0x3] %vm374, %v373
    %s377 = scalar_lea.vmem [#allocation1], 24
    %s378 = smov 3
    %v379 = vld [vmem:[%s377] ss:$2 sm:%s378]
    %vm380 = vcmask 523264
    %s381 = scalar_lea.vmem [#allocation0], 17
    %382 = vst.msk [vmem:[%s381] ss:$8 sm:$0x3] %vm380, %v379
    %s383 = scalar_lea.vmem [#allocation1], 32
    %s384 = smov 3
    %v385 = vld [vmem:[%s383] ss:$2 sm:%s384]
    %vm386 = vcmask 523264
    %s387 = scalar_lea.vmem [#allocation0], 32
    %388 = vst.msk [vmem:[%s387] ss:$8 sm:$0x3] %vm386, %v385
    %s389 = scalar_lea.vmem [#allocation1], 40
    %s390 = smov 3
    %v391 = vld [vmem:[%s389] ss:$2 sm:%s390]
    %vm392 = vcmask 523264
    %s393 = scalar_lea.vmem [#allocation0], 33
    %394 = vst.msk [vmem:[%s393] ss:$8 sm:$0x3] %vm392, %v391
    %s395 = scalar_lea.vmem [#allocation1], 48
    %s396 = smov 3
    %v397 = vld [vmem:[%s395] ss:$2 sm:%s396]
    %vm398 = vcmask 523264
    %s399 = scalar_lea.vmem [#allocation0], 48
    %400 = vst.msk [vmem:[%s399] ss:$8 sm:$0x3] %vm398, %v397
    %s401 = scalar_lea.vmem [#allocation1], 56
    %s402 = smov 3
    %v403 = vld [vmem:[%s401] ss:$2 sm:%s402]
    %vm404 = vcmask 523264
    %s405 = scalar_lea.vmem [#allocation0], 49
    %406 = vst.msk [vmem:[%s405] ss:$8 sm:$0x3] %vm404, %v403
    %s407 = scalar_lea.vmem [#allocation1], 64
    %s408 = smov 3
    %v409 = vld [vmem:[%s407] ss:$2 sm:%s408]
    %vm410 = vcmask 523264
    %s411 = scalar_lea.vmem [#allocation0], 64
    %412 = vst.msk [vmem:[%s411] ss:$8 sm:$0x3] %vm410, %v409
    %s413 = scalar_lea.vmem [#allocation1], 72
    %s414 = smov 3
    %v415 = vld [vmem:[%s413] ss:$2 sm:%s414]
    %vm416 = vcmask 523264
    %s417 = scalar_lea.vmem [#allocation0], 65
    %418 = vst.msk [vmem:[%s417] ss:$8 sm:$0x3] %vm416, %v415
    %s419 = scalar_lea.vmem [#allocation1], 80
    %s420 = smov 3
    %v421 = vld [vmem:[%s419] ss:$2 sm:%s420]
    %vm422 = vcmask 523264
    %s423 = scalar_lea.vmem [#allocation0], 80
    %424 = vst.msk [vmem:[%s423] ss:$8 sm:$0x3] %vm422, %v421
    %s425 = scalar_lea.vmem [#allocation1], 88
    %s426 = smov 3
    %v427 = vld [vmem:[%s425] ss:$2 sm:%s426]
    %vm428 = vcmask 523264
    %s429 = scalar_lea.vmem [#allocation0], 81
    %430 = vst.msk [vmem:[%s429] ss:$8 sm:$0x3] %vm428, %v427
    %s431 = scalar_lea.vmem [#allocation1], 96
    %s432 = smov 3
    %v433 = vld [vmem:[%s431] ss:$2 sm:%s432]
    %vm434 = vcmask 523264
    %s435 = scalar_lea.vmem [#allocation0], 96
    %436 = vst.msk [vmem:[%s435] ss:$8 sm:$0x3] %vm434, %v433
    %s437 = scalar_lea.vmem [#allocation1], 104
    %s438 = smov 3
    %v439 = vld [vmem:[%s437] ss:$2 sm:%s438]
    %vm440 = vcmask 523264
    %s441 = scalar_lea.vmem [#allocation0], 97
    %442 = vst.msk [vmem:[%s441] ss:$8 sm:$0x3] %vm440, %v439
    %s443 = scalar_lea.vmem [#allocation1], 112
    %s444 = smov 3
    %v445 = vld [vmem:[%s443] ss:$2 sm:%s444]
    %vm446 = vcmask 523264
    %s447 = scalar_lea.vmem [#allocation0], 112
    %448 = vst.msk [vmem:[%s447] ss:$8 sm:$0x3] %vm446, %v445
    %s449 = scalar_lea.vmem [#allocation1], 120
    %s450 = smov 3
    %v451 = vld [vmem:[%s449] ss:$2 sm:%s450]
    %vm452 = vcmask 523264
    %s453 = scalar_lea.vmem [#allocation0], 113
    %454 = vst.msk [vmem:[%s453] ss:$8 sm:$0x3] %vm452, %v451
    %s455 = scalar_lea.vmem [#allocation1], 128
    %s456 = smov 3
    %v457 = vld [vmem:[%s455] ss:$2 sm:%s456]
    %vm458 = vcmask 523264
    %s459 = scalar_lea.vmem [#allocation0], 128
    %460 = vst.msk [vmem:[%s459] ss:$8 sm:$0x3] %vm458, %v457
    %s461 = scalar_lea.vmem [#allocation1], 136
    %s462 = smov 3
    %v463 = vld [vmem:[%s461] ss:$2 sm:%s462]
    %vm464 = vcmask 523264
    %s465 = scalar_lea.vmem [#allocation0], 129
    %466 = vst.msk [vmem:[%s465] ss:$8 sm:$0x3] %vm464, %v463
    %s467 = scalar_lea.vmem [#allocation1], 144
    %s468 = smov 3
    %v469 = vld [vmem:[%s467] ss:$2 sm:%s468]
    %vm470 = vcmask 523264
    %s471 = scalar_lea.vmem [#allocation0], 144
    %472 = vst.msk [vmem:[%s471] ss:$8 sm:$0x3] %vm470, %v469
    %s473 = scalar_lea.vmem [#allocation1], 152
    %s474 = smov 3
    %v475 = vld [vmem:[%s473] ss:$2 sm:%s474]
    %vm476 = vcmask 523264
    %s477 = scalar_lea.vmem [#allocation0], 145
    %478 = vst.msk [vmem:[%s477] ss:$8 sm:$0x3] %vm476, %v475
    %s479 = scalar_lea.vmem [#allocation1], 160
    %s480 = smov 3
    %v481 = vld [vmem:[%s479] ss:$2 sm:%s480]
    %vm482 = vcmask 523264
    %s483 = scalar_lea.vmem [#allocation0], 160
    %484 = vst.msk [vmem:[%s483] ss:$8 sm:$0x3] %vm482, %v481
    %s485 = scalar_lea.vmem [#allocation1], 168
    %s486 = smov 3
    %v487 = vld [vmem:[%s485] ss:$2 sm:%s486]
    %vm488 = vcmask 523264
    %s489 = scalar_lea.vmem [#allocation0], 161
    %490 = vst.msk [vmem:[%s489] ss:$8 sm:$0x3] %vm488, %v487
    %s491 = scalar_lea.vmem [#allocation1], 176
    %s492 = smov 3
    %v493 = vld [vmem:[%s491] ss:$2 sm:%s492]
    %vm494 = vcmask 523264
    %s495 = scalar_lea.vmem [#allocation0], 176
    %496 = vst.msk [vmem:[%s495] ss:$8 sm:$0x3] %vm494, %v493
    %s497 = scalar_lea.vmem [#allocation1], 184
    %s498 = smov 3
    %v499 = vld [vmem:[%s497] ss:$2 sm:%s498]
    %vm500 = vcmask 523264
    %s501 = scalar_lea.vmem [#allocation0], 177
    %502 = vst.msk [vmem:[%s501] ss:$8 sm:$0x3] %vm500, %v499
    %s503 = scalar_lea.vmem [#allocation1], 192
    %s504 = smov 3
    %v505 = vld [vmem:[%s503] ss:$2 sm:%s504]
    %vm506 = vcmask 523264
    %s507 = scalar_lea.vmem [#allocation0], 192
    %508 = vst.msk [vmem:[%s507] ss:$8 sm:$0x3] %vm506, %v505
    %s509 = scalar_lea.vmem [#allocation1], 200
    %s510 = smov 3
    %v511 = vld [vmem:[%s509] ss:$2 sm:%s510]
    %vm512 = vcmask 523264
    %s513 = scalar_lea.vmem [#allocation0], 193
    %514 = vst.msk [vmem:[%s513] ss:$8 sm:$0x3] %vm512, %v511
    %s515 = scalar_lea.vmem [#allocation1], 208
    %s516 = smov 3
    %v517 = vld [vmem:[%s515] ss:$2 sm:%s516]
    %vm518 = vcmask 523264
    %s519 = scalar_lea.vmem [#allocation0], 208
    %520 = vst.msk [vmem:[%s519] ss:$8 sm:$0x3] %vm518, %v517
    %s521 = scalar_lea.vmem [#allocation1], 216
    %s522 = smov 3
    %v523 = vld [vmem:[%s521] ss:$2 sm:%s522]
    %vm524 = vcmask 523264
    %s525 = scalar_lea.vmem [#allocation0], 209
    %526 = vst.msk [vmem:[%s525] ss:$8 sm:$0x3] %vm524, %v523
    %s527 = scalar_lea.vmem [#allocation1], 224
    %s528 = smov 3
    %v529 = vld [vmem:[%s527] ss:$2 sm:%s528]
    %vm530 = vcmask 523264
    %s531 = scalar_lea.vmem [#allocation0], 224
    %532 = vst.msk [vmem:[%s531] ss:$8 sm:$0x3] %vm530, %v529
    %s533 = scalar_lea.vmem [#allocation1], 232
    %s534 = smov 3
    %v535 = vld [vmem:[%s533] ss:$2 sm:%s534]
    %vm536 = vcmask 523264
    %s537 = scalar_lea.vmem [#allocation0], 225
    %538 = vst.msk [vmem:[%s537] ss:$8 sm:$0x3] %vm536, %v535
    %s539 = scalar_lea.vmem [#allocation1], 240
    %s540 = smov 3
    %v541 = vld [vmem:[%s539] ss:$2 sm:%s540]
    %vm542 = vcmask 523264
    %s543 = scalar_lea.vmem [#allocation0], 240
    %544 = vst.msk [vmem:[%s543] ss:$8 sm:$0x3] %vm542, %v541
    %s545 = scalar_lea.vmem [#allocation1], 248
    %s546 = smov 3
    %v547 = vld [vmem:[%s545] ss:$2 sm:%s546]
    %vm548 = vcmask 523264
    %s549 = scalar_lea.vmem [#allocation0], 241
    %550 = vst.msk [vmem:[%s549] ss:$8 sm:$0x3] %vm548, %v547
    %s551 = scalar_lea.vmem [#allocation1], 256
    %s552 = smov 3
    %v553 = vld [vmem:[%s551] ss:$2 sm:%s552]
    %vm554 = vcmask 523264
    %s555 = scalar_lea.vmem [#allocation0], 256
    %556 = vst.msk [vmem:[%s555] ss:$8 sm:$0x3] %vm554, %v553
    %s557 = scalar_lea.vmem [#allocation1], 264
    %s558 = smov 3
    %v559 = vld [vmem:[%s557] ss:$2 sm:%s558]
    %vm560 = vcmask 523264
    %s561 = scalar_lea.vmem [#allocation0], 257
    %562 = vst.msk [vmem:[%s561] ss:$8 sm:$0x3] %vm560, %v559
    %s563 = scalar_lea.vmem [#allocation1], 272
    %s564 = smov 3
    %v565 = vld [vmem:[%s563] ss:$2 sm:%s564]
    %vm566 = vcmask 523264
    %s567 = scalar_lea.vmem [#allocation0], 272
    %568 = vst.msk [vmem:[%s567] ss:$8 sm:$0x3] %vm566, %v565
    %s569 = scalar_lea.vmem [#allocation1], 280
    %s570 = smov 3
    %v571 = vld [vmem:[%s569] ss:$2 sm:%s570]
    %vm572 = vcmask 523264
    %s573 = scalar_lea.vmem [#allocation0], 273
    %574 = vst.msk [vmem:[%s573] ss:$8 sm:$0x3] %vm572, %v571
    %s575 = scalar_lea.vmem [#allocation1], 288
    %s576 = smov 3
    %v577 = vld [vmem:[%s575] ss:$2 sm:%s576]
    %vm578 = vcmask 523264
    %s579 = scalar_lea.vmem [#allocation0], 288
    %580 = vst.msk [vmem:[%s579] ss:$8 sm:$0x3] %vm578, %v577
    %s581 = scalar_lea.vmem [#allocation1], 296
    %s582 = smov 3
    %v583 = vld [vmem:[%s581] ss:$2 sm:%s582]
    %vm584 = vcmask 523264
    %s585 = scalar_lea.vmem [#allocation0], 289
    %586 = vst.msk [vmem:[%s585] ss:$8 sm:$0x3] %vm584, %v583
    %s587 = scalar_lea.vmem [#allocation1], 304
    %s588 = smov 3
    %v589 = vld [vmem:[%s587] ss:$2 sm:%s588]
    %vm590 = vcmask 523264
    %s591 = scalar_lea.vmem [#allocation0], 304
    %592 = vst.msk [vmem:[%s591] ss:$8 sm:$0x3] %vm590, %v589
    %s593 = scalar_lea.vmem [#allocation1], 312
    %s594 = smov 3
    %v595 = vld [vmem:[%s593] ss:$2 sm:%s594]
    %vm596 = vcmask 523264
    %s597 = scalar_lea.vmem [#allocation0], 305
    %598 = vst.msk [vmem:[%s597] ss:$8 sm:$0x3] %vm596, %v595
    %s599 = scalar_lea.vmem [#allocation1], 320
    %s600 = smov 3
    %v601 = vld [vmem:[%s599] ss:$2 sm:%s600]
    %vm602 = vcmask 523264
    %s603 = scalar_lea.vmem [#allocation0], 320
    %604 = vst.msk [vmem:[%s603] ss:$8 sm:$0x3] %vm602, %v601
    %s605 = scalar_lea.vmem [#allocation1], 328
    %s606 = smov 3
    %v607 = vld [vmem:[%s605] ss:$2 sm:%s606]
    %vm608 = vcmask 523264
    %s609 = scalar_lea.vmem [#allocation0], 321
    %610 = vst.msk [vmem:[%s609] ss:$8 sm:$0x3] %vm608, %v607
    %s611 = scalar_lea.vmem [#allocation1], 336
    %s612 = smov 3
    %v613 = vld [vmem:[%s611] ss:$2 sm:%s612]
    %vm614 = vcmask 523264
    %s615 = scalar_lea.vmem [#allocation0], 336
    %616 = vst.msk [vmem:[%s615] ss:$8 sm:$0x3] %vm614, %v613
    %s617 = scalar_lea.vmem [#allocation1], 344
    %s618 = smov 3
    %v619 = vld [vmem:[%s617] ss:$2 sm:%s618]
    %vm620 = vcmask 523264
    %s621 = scalar_lea.vmem [#allocation0], 337
    %622 = vst.msk [vmem:[%s621] ss:$8 sm:$0x3] %vm620, %v619
    %s623 = scalar_lea.vmem [#allocation1], 352
    %s624 = smov 3
    %v625 = vld [vmem:[%s623] ss:$2 sm:%s624]
    %vm626 = vcmask 523264
    %s627 = scalar_lea.vmem [#allocation0], 352
    %628 = vst.msk [vmem:[%s627] ss:$8 sm:$0x3] %vm626, %v625
    %s629 = scalar_lea.vmem [#allocation1], 360
    %s630 = smov 3
    %v631 = vld [vmem:[%s629] ss:$2 sm:%s630]
    %vm632 = vcmask 523264
    %s633 = scalar_lea.vmem [#allocation0], 353
    %634 = vst.msk [vmem:[%s633] ss:$8 sm:$0x3] %vm632, %v631
    %s635 = scalar_lea.vmem [#allocation1], 368
    %s636 = smov 3
    %v637 = vld [vmem:[%s635] ss:$2 sm:%s636]
    %vm638 = vcmask 523264
    %s639 = scalar_lea.vmem [#allocation0], 368
    %640 = vst.msk [vmem:[%s639] ss:$8 sm:$0x3] %vm638, %v637
    %s641 = scalar_lea.vmem [#allocation1], 376
    %s642 = smov 3
    %v643 = vld [vmem:[%s641] ss:$2 sm:%s642]
    %vm644 = vcmask 523264
    %s645 = scalar_lea.vmem [#allocation0], 369
    %646 = vst.msk [vmem:[%s645] ss:$8 sm:$0x3] %vm644, %v643
    %s647 = scalar_lea.vmem [#allocation1], 384
    %s648 = smov 3
    %v649 = vld [vmem:[%s647] ss:$2 sm:%s648]
    %vm650 = vcmask 523264
    %s651 = scalar_lea.vmem [#allocation0], 384
    %652 = vst.msk [vmem:[%s651] ss:$8 sm:$0x3] %vm650, %v649
    %s653 = scalar_lea.vmem [#allocation1], 392
    %s654 = smov 3
    %v655 = vld [vmem:[%s653] ss:$2 sm:%s654]
    %vm656 = vcmask 523264
    %s657 = scalar_lea.vmem [#allocation0], 385
    %658 = vst.msk [vmem:[%s657] ss:$8 sm:$0x3] %vm656, %v655
    %s659 = scalar_lea.vmem [#allocation1], 400
    %s660 = smov 3
    %v661 = vld [vmem:[%s659] ss:$2 sm:%s660]
    %vm662 = vcmask 523264
    %s663 = scalar_lea.vmem [#allocation0], 400
    %664 = vst.msk [vmem:[%s663] ss:$8 sm:$0x3] %vm662, %v661
    %s665 = scalar_lea.vmem [#allocation1], 408
    %s666 = smov 3
    %v667 = vld [vmem:[%s665] ss:$2 sm:%s666]
    %vm668 = vcmask 523264
    %s669 = scalar_lea.vmem [#allocation0], 401
    %670 = vst.msk [vmem:[%s669] ss:$8 sm:$0x3] %vm668, %v667
    %s671 = scalar_lea.vmem [#allocation1], 416
    %s672 = smov 3
    %v673 = vld [vmem:[%s671] ss:$2 sm:%s672]
    %vm674 = vcmask 523264
    %s675 = scalar_lea.vmem [#allocation0], 416
    %676 = vst.msk [vmem:[%s675] ss:$8 sm:$0x3] %vm674, %v673
    %s677 = scalar_lea.vmem [#allocation1], 424
    %s678 = smov 3
    %v679 = vld [vmem:[%s677] ss:$2 sm:%s678]
    %vm680 = vcmask 523264
    %s681 = scalar_lea.vmem [#allocation0], 417
    %682 = vst.msk [vmem:[%s681] ss:$8 sm:$0x3] %vm680, %v679
    %s683 = scalar_lea.vmem [#allocation1], 432
    %s684 = smov 3
    %v685 = vld [vmem:[%s683] ss:$2 sm:%s684]
    %vm686 = vcmask 523264
    %s687 = scalar_lea.vmem [#allocation0], 432
    %688 = vst.msk [vmem:[%s687] ss:$8 sm:$0x3] %vm686, %v685
    %s689 = scalar_lea.vmem [#allocation1], 440
    %s690 = smov 3
    %v691 = vld [vmem:[%s689] ss:$2 sm:%s690]
    %vm692 = vcmask 523264
    %s693 = scalar_lea.vmem [#allocation0], 433
    %694 = vst.msk [vmem:[%s693] ss:$8 sm:$0x3] %vm692, %v691
    %s695 = scalar_lea.vmem [#allocation1], 448
    %s696 = smov 3
    %v697 = vld [vmem:[%s695] ss:$2 sm:%s696]
    %vm698 = vcmask 523264
    %s699 = scalar_lea.vmem [#allocation0], 448
    %700 = vst.msk [vmem:[%s699] ss:$8 sm:$0x3] %vm698, %v697
    %s701 = scalar_lea.vmem [#allocation1], 456
    %s702 = smov 3
    %v703 = vld [vmem:[%s701] ss:$2 sm:%s702]
    %vm704 = vcmask 523264
    %s705 = scalar_lea.vmem [#allocation0], 449
    %706 = vst.msk [vmem:[%s705] ss:$8 sm:$0x3] %vm704, %v703
    %s707 = scalar_lea.vmem [#allocation1], 464
    %s708 = smov 3
    %v709 = vld [vmem:[%s707] ss:$2 sm:%s708]
    %vm710 = vcmask 523264
    %s711 = scalar_lea.vmem [#allocation0], 464
    %712 = vst.msk [vmem:[%s711] ss:$8 sm:$0x3] %vm710, %v709
    %s713 = scalar_lea.vmem [#allocation1], 472
    %s714 = smov 3
    %v715 = vld [vmem:[%s713] ss:$2 sm:%s714]
    %vm716 = vcmask 523264
    %s717 = scalar_lea.vmem [#allocation0], 465
    %718 = vst.msk [vmem:[%s717] ss:$8 sm:$0x3] %vm716, %v715
    %s719 = scalar_lea.vmem [#allocation1], 480
    %s720 = smov 3
    %v721 = vld [vmem:[%s719] ss:$2 sm:%s720]
    %vm722 = vcmask 523264
    %s723 = scalar_lea.vmem [#allocation0], 480
    %724 = vst.msk [vmem:[%s723] ss:$8 sm:$0x3] %vm722, %v721
    %s725 = scalar_lea.vmem [#allocation1], 488
    %s726 = smov 3
    %v727 = vld [vmem:[%s725] ss:$2 sm:%s726]
    %vm728 = vcmask 523264
    %s729 = scalar_lea.vmem [#allocation0], 481
    %730 = vst.msk [vmem:[%s729] ss:$8 sm:$0x3] %vm728, %v727
    %s731 = scalar_lea.vmem [#allocation1], 496
    %s732 = smov 3
    %v733 = vld [vmem:[%s731] ss:$2 sm:%s732]
    %vm734 = vcmask 523264
    %s735 = scalar_lea.vmem [#allocation0], 496
    %736 = vst.msk [vmem:[%s735] ss:$8 sm:$0x3] %vm734, %v733
    %s737 = scalar_lea.vmem [#allocation1], 504
    %s738 = smov 3
    %v739 = vld [vmem:[%s737] ss:$2 sm:%s738]
    %vm740 = vcmask 523264
    %s741 = scalar_lea.vmem [#allocation0], 497
    %742 = vst.msk [vmem:[%s741] ss:$8 sm:$0x3] %vm740, %v739
    %s743 = scalar_lea.vmem [#allocation1], 512
    %s744 = smov 3
    %v745 = vld [vmem:[%s743] ss:$2 sm:%s744]
    %vm746 = vcmask 523264
    %s747 = scalar_lea.vmem [#allocation0], 512
    %748 = vst.msk [vmem:[%s747] ss:$8 sm:$0x3] %vm746, %v745
    %s749 = scalar_lea.vmem [#allocation1], 520
    %s750 = smov 3
    %v751 = vld [vmem:[%s749] ss:$2 sm:%s750]
    %vm752 = vcmask 523264
    %s753 = scalar_lea.vmem [#allocation0], 513
    %754 = vst.msk [vmem:[%s753] ss:$8 sm:$0x3] %vm752, %v751
    %s755 = scalar_lea.vmem [#allocation1], 528
    %s756 = smov 3
    %v757 = vld [vmem:[%s755] ss:$2 sm:%s756]
    %vm758 = vcmask 523264
    %s759 = scalar_lea.vmem [#allocation0], 528
    %760 = vst.msk [vmem:[%s759] ss:$8 sm:$0x3] %vm758, %v757
    %s761 = scalar_lea.vmem [#allocation1], 536
    %s762 = smov 3
    %v763 = vld [vmem:[%s761] ss:$2 sm:%s762]
    %vm764 = vcmask 523264
    %s765 = scalar_lea.vmem [#allocation0], 529
    %766 = vst.msk [vmem:[%s765] ss:$8 sm:$0x3] %vm764, %v763
    %s767 = scalar_lea.vmem [#allocation1], 544
    %s768 = smov 3
    %v769 = vld [vmem:[%s767] ss:$2 sm:%s768]
    %vm770 = vcmask 523264
    %s771 = scalar_lea.vmem [#allocation0], 544
    %772 = vst.msk [vmem:[%s771] ss:$8 sm:$0x3] %vm770, %v769
    %s773 = scalar_lea.vmem [#allocation1], 552
    %s774 = smov 3
    %v775 = vld [vmem:[%s773] ss:$2 sm:%s774]
    %vm776 = vcmask 523264
    %s777 = scalar_lea.vmem [#allocation0], 545
    %778 = vst.msk [vmem:[%s777] ss:$8 sm:$0x3] %vm776, %v775
    %s779 = scalar_lea.vmem [#allocation1], 560
    %s780 = smov 3
    %v781 = vld [vmem:[%s779] ss:$2 sm:%s780]
    %vm782 = vcmask 523264
    %s783 = scalar_lea.vmem [#allocation0], 560
    %784 = vst.msk [vmem:[%s783] ss:$8 sm:$0x3] %vm782, %v781
    %s785 = scalar_lea.vmem [#allocation1], 568
    %s786 = smov 3
    %v787 = vld [vmem:[%s785] ss:$2 sm:%s786]
    %vm788 = vcmask 523264
    %s789 = scalar_lea.vmem [#allocation0], 561
    %790 = vst.msk [vmem:[%s789] ss:$8 sm:$0x3] %vm788, %v787
    %s791 = scalar_lea.vmem [#allocation1], 1
    %v792 = vld.sshfl [vmem:[%s791] sm:$0xff pattern:$0xaaaaa280]
    %s793 = scalar_lea.vmem [#allocation1], 17
    %v794 = vld.sshfl [vmem:[%s793] sm:$0xff pattern:$0xa2800000]
    %vm795 = vcmask 1047556
    %v796 = vsel %vm795, %v794, %v792
    %797 = vrot.lane.b32.xlu0 %v796, 64
    %v798 = vpop.permute.xlu0 %797
    %vm799 = vcmask 1048064
    %800 = vst.msk [vmem:[#allocation0] sm:$0x3] %vm799, %v798
    %s801 = scalar_lea.vmem [#allocation0], 6
    %802 = vst.msk [vmem:[%s801] sm:$0xc] %vm799, %v798
    %s803 = scalar_lea.vmem [#allocation0], 12
    %804 = vst.msk [vmem:[%s803] sm:$0x30] %vm799, %v798
    %s805 = scalar_lea.vmem [#allocation0], 18
    %806 = vst.msk [vmem:[%s805] sm:$0xc0] %vm799, %v798
    %s807 = scalar_lea.vmem [#allocation1], 33
    %v808 = vld.sshfl [vmem:[%s807] sm:$0xff pattern:$0xaaaaa280]
    %s809 = scalar_lea.vmem [#allocation1], 49
    %v810 = vld.sshfl [vmem:[%s809] sm:$0xff pattern:$0xa2800000]
    %vm811 = vcmask 1047556
    %v812 = vsel %vm811, %v810, %v808
    %813 = vrot.lane.b32.xlu0 %v812, 64
    %v814 = vpop.permute.xlu0 %813
    %vm815 = vcmask 1048064
    %s816 = scalar_lea.vmem [#allocation0], 32
    %817 = vst.msk [vmem:[%s816] sm:$0x3] %vm815, %v814
    %s818 = scalar_lea.vmem [#allocation0], 38
    %819 = vst.msk [vmem:[%s818] sm:$0xc] %vm815, %v814
    %s820 = scalar_lea.vmem [#allocation0], 44
    %821 = vst.msk [vmem:[%s820] sm:$0x30] %vm815, %v814
    %s822 = scalar_lea.vmem [#allocation0], 50
    %823 = vst.msk [vmem:[%s822] sm:$0xc0] %vm815, %v814
    %s824 = scalar_lea.vmem [#allocation1], 65
    %v825 = vld.sshfl [vmem:[%s824] sm:$0xff pattern:$0xaaaaa280]
    %s826 = scalar_lea.vmem [#allocation1], 81
    %v827 = vld.sshfl [vmem:[%s826] sm:$0xff pattern:$0xa2800000]
    %vm828 = vcmask 1047556
    %v829 = vsel %vm828, %v827, %v825
    %830 = vrot.lane.b32.xlu0 %v829, 64
    %v831 = vpop.permute.xlu0 %830
    %vm832 = vcmask 1048064
    %s833 = scalar_lea.vmem [#allocation0], 64
    %834 = vst.msk [vmem:[%s833] sm:$0x3] %vm832, %v831
    %s835 = scalar_lea.vmem [#allocation0], 70
    %836 = vst.msk [vmem:[%s835] sm:$0xc] %vm832, %v831
    %s837 = scalar_lea.vmem [#allocation0], 76
    %838 = vst.msk [vmem:[%s837] sm:$0x30] %vm832, %v831
    %s839 = scalar_lea.vmem [#allocation0], 82
    %840 = vst.msk [vmem:[%s839] sm:$0xc0] %vm832, %v831
    %s841 = scalar_lea.vmem [#allocation1], 97
    %v842 = vld.sshfl [vmem:[%s841] sm:$0xff pattern:$0xaaaaa280]
    %s843 = scalar_lea.vmem [#allocation1], 113
    %v844 = vld.sshfl [vmem:[%s843] sm:$0xff pattern:$0xa2800000]
    %vm845 = vcmask 1047556
    %v846 = vsel %vm845, %v844, %v842
    %847 = vrot.lane.b32.xlu0 %v846, 64
    %v848 = vpop.permute.xlu0 %847
    %vm849 = vcmask 1048064
    %s850 = scalar_lea.vmem [#allocation0], 96
    %851 = vst.msk [vmem:[%s850] sm:$0x3] %vm849, %v848
    %s852 = scalar_lea.vmem [#allocation0], 102
    %853 = vst.msk [vmem:[%s852] sm:$0xc] %vm849, %v848
    %s854 = scalar_lea.vmem [#allocation0], 108
    %855 = vst.msk [vmem:[%s854] sm:$0x30] %vm849, %v848
    %s856 = scalar_lea.vmem [#allocation0], 114
    %857 = vst.msk [vmem:[%s856] sm:$0xc0] %vm849, %v848
    %s858 = scalar_lea.vmem [#allocation1], 129
    %v859 = vld.sshfl [vmem:[%s858] sm:$0xff pattern:$0xaaaaa280]
    %s860 = scalar_lea.vmem [#allocation1], 145
    %v861 = vld.sshfl [vmem:[%s860] sm:$0xff pattern:$0xa2800000]
    %vm862 = vcmask 1047556
    %v863 = vsel %vm862, %v861, %v859
    %864 = vrot.lane.b32.xlu0 %v863, 64
    %v865 = vpop.permute.xlu0 %864
    %vm866 = vcmask 1048064
    %s867 = scalar_lea.vmem [#allocation0], 128
    %868 = vst.msk [vmem:[%s867] sm:$0x3] %vm866, %v865
    %s869 = scalar_lea.vmem [#allocation0], 134
    %870 = vst.msk [vmem:[%s869] sm:$0xc] %vm866, %v865
    %s871 = scalar_lea.vmem [#allocation0], 140
    %872 = vst.msk [vmem:[%s871] sm:$0x30] %vm866, %v865
    %s873 = scalar_lea.vmem [#allocation0], 146
    %874 = vst.msk [vmem:[%s873] sm:$0xc0] %vm866, %v865
    %s875 = scalar_lea.vmem [#allocation1], 161
    %v876 = vld.sshfl [vmem:[%s875] sm:$0xff pattern:$0xaaaaa280]
    %s877 = scalar_lea.vmem [#allocation1], 177
    %v878 = vld.sshfl [vmem:[%s877] sm:$0xff pattern:$0xa2800000]
    %vm879 = vcmask 1047556
    %v880 = vsel %vm879, %v878, %v876
    %881 = vrot.lane.b32.xlu0 %v880, 64
    %v882 = vpop.permute.xlu0 %881
    %vm883 = vcmask 1048064
    %s884 = scalar_lea.vmem [#allocation0], 160
    %885 = vst.msk [vmem:[%s884] sm:$0x3] %vm883, %v882
    %s886 = scalar_lea.vmem [#allocation0], 166
    %887 = vst.msk [vmem:[%s886] sm:$0xc] %vm883, %v882
    %s888 = scalar_lea.vmem [#allocation0], 172
    %889 = vst.msk [vmem:[%s888] sm:$0x30] %vm883, %v882
    %s890 = scalar_lea.vmem [#allocation0], 178
    %891 = vst.msk [vmem:[%s890] sm:$0xc0] %vm883, %v882
    %s892 = scalar_lea.vmem [#allocation1], 193
    %v893 = vld.sshfl [vmem:[%s892] sm:$0xff pattern:$0xaaaaa280]
    %s894 = scalar_lea.vmem [#allocation1], 209
    %v895 = vld.sshfl [vmem:[%s894] sm:$0xff pattern:$0xa2800000]
    %vm896 = vcmask 1047556
    %v897 = vsel %vm896, %v895, %v893
    %898 = vrot.lane.b32.xlu0 %v897, 64
    %v899 = vpop.permute.xlu0 %898
    %vm900 = vcmask 1048064
    %s901 = scalar_lea.vmem [#allocation0], 192
    %902 = vst.msk [vmem:[%s901] sm:$0x3] %vm900, %v899
    %s903 = scalar_lea.vmem [#allocation0], 198
    %904 = vst.msk [vmem:[%s903] sm:$0xc] %vm900, %v899
    %s905 = scalar_lea.vmem [#allocation0], 204
    %906 = vst.msk [vmem:[%s905] sm:$0x30] %vm900, %v899
    %s907 = scalar_lea.vmem [#allocation0], 210
    %908 = vst.msk [vmem:[%s907] sm:$0xc0] %vm900, %v899
    %s909 = scalar_lea.vmem [#allocation1], 225
    %v910 = vld.sshfl [vmem:[%s909] sm:$0xff pattern:$0xaaaaa280]
    %s911 = scalar_lea.vmem [#allocation1], 241
    %v912 = vld.sshfl [vmem:[%s911] sm:$0xff pattern:$0xa2800000]
    %vm913 = vcmask 1047556
    %v914 = vsel %vm913, %v912, %v910
    %915 = vrot.lane.b32.xlu0 %v914, 64
    %v916 = vpop.permute.xlu0 %915
    %vm917 = vcmask 1048064
    %s918 = scalar_lea.vmem [#allocation0], 224
    %919 = vst.msk [vmem:[%s918] sm:$0x3] %vm917, %v916
    %s920 = scalar_lea.vmem [#allocation0], 230
    %921 = vst.msk [vmem:[%s920] sm:$0xc] %vm917, %v916
    %s922 = scalar_lea.vmem [#allocation0], 236
    %923 = vst.msk [vmem:[%s922] sm:$0x30] %vm917, %v916
    %s924 = scalar_lea.vmem [#allocation0], 242
    %925 = vst.msk [vmem:[%s924] sm:$0xc0] %vm917, %v916
    %s926 = scalar_lea.vmem [#allocation1], 257
    %v927 = vld.sshfl [vmem:[%s926] sm:$0xff pattern:$0xaaaaa280]
    %s928 = scalar_lea.vmem [#allocation1], 273
    %v929 = vld.sshfl [vmem:[%s928] sm:$0xff pattern:$0xa2800000]
    %vm930 = vcmask 1047556
    %v931 = vsel %vm930, %v929, %v927
    %932 = vrot.lane.b32.xlu0 %v931, 64
    %v933 = vpop.permute.xlu0 %932
    %vm934 = vcmask 1048064
    %s935 = scalar_lea.vmem [#allocation0], 256
    %936 = vst.msk [vmem:[%s935] sm:$0x3] %vm934, %v933
    %s937 = scalar_lea.vmem [#allocation0], 262
    %938 = vst.msk [vmem:[%s937] sm:$0xc] %vm934, %v933
    %s939 = scalar_lea.vmem [#allocation0], 268
    %940 = vst.msk [vmem:[%s939] sm:$0x30] %vm934, %v933
    %s941 = scalar_lea.vmem [#allocation0], 274
    %942 = vst.msk [vmem:[%s941] sm:$0xc0] %vm934, %v933
    %s943 = scalar_lea.vmem [#allocation1], 289
    %v944 = vld.sshfl [vmem:[%s943] sm:$0xff pattern:$0xaaaaa280]
    %s945 = scalar_lea.vmem [#allocation1], 305
    %v946 = vld.sshfl [vmem:[%s945] sm:$0xff pattern:$0xa2800000]
    %vm947 = vcmask 1047556
    %v948 = vsel %vm947, %v946, %v944
    %949 = vrot.lane.b32.xlu0 %v948, 64
    %v950 = vpop.permute.xlu0 %949
    %vm951 = vcmask 1048064
    %s952 = scalar_lea.vmem [#allocation0], 288
    %953 = vst.msk [vmem:[%s952] sm:$0x3] %vm951, %v950
    %s954 = scalar_lea.vmem [#allocation0], 294
    %955 = vst.msk [vmem:[%s954] sm:$0xc] %vm951, %v950
    %s956 = scalar_lea.vmem [#allocation0], 300
    %957 = vst.msk [vmem:[%s956] sm:$0x30] %vm951, %v950
    %s958 = scalar_lea.vmem [#allocation0], 306
    %959 = vst.msk [vmem:[%s958] sm:$0xc0] %vm951, %v950
    %s960 = scalar_lea.vmem [#allocation1], 321
    %v961 = vld.sshfl [vmem:[%s960] sm:$0xff pattern:$0xaaaaa280]
    %s962 = scalar_lea.vmem [#allocation1], 337
    %v963 = vld.sshfl [vmem:[%s962] sm:$0xff pattern:$0xa2800000]
    %vm964 = vcmask 1047556
    %v965 = vsel %vm964, %v963, %v961
    %966 = vrot.lane.b32.xlu0 %v965, 64
    %v967 = vpop.permute.xlu0 %966
    %vm968 = vcmask 1048064
    %s969 = scalar_lea.vmem [#allocation0], 320
    %970 = vst.msk [vmem:[%s969] sm:$0x3] %vm968, %v967
    %s971 = scalar_lea.vmem [#allocation0], 326
    %972 = vst.msk [vmem:[%s971] sm:$0xc] %vm968, %v967
    %s973 = scalar_lea.vmem [#allocation0], 332
    %974 = vst.msk [vmem:[%s973] sm:$0x30] %vm968, %v967
    %s975 = scalar_lea.vmem [#allocation0], 338
    %976 = vst.msk [vmem:[%s975] sm:$0xc0] %vm968, %v967
    %s977 = scalar_lea.vmem [#allocation1], 353
    %v978 = vld.sshfl [vmem:[%s977] sm:$0xff pattern:$0xaaaaa280]
    %s979 = scalar_lea.vmem [#allocation1], 369
    %v980 = vld.sshfl [vmem:[%s979] sm:$0xff pattern:$0xa2800000]
    %vm981 = vcmask 1047556
    %v982 = vsel %vm981, %v980, %v978
    %983 = vrot.lane.b32.xlu0 %v982, 64
    %v984 = vpop.permute.xlu0 %983
    %vm985 = vcmask 1048064
    %s986 = scalar_lea.vmem [#allocation0], 352
    %987 = vst.msk [vmem:[%s986] sm:$0x3] %vm985, %v984
    %s988 = scalar_lea.vmem [#allocation0], 358
    %989 = vst.msk [vmem:[%s988] sm:$0xc] %vm985, %v984
    %s990 = scalar_lea.vmem [#allocation0], 364
    %991 = vst.msk [vmem:[%s990] sm:$0x30] %vm985, %v984
    %s992 = scalar_lea.vmem [#allocation0], 370
    %993 = vst.msk [vmem:[%s992] sm:$0xc0] %vm985, %v984
    %s994 = scalar_lea.vmem [#allocation1], 385
    %v995 = vld.sshfl [vmem:[%s994] sm:$0xff pattern:$0xaaaaa280]
    %s996 = scalar_lea.vmem [#allocation1], 401
    %v997 = vld.sshfl [vmem:[%s996] sm:$0xff pattern:$0xa2800000]
    %vm998 = vcmask 1047556
    %v999 = vsel %vm998, %v997, %v995
    %1000 = vrot.lane.b32.xlu0 %v999, 64
    %v1001 = vpop.permute.xlu0 %1000
    %vm1002 = vcmask 1048064
    %s1003 = scalar_lea.vmem [#allocation0], 384
    %1004 = vst.msk [vmem:[%s1003] sm:$0x3] %vm1002, %v1001
    %s1005 = scalar_lea.vmem [#allocation0], 390
    %1006 = vst.msk [vmem:[%s1005] sm:$0xc] %vm1002, %v1001
    %s1007 = scalar_lea.vmem [#allocation0], 396
    %1008 = vst.msk [vmem:[%s1007] sm:$0x30] %vm1002, %v1001
    %s1009 = scalar_lea.vmem [#allocation0], 402
    %1010 = vst.msk [vmem:[%s1009] sm:$0xc0] %vm1002, %v1001
    %s1011 = scalar_lea.vmem [#allocation1], 417
    %v1012 = vld.sshfl [vmem:[%s1011] sm:$0xff pattern:$0xaaaaa280]
    %s1013 = scalar_lea.vmem [#allocation1], 433
    %v1014 = vld.sshfl [vmem:[%s1013] sm:$0xff pattern:$0xa2800000]
    %vm1015 = vcmask 1047556
    %v1016 = vsel %vm1015, %v1014, %v1012
    %1017 = vrot.lane.b32.xlu0 %v1016, 64
    %v1018 = vpop.permute.xlu0 %1017
    %vm1019 = vcmask 1048064
    %s1020 = scalar_lea.vmem [#allocation0], 416
    %1021 = vst.msk [vmem:[%s1020] sm:$0x3] %vm1019, %v1018
    %s1022 = scalar_lea.vmem [#allocation0], 422
    %1023 = vst.msk [vmem:[%s1022] sm:$0xc] %vm1019, %v1018
    %s1024 = scalar_lea.vmem [#allocation0], 428
    %1025 = vst.msk [vmem:[%s1024] sm:$0x30] %vm1019, %v1018
    %s1026 = scalar_lea.vmem [#allocation0], 434
    %1027 = vst.msk [vmem:[%s1026] sm:$0xc0] %vm1019, %v1018
    %s1028 = scalar_lea.vmem [#allocation1], 449
    %v1029 = vld.sshfl [vmem:[%s1028] sm:$0xff pattern:$0xaaaaa280]
    %s1030 = scalar_lea.vmem [#allocation1], 465
    %v1031 = vld.sshfl [vmem:[%s1030] sm:$0xff pattern:$0xa2800000]
    %vm1032 = vcmask 1047556
    %v1033 = vsel %vm1032, %v1031, %v1029
    %1034 = vrot.lane.b32.xlu0 %v1033, 64
    %v1035 = vpop.permute.xlu0 %1034
    %vm1036 = vcmask 1048064
    %s1037 = scalar_lea.vmem [#allocation0], 448
    %1038 = vst.msk [vmem:[%s1037] sm:$0x3] %vm1036, %v1035
    %s1039 = scalar_lea.vmem [#allocation0], 454
    %1040 = vst.msk [vmem:[%s1039] sm:$0xc] %vm1036, %v1035
    %s1041 = scalar_lea.vmem [#allocation0], 460
    %1042 = vst.msk [vmem:[%s1041] sm:$0x30] %vm1036, %v1035
    %s1043 = scalar_lea.vmem [#allocation0], 466
    %1044 = vst.msk [vmem:[%s1043] sm:$0xc0] %vm1036, %v1035
    %s1045 = scalar_lea.vmem [#allocation1], 481
    %v1046 = vld.sshfl [vmem:[%s1045] sm:$0xff pattern:$0xaaaaa280]
    %s1047 = scalar_lea.vmem [#allocation1], 497
    %v1048 = vld.sshfl [vmem:[%s1047] sm:$0xff pattern:$0xa2800000]
    %vm1049 = vcmask 1047556
    %v1050 = vsel %vm1049, %v1048, %v1046
    %1051 = vrot.lane.b32.xlu0 %v1050, 64
    %v1052 = vpop.permute.xlu0 %1051
    %vm1053 = vcmask 1048064
    %s1054 = scalar_lea.vmem [#allocation0], 480
    %1055 = vst.msk [vmem:[%s1054] sm:$0x3] %vm1053, %v1052
    %s1056 = scalar_lea.vmem [#allocation0], 486
    %1057 = vst.msk [vmem:[%s1056] sm:$0xc] %vm1053, %v1052
    %s1058 = scalar_lea.vmem [#allocation0], 492
    %1059 = vst.msk [vmem:[%s1058] sm:$0x30] %vm1053, %v1052
    %s1060 = scalar_lea.vmem [#allocation0], 498
    %1061 = vst.msk [vmem:[%s1060] sm:$0xc0] %vm1053, %v1052
    %s1062 = scalar_lea.vmem [#allocation1], 513
    %v1063 = vld.sshfl [vmem:[%s1062] sm:$0xff pattern:$0xaaaaa280]
    %s1064 = scalar_lea.vmem [#allocation1], 529
    %v1065 = vld.sshfl [vmem:[%s1064] sm:$0xff pattern:$0xa2800000]
    %vm1066 = vcmask 1047556
    %v1067 = vsel %vm1066, %v1065, %v1063
    %1068 = vrot.lane.b32.xlu0 %v1067, 64
    %v1069 = vpop.permute.xlu0 %1068
    %vm1070 = vcmask 1048064
    %s1071 = scalar_lea.vmem [#allocation0], 512
    %1072 = vst.msk [vmem:[%s1071] sm:$0x3] %vm1070, %v1069
    %s1073 = scalar_lea.vmem [#allocation0], 518
    %1074 = vst.msk [vmem:[%s1073] sm:$0xc] %vm1070, %v1069
    %s1075 = scalar_lea.vmem [#allocation0], 524
    %1076 = vst.msk [vmem:[%s1075] sm:$0x30] %vm1070, %v1069
    %s1077 = scalar_lea.vmem [#allocation0], 530
    %1078 = vst.msk [vmem:[%s1077] sm:$0xc0] %vm1070, %v1069
    %s1079 = scalar_lea.vmem [#allocation1], 545
    %v1080 = vld.sshfl [vmem:[%s1079] sm:$0xff pattern:$0xaaaaa280]
    %s1081 = scalar_lea.vmem [#allocation1], 561
    %v1082 = vld.sshfl [vmem:[%s1081] sm:$0xff pattern:$0xa2800000]
    %vm1083 = vcmask 1047556
    %v1084 = vsel %vm1083, %v1082, %v1080
    %1085 = vrot.lane.b32.xlu0 %v1084, 64
    %v1086 = vpop.permute.xlu0 %1085
    %vm1087 = vcmask 1048064
    %s1088 = scalar_lea.vmem [#allocation0], 544
    %1089 = vst.msk [vmem:[%s1088] sm:$0x3] %vm1087, %v1086
    %s1090 = scalar_lea.vmem [#allocation0], 550
    %1091 = vst.msk [vmem:[%s1090] sm:$0xc] %vm1087, %v1086
    %s1092 = scalar_lea.vmem [#allocation0], 556
    %1093 = vst.msk [vmem:[%s1092] sm:$0x30] %vm1087, %v1086
    %s1094 = scalar_lea.vmem [#allocation0], 562
    %1095 = vst.msk [vmem:[%s1094] sm:$0xc0] %vm1087, %v1086
    %s1097 = sshll.u32 1, 2
    %s1098 = ssub.s32 %s1097, 1
    %v1100 = vld [vmem:[#allocation0] sm:%s1098]
    %s1101 = sshll.u32 1, 2
    %s1102 = ssub.s32 %s1101, 1
    %1103 = vst [vmem:[%s1] sm:%s1102] %v1100
    %s1104 = scalar_lea.vmem [#allocation0], 8
    %v1105 = vld [vmem:[%s1104] sm:%s1098]
    %s1106 = sshll.u32 1, 2
    %s1107 = ssub.s32 %s1106, 1
    %s1108 = scalar_lea.vmem %s1, 2
    %1109 = vst [vmem:[%s1108] sm:%s1107] %v1105
    %s1110 = scalar_lea.vmem [#allocation0], 16
    %v1111 = vld [vmem:[%s1110] sm:%s1098]
    %s1112 = sshll.u32 1, 2
    %s1113 = ssub.s32 %s1112, 1
    %s1114 = smul.addr 2, 2
    %s1115 = scalar_lea.vmem %s1, %s1114
    %1116 = vst [vmem:[%s1115] sm:%s1113] %v1111
    %s1117 = scalar_lea.vmem [#allocation0], 24
    %v1118 = vld [vmem:[%s1117] sm:%s1098]
    %s1119 = sshll.u32 1, 2
    %s1120 = ssub.s32 %s1119, 1
    %s1121 = smul.addr 2, 3
    %s1122 = scalar_lea.vmem %s1, %s1121
    %1123 = vst [vmem:[%s1122] sm:%s1120] %v1118
    %s1124 = scalar_lea.vmem [#allocation0], 32
    %v1125 = vld [vmem:[%s1124] sm:%s1098]
    %s1126 = sshll.u32 1, 2
    %s1127 = ssub.s32 %s1126, 1
    %s1128 = smul.addr 2, 4
    %s1129 = scalar_lea.vmem %s1, %s1128
    %1130 = vst [vmem:[%s1129] sm:%s1127] %v1125
    %s1131 = scalar_lea.vmem [#allocation0], 40
    %v1132 = vld [vmem:[%s1131] sm:%s1098]
    %s1133 = sshll.u32 1, 2
    %s1134 = ssub.s32 %s1133, 1
    %s1135 = smul.addr 2, 5
    %s1136 = scalar_lea.vmem %s1, %s1135
    %1137 = vst [vmem:[%s1136] sm:%s1134] %v1132
    %s1138 = scalar_lea.vmem [#allocation0], 48
    %v1139 = vld [vmem:[%s1138] sm:%s1098]
    %s1140 = sshll.u32 1, 2
    %s1141 = ssub.s32 %s1140, 1
    %s1142 = smul.addr 2, 6
    %s1143 = scalar_lea.vmem %s1, %s1142
    %1144 = vst [vmem:[%s1143] sm:%s1141] %v1139
    %s1145 = scalar_lea.vmem [#allocation0], 56
    %v1146 = vld [vmem:[%s1145] sm:%s1098]
    %s1147 = sshll.u32 1, 2
    %s1148 = ssub.s32 %s1147, 1
    %s1149 = smul.addr 2, 7
    %s1150 = scalar_lea.vmem %s1, %s1149
    %1151 = vst [vmem:[%s1150] sm:%s1148] %v1146
    %s1152 = scalar_lea.vmem [#allocation0], 64
    %v1153 = vld [vmem:[%s1152] sm:%s1098]
    %s1154 = sshll.u32 1, 2
    %s1155 = ssub.s32 %s1154, 1
    %s1156 = smul.addr 2, 8
    %s1157 = scalar_lea.vmem %s1, %s1156
    %1158 = vst [vmem:[%s1157] sm:%s1155] %v1153
    %s1159 = scalar_lea.vmem [#allocation0], 72
    %v1160 = vld [vmem:[%s1159] sm:%s1098]
    %s1161 = sshll.u32 1, 2
    %s1162 = ssub.s32 %s1161, 1
    %s1163 = smul.addr 2, 9
    %s1164 = scalar_lea.vmem %s1, %s1163
    %1165 = vst [vmem:[%s1164] sm:%s1162] %v1160
    %s1166 = scalar_lea.vmem [#allocation0], 80
    %v1167 = vld [vmem:[%s1166] sm:%s1098]
    %s1168 = sshll.u32 1, 2
    %s1169 = ssub.s32 %s1168, 1
    %s1170 = smul.addr 2, 10
    %s1171 = scalar_lea.vmem %s1, %s1170
    %1172 = vst [vmem:[%s1171] sm:%s1169] %v1167
    %s1173 = scalar_lea.vmem [#allocation0], 88
    %v1174 = vld [vmem:[%s1173] sm:%s1098]
    %s1175 = sshll.u32 1, 2
    %s1176 = ssub.s32 %s1175, 1
    %s1177 = smul.addr 2, 11
    %s1178 = scalar_lea.vmem %s1, %s1177
    %1179 = vst [vmem:[%s1178] sm:%s1176] %v1174
    %s1180 = scalar_lea.vmem [#allocation0], 96
    %v1181 = vld [vmem:[%s1180] sm:%s1098]
    %s1182 = sshll.u32 1, 2
    %s1183 = ssub.s32 %s1182, 1
    %s1184 = smul.addr 2, 12
    %s1185 = scalar_lea.vmem %s1, %s1184
    %1186 = vst [vmem:[%s1185] sm:%s1183] %v1181
    %s1187 = scalar_lea.vmem [#allocation0], 104
    %v1188 = vld [vmem:[%s1187] sm:%s1098]
    %s1189 = sshll.u32 1, 2
    %s1190 = ssub.s32 %s1189, 1
    %s1191 = smul.addr 2, 13
    %s1192 = scalar_lea.vmem %s1, %s1191
    %1193 = vst [vmem:[%s1192] sm:%s1190] %v1188
    %s1194 = scalar_lea.vmem [#allocation0], 112
    %v1195 = vld [vmem:[%s1194] sm:%s1098]
    %s1196 = sshll.u32 1, 2
    %s1197 = ssub.s32 %s1196, 1
    %s1198 = smul.addr 2, 14
    %s1199 = scalar_lea.vmem %s1, %s1198
    %1200 = vst [vmem:[%s1199] sm:%s1197] %v1195
    %s1201 = scalar_lea.vmem [#allocation0], 120
    %v1202 = vld [vmem:[%s1201] sm:%s1098]
    %s1203 = sshll.u32 1, 2
    %s1204 = ssub.s32 %s1203, 1
    %s1205 = smul.addr 2, 15
    %s1206 = scalar_lea.vmem %s1, %s1205
    %1207 = vst [vmem:[%s1206] sm:%s1204] %v1202
    %s1208 = scalar_lea.vmem [#allocation0], 128
    %v1209 = vld [vmem:[%s1208] sm:%s1098]
    %s1210 = sshll.u32 1, 2
    %s1211 = ssub.s32 %s1210, 1
    %s1212 = smul.addr 2, 16
    %s1213 = scalar_lea.vmem %s1, %s1212
    %1214 = vst [vmem:[%s1213] sm:%s1211] %v1209
    %s1215 = scalar_lea.vmem [#allocation0], 136
    %v1216 = vld [vmem:[%s1215] sm:%s1098]
    %s1217 = sshll.u32 1, 2
    %s1218 = ssub.s32 %s1217, 1
    %s1219 = smul.addr 2, 17
    %s1220 = scalar_lea.vmem %s1, %s1219
    %1221 = vst [vmem:[%s1220] sm:%s1218] %v1216
    %s1222 = scalar_lea.vmem [#allocation0], 144
    %v1223 = vld [vmem:[%s1222] sm:%s1098]
    %s1224 = sshll.u32 1, 2
    %s1225 = ssub.s32 %s1224, 1
    %s1226 = smul.addr 2, 18
    %s1227 = scalar_lea.vmem %s1, %s1226
    %1228 = vst [vmem:[%s1227] sm:%s1225] %v1223
    %s1229 = scalar_lea.vmem [#allocation0], 152
    %v1230 = vld [vmem:[%s1229] sm:%s1098]
    %s1231 = sshll.u32 1, 2
    %s1232 = ssub.s32 %s1231, 1
    %s1233 = smul.addr 2, 19
    %s1234 = scalar_lea.vmem %s1, %s1233
    %1235 = vst [vmem:[%s1234] sm:%s1232] %v1230
    %s1236 = scalar_lea.vmem [#allocation0], 160
    %v1237 = vld [vmem:[%s1236] sm:%s1098]
    %s1238 = sshll.u32 1, 2
    %s1239 = ssub.s32 %s1238, 1
    %s1240 = smul.addr 2, 20
    %s1241 = scalar_lea.vmem %s1, %s1240
    %1242 = vst [vmem:[%s1241] sm:%s1239] %v1237
    %s1243 = scalar_lea.vmem [#allocation0], 168
    %v1244 = vld [vmem:[%s1243] sm:%s1098]
    %s1245 = sshll.u32 1, 2
    %s1246 = ssub.s32 %s1245, 1
    %s1247 = smul.addr 2, 21
    %s1248 = scalar_lea.vmem %s1, %s1247
    %1249 = vst [vmem:[%s1248] sm:%s1246] %v1244
    %s1250 = scalar_lea.vmem [#allocation0], 176
    %v1251 = vld [vmem:[%s1250] sm:%s1098]
    %s1252 = sshll.u32 1, 2
    %s1253 = ssub.s32 %s1252, 1
    %s1254 = smul.addr 2, 22
    %s1255 = scalar_lea.vmem %s1, %s1254
    %1256 = vst [vmem:[%s1255] sm:%s1253] %v1251
    %s1257 = scalar_lea.vmem [#allocation0], 184
    %v1258 = vld [vmem:[%s1257] sm:%s1098]
    %s1259 = sshll.u32 1, 2
    %s1260 = ssub.s32 %s1259, 1
    %s1261 = smul.addr 2, 23
    %s1262 = scalar_lea.vmem %s1, %s1261
    %1263 = vst [vmem:[%s1262] sm:%s1260] %v1258
    %s1264 = scalar_lea.vmem [#allocation0], 192
    %v1265 = vld [vmem:[%s1264] sm:%s1098]
    %s1266 = sshll.u32 1, 2
    %s1267 = ssub.s32 %s1266, 1
    %s1268 = smul.addr 2, 24
    %s1269 = scalar_lea.vmem %s1, %s1268
    %1270 = vst [vmem:[%s1269] sm:%s1267] %v1265
    %s1271 = scalar_lea.vmem [#allocation0], 200
    %v1272 = vld [vmem:[%s1271] sm:%s1098]
    %s1273 = sshll.u32 1, 2
    %s1274 = ssub.s32 %s1273, 1
    %s1275 = smul.addr 2, 25
    %s1276 = scalar_lea.vmem %s1, %s1275
    %1277 = vst [vmem:[%s1276] sm:%s1274] %v1272
    %s1278 = scalar_lea.vmem [#allocation0], 208
    %v1279 = vld [vmem:[%s1278] sm:%s1098]
    %s1280 = sshll.u32 1, 2
    %s1281 = ssub.s32 %s1280, 1
    %s1282 = smul.addr 2, 26
    %s1283 = scalar_lea.vmem %s1, %s1282
    %1284 = vst [vmem:[%s1283] sm:%s1281] %v1279
    %s1285 = scalar_lea.vmem [#allocation0], 216
    %v1286 = vld [vmem:[%s1285] sm:%s1098]
    %s1287 = sshll.u32 1, 2
    %s1288 = ssub.s32 %s1287, 1
    %s1289 = smul.addr 2, 27
    %s1290 = scalar_lea.vmem %s1, %s1289
    %1291 = vst [vmem:[%s1290] sm:%s1288] %v1286
    %s1292 = scalar_lea.vmem [#allocation0], 224
    %v1293 = vld [vmem:[%s1292] sm:%s1098]
    %s1294 = sshll.u32 1, 2
    %s1295 = ssub.s32 %s1294, 1
    %s1296 = smul.addr 2, 28
    %s1297 = scalar_lea.vmem %s1, %s1296
    %1298 = vst [vmem:[%s1297] sm:%s1295] %v1293
    %s1299 = scalar_lea.vmem [#allocation0], 232
    %v1300 = vld [vmem:[%s1299] sm:%s1098]
    %s1301 = sshll.u32 1, 2
    %s1302 = ssub.s32 %s1301, 1
    %s1303 = smul.addr 2, 29
    %s1304 = scalar_lea.vmem %s1, %s1303
    %1305 = vst [vmem:[%s1304] sm:%s1302] %v1300
    %s1306 = scalar_lea.vmem [#allocation0], 240
    %v1307 = vld [vmem:[%s1306] sm:%s1098]
    %s1308 = sshll.u32 1, 2
    %s1309 = ssub.s32 %s1308, 1
    %s1310 = smul.addr 2, 30
    %s1311 = scalar_lea.vmem %s1, %s1310
    %1312 = vst [vmem:[%s1311] sm:%s1309] %v1307
    %s1313 = scalar_lea.vmem [#allocation0], 248
    %v1314 = vld [vmem:[%s1313] sm:%s1098]
    %s1315 = sshll.u32 1, 2
    %s1316 = ssub.s32 %s1315, 1
    %s1317 = smul.addr 2, 31
    %s1318 = scalar_lea.vmem %s1, %s1317
    %1319 = vst [vmem:[%s1318] sm:%s1316] %v1314
    %s1320 = scalar_lea.vmem [#allocation0], 256
    %v1321 = vld [vmem:[%s1320] sm:%s1098]
    %s1322 = sshll.u32 1, 2
    %s1323 = ssub.s32 %s1322, 1
    %s1324 = smul.addr 2, 32
    %s1325 = scalar_lea.vmem %s1, %s1324
    %1326 = vst [vmem:[%s1325] sm:%s1323] %v1321
    %s1327 = scalar_lea.vmem [#allocation0], 264
    %v1328 = vld [vmem:[%s1327] sm:%s1098]
    %s1329 = sshll.u32 1, 2
    %s1330 = ssub.s32 %s1329, 1
    %s1331 = smul.addr 2, 33
    %s1332 = scalar_lea.vmem %s1, %s1331
    %1333 = vst [vmem:[%s1332] sm:%s1330] %v1328
    %s1334 = scalar_lea.vmem [#allocation0], 272
    %v1335 = vld [vmem:[%s1334] sm:%s1098]
    %s1336 = sshll.u32 1, 2
    %s1337 = ssub.s32 %s1336, 1
    %s1338 = smul.addr 2, 34
    %s1339 = scalar_lea.vmem %s1, %s1338
    %1340 = vst [vmem:[%s1339] sm:%s1337] %v1335
    %s1341 = scalar_lea.vmem [#allocation0], 280
    %v1342 = vld [vmem:[%s1341] sm:%s1098]
    %s1343 = sshll.u32 1, 2
    %s1344 = ssub.s32 %s1343, 1
    %s1345 = smul.addr 2, 35
    %s1346 = scalar_lea.vmem %s1, %s1345
    %1347 = vst [vmem:[%s1346] sm:%s1344] %v1342
    %s1348 = scalar_lea.vmem [#allocation0], 288
    %v1349 = vld [vmem:[%s1348] sm:%s1098]
    %s1350 = sshll.u32 1, 2
    %s1351 = ssub.s32 %s1350, 1
    %s1352 = smul.addr 2, 36
    %s1353 = scalar_lea.vmem %s1, %s1352
    %1354 = vst [vmem:[%s1353] sm:%s1351] %v1349
    %s1355 = scalar_lea.vmem [#allocation0], 296
    %v1356 = vld [vmem:[%s1355] sm:%s1098]
    %s1357 = sshll.u32 1, 2
    %s1358 = ssub.s32 %s1357, 1
    %s1359 = smul.addr 2, 37
    %s1360 = scalar_lea.vmem %s1, %s1359
    %1361 = vst [vmem:[%s1360] sm:%s1358] %v1356
    %s1362 = scalar_lea.vmem [#allocation0], 304
    %v1363 = vld [vmem:[%s1362] sm:%s1098]
    %s1364 = sshll.u32 1, 2
    %s1365 = ssub.s32 %s1364, 1
    %s1366 = smul.addr 2, 38
    %s1367 = scalar_lea.vmem %s1, %s1366
    %1368 = vst [vmem:[%s1367] sm:%s1365] %v1363
    %s1369 = scalar_lea.vmem [#allocation0], 312
    %v1370 = vld [vmem:[%s1369] sm:%s1098]
    %s1371 = sshll.u32 1, 2
    %s1372 = ssub.s32 %s1371, 1
    %s1373 = smul.addr 2, 39
    %s1374 = scalar_lea.vmem %s1, %s1373
    %1375 = vst [vmem:[%s1374] sm:%s1372] %v1370
    %s1376 = scalar_lea.vmem [#allocation0], 320
    %v1377 = vld [vmem:[%s1376] sm:%s1098]
    %s1378 = sshll.u32 1, 2
    %s1379 = ssub.s32 %s1378, 1
    %s1380 = smul.addr 2, 40
    %s1381 = scalar_lea.vmem %s1, %s1380
    %1382 = vst [vmem:[%s1381] sm:%s1379] %v1377
    %s1383 = scalar_lea.vmem [#allocation0], 328
    %v1384 = vld [vmem:[%s1383] sm:%s1098]
    %s1385 = sshll.u32 1, 2
    %s1386 = ssub.s32 %s1385, 1
    %s1387 = smul.addr 2, 41
    %s1388 = scalar_lea.vmem %s1, %s1387
    %1389 = vst [vmem:[%s1388] sm:%s1386] %v1384
    %s1390 = scalar_lea.vmem [#allocation0], 336
    %v1391 = vld [vmem:[%s1390] sm:%s1098]
    %s1392 = sshll.u32 1, 2
    %s1393 = ssub.s32 %s1392, 1
    %s1394 = smul.addr 2, 42
    %s1395 = scalar_lea.vmem %s1, %s1394
    %1396 = vst [vmem:[%s1395] sm:%s1393] %v1391
    %s1397 = scalar_lea.vmem [#allocation0], 344
    %v1398 = vld [vmem:[%s1397] sm:%s1098]
    %s1399 = sshll.u32 1, 2
    %s1400 = ssub.s32 %s1399, 1
    %s1401 = smul.addr 2, 43
    %s1402 = scalar_lea.vmem %s1, %s1401
    %1403 = vst [vmem:[%s1402] sm:%s1400] %v1398
    %s1404 = scalar_lea.vmem [#allocation0], 352
    %v1405 = vld [vmem:[%s1404] sm:%s1098]
    %s1406 = sshll.u32 1, 2
    %s1407 = ssub.s32 %s1406, 1
    %s1408 = smul.addr 2, 44
    %s1409 = scalar_lea.vmem %s1, %s1408
    %1410 = vst [vmem:[%s1409] sm:%s1407] %v1405
    %s1411 = scalar_lea.vmem [#allocation0], 360
    %v1412 = vld [vmem:[%s1411] sm:%s1098]
    %s1413 = sshll.u32 1, 2
    %s1414 = ssub.s32 %s1413, 1
    %s1415 = smul.addr 2, 45
    %s1416 = scalar_lea.vmem %s1, %s1415
    %1417 = vst [vmem:[%s1416] sm:%s1414] %v1412
    %s1418 = scalar_lea.vmem [#allocation0], 368
    %v1419 = vld [vmem:[%s1418] sm:%s1098]
    %s1420 = sshll.u32 1, 2
    %s1421 = ssub.s32 %s1420, 1
    %s1422 = smul.addr 2, 46
    %s1423 = scalar_lea.vmem %s1, %s1422
    %1424 = vst [vmem:[%s1423] sm:%s1421] %v1419
    %s1425 = scalar_lea.vmem [#allocation0], 376
    %v1426 = vld [vmem:[%s1425] sm:%s1098]
    %s1427 = sshll.u32 1, 2
    %s1428 = ssub.s32 %s1427, 1
    %s1429 = smul.addr 2, 47
    %s1430 = scalar_lea.vmem %s1, %s1429
    %1431 = vst [vmem:[%s1430] sm:%s1428] %v1426
    %s1432 = scalar_lea.vmem [#allocation0], 384
    %v1433 = vld [vmem:[%s1432] sm:%s1098]
    %s1434 = sshll.u32 1, 2
    %s1435 = ssub.s32 %s1434, 1
    %s1436 = smul.addr 2, 48
    %s1437 = scalar_lea.vmem %s1, %s1436
    %1438 = vst [vmem:[%s1437] sm:%s1435] %v1433
    %s1439 = scalar_lea.vmem [#allocation0], 392
    %v1440 = vld [vmem:[%s1439] sm:%s1098]
    %s1441 = sshll.u32 1, 2
    %s1442 = ssub.s32 %s1441, 1
    %s1443 = smul.addr 2, 49
    %s1444 = scalar_lea.vmem %s1, %s1443
    %1445 = vst [vmem:[%s1444] sm:%s1442] %v1440
    %s1446 = scalar_lea.vmem [#allocation0], 400
    %v1447 = vld [vmem:[%s1446] sm:%s1098]
    %s1448 = sshll.u32 1, 2
    %s1449 = ssub.s32 %s1448, 1
    %s1450 = smul.addr 2, 50
    %s1451 = scalar_lea.vmem %s1, %s1450
    %1452 = vst [vmem:[%s1451] sm:%s1449] %v1447
    %s1453 = scalar_lea.vmem [#allocation0], 408
    %v1454 = vld [vmem:[%s1453] sm:%s1098]
    %s1455 = sshll.u32 1, 2
    %s1456 = ssub.s32 %s1455, 1
    %s1457 = smul.addr 2, 51
    %s1458 = scalar_lea.vmem %s1, %s1457
    %1459 = vst [vmem:[%s1458] sm:%s1456] %v1454
    %s1460 = scalar_lea.vmem [#allocation0], 416
    %v1461 = vld [vmem:[%s1460] sm:%s1098]
    %s1462 = sshll.u32 1, 2
    %s1463 = ssub.s32 %s1462, 1
    %s1464 = smul.addr 2, 52
    %s1465 = scalar_lea.vmem %s1, %s1464
    %1466 = vst [vmem:[%s1465] sm:%s1463] %v1461
    %s1467 = scalar_lea.vmem [#allocation0], 424
    %v1468 = vld [vmem:[%s1467] sm:%s1098]
    %s1469 = sshll.u32 1, 2
    %s1470 = ssub.s32 %s1469, 1
    %s1471 = smul.addr 2, 53
    %s1472 = scalar_lea.vmem %s1, %s1471
    %1473 = vst [vmem:[%s1472] sm:%s1470] %v1468
    %s1474 = scalar_lea.vmem [#allocation0], 432
    %v1475 = vld [vmem:[%s1474] sm:%s1098]
    %s1476 = sshll.u32 1, 2
    %s1477 = ssub.s32 %s1476, 1
    %s1478 = smul.addr 2, 54
    %s1479 = scalar_lea.vmem %s1, %s1478
    %1480 = vst [vmem:[%s1479] sm:%s1477] %v1475
    %s1481 = scalar_lea.vmem [#allocation0], 440
    %v1482 = vld [vmem:[%s1481] sm:%s1098]
    %s1483 = sshll.u32 1, 2
    %s1484 = ssub.s32 %s1483, 1
    %s1485 = smul.addr 2, 55
    %s1486 = scalar_lea.vmem %s1, %s1485
    %1487 = vst [vmem:[%s1486] sm:%s1484] %v1482
    %s1488 = scalar_lea.vmem [#allocation0], 448
    %v1489 = vld [vmem:[%s1488] sm:%s1098]
    %s1490 = sshll.u32 1, 2
    %s1491 = ssub.s32 %s1490, 1
    %s1492 = smul.addr 2, 56
    %s1493 = scalar_lea.vmem %s1, %s1492
    %1494 = vst [vmem:[%s1493] sm:%s1491] %v1489
    %s1495 = scalar_lea.vmem [#allocation0], 456
    %v1496 = vld [vmem:[%s1495] sm:%s1098]
    %s1497 = sshll.u32 1, 2
    %s1498 = ssub.s32 %s1497, 1
    %s1499 = smul.addr 2, 57
    %s1500 = scalar_lea.vmem %s1, %s1499
    %1501 = vst [vmem:[%s1500] sm:%s1498] %v1496
    %s1502 = scalar_lea.vmem [#allocation0], 464
    %v1503 = vld [vmem:[%s1502] sm:%s1098]
    %s1504 = sshll.u32 1, 2
    %s1505 = ssub.s32 %s1504, 1
    %s1506 = smul.addr 2, 58
    %s1507 = scalar_lea.vmem %s1, %s1506
    %1508 = vst [vmem:[%s1507] sm:%s1505] %v1503
    %s1509 = scalar_lea.vmem [#allocation0], 472
    %v1510 = vld [vmem:[%s1509] sm:%s1098]
    %s1511 = sshll.u32 1, 2
    %s1512 = ssub.s32 %s1511, 1
    %s1513 = smul.addr 2, 59
    %s1514 = scalar_lea.vmem %s1, %s1513
    %1515 = vst [vmem:[%s1514] sm:%s1512] %v1510
    %s1516 = scalar_lea.vmem [#allocation0], 480
    %v1517 = vld [vmem:[%s1516] sm:%s1098]
    %s1518 = sshll.u32 1, 2
    %s1519 = ssub.s32 %s1518, 1
    %s1520 = smul.addr 2, 60
    %s1521 = scalar_lea.vmem %s1, %s1520
    %1522 = vst [vmem:[%s1521] sm:%s1519] %v1517
    %s1523 = scalar_lea.vmem [#allocation0], 488
    %v1524 = vld [vmem:[%s1523] sm:%s1098]
    %s1525 = sshll.u32 1, 2
    %s1526 = ssub.s32 %s1525, 1
    %s1527 = smul.addr 2, 61
    %s1528 = scalar_lea.vmem %s1, %s1527
    %1529 = vst [vmem:[%s1528] sm:%s1526] %v1524
    %s1530 = scalar_lea.vmem [#allocation0], 496
    %v1531 = vld [vmem:[%s1530] sm:%s1098]
    %s1532 = sshll.u32 1, 2
    %s1533 = ssub.s32 %s1532, 1
    %s1534 = smul.addr 2, 62
    %s1535 = scalar_lea.vmem %s1, %s1534
    %1536 = vst [vmem:[%s1535] sm:%s1533] %v1531
    %s1537 = scalar_lea.vmem [#allocation0], 504
    %v1538 = vld [vmem:[%s1537] sm:%s1098]
    %s1539 = sshll.u32 1, 2
    %s1540 = ssub.s32 %s1539, 1
    %s1541 = smul.addr 2, 63
    %s1542 = scalar_lea.vmem %s1, %s1541
    %1543 = vst [vmem:[%s1542] sm:%s1540] %v1538
    %s1544 = scalar_lea.vmem [#allocation0], 512
    %v1545 = vld [vmem:[%s1544] sm:%s1098]
    %s1546 = sshll.u32 1, 2
    %s1547 = ssub.s32 %s1546, 1
    %s1548 = smul.addr 2, 64
    %s1549 = scalar_lea.vmem %s1, %s1548
    %1550 = vst [vmem:[%s1549] sm:%s1547] %v1545
    %s1551 = scalar_lea.vmem [#allocation0], 520
    %v1552 = vld [vmem:[%s1551] sm:%s1098]
    %s1553 = sshll.u32 1, 2
    %s1554 = ssub.s32 %s1553, 1
    %s1555 = smul.addr 2, 65
    %s1556 = scalar_lea.vmem %s1, %s1555
    %1557 = vst [vmem:[%s1556] sm:%s1554] %v1552
    %s1558 = scalar_lea.vmem [#allocation0], 528
    %v1559 = vld [vmem:[%s1558] sm:%s1098]
    %s1560 = sshll.u32 1, 2
    %s1561 = ssub.s32 %s1560, 1
    %s1562 = smul.addr 2, 66
    %s1563 = scalar_lea.vmem %s1, %s1562
    %1564 = vst [vmem:[%s1563] sm:%s1561] %v1559
    %s1565 = scalar_lea.vmem [#allocation0], 536
    %v1566 = vld [vmem:[%s1565] sm:%s1098]
    %s1567 = sshll.u32 1, 2
    %s1568 = ssub.s32 %s1567, 1
    %s1569 = smul.addr 2, 67
    %s1570 = scalar_lea.vmem %s1, %s1569
    %1571 = vst [vmem:[%s1570] sm:%s1568] %v1566
    %s1572 = scalar_lea.vmem [#allocation0], 544
    %v1573 = vld [vmem:[%s1572] sm:%s1098]
    %s1574 = sshll.u32 1, 2
    %s1575 = ssub.s32 %s1574, 1
    %s1576 = smul.addr 2, 68
    %s1577 = scalar_lea.vmem %s1, %s1576
    %1578 = vst [vmem:[%s1577] sm:%s1575] %v1573
    %s1579 = scalar_lea.vmem [#allocation0], 552
    %v1580 = vld [vmem:[%s1579] sm:%s1098]
    %s1581 = sshll.u32 1, 2
    %s1582 = ssub.s32 %s1581, 1
    %s1583 = smul.addr 2, 69
    %s1584 = scalar_lea.vmem %s1, %s1583
    %1585 = vst [vmem:[%s1584] sm:%s1582] %v1580
    %s1586 = scalar_lea.vmem [#allocation0], 560
    %v1587 = vld [vmem:[%s1586] sm:%s1098]
    %s1588 = sshll.u32 1, 2
    %s1589 = ssub.s32 %s1588, 1
    %s1590 = smul.addr 2, 70
    %s1591 = scalar_lea.vmem %s1, %s1590
    %1592 = vst [vmem:[%s1591] sm:%s1589] %v1587
    %s1593 = scalar_lea.vmem [#allocation0], 568
    %v1594 = vld [vmem:[%s1593] sm:%s1098]
    %s1595 = sshll.u32 1, 2
    %s1596 = ssub.s32 %s1595, 1
    %s1597 = smul.addr 2, 71
    %s1598 = scalar_lea.vmem %s1, %s1597
    %1599 = vst [vmem:[%s1598] sm:%s1596] %v1594

// kernel: net_forward.1
$region0: #{net_forward.1}
  #allocation0 [shape = 'u32[]', space=smem, size = 0x4, offset = 0x4, fixed_abs, tag = 'smem constant byte address 0x4 - core index']
  #allocation1 [shape = 'u32[144,128]{1,0:T(1,128)}', space=vmem, size = 0x12000, scoped, tag = 'internal scratch']
  %s0 = inlined_call_operand.vmem [shape: f32[36,2,256], index: 0, kind: input, shape index: {}]
  %s1 = inlined_call_operand.vmem [shape: f32[9,1,256], index: 1, kind: input, shape index: {}]
  %s2 = inlined_call_operand.vmem [shape: f32[1,256], index: 2, kind: input, shape index: {}]
  %s3 = inlined_call_operand.vmem [shape: f32[1,256], index: 3, kind: input, shape index: {}]
  %s4 = inlined_call_operand.vmem [shape: f32[1,256], index: 4, kind: input, shape index: {}]
  %s5 = inlined_call_operand.vmem [shape: bf16[256,32], index: 5, kind: input, shape index: {}]
  %s6 = inlined_call_operand.vmem [shape: f32[1,32], index: 6, kind: input, shape index: {}]
  %s7 = inlined_call_operand.vmem [shape: bf16[32,32], index: 7, kind: input, shape index: {}]
  %s8 = inlined_call_operand.vmem [shape: f32[1,32], index: 8, kind: input, shape index: {}]
  %s9 = inlined_call_operand.hbm [shape: f32[2,32], index: 9, kind: output, shape index: {}]
  %s10 = sld [smem:[#allocation0]]
  $region46: #{net_forward.1} parent=0
    _
  %s12 = ssub.s32 1, %s10
  %s13 = scalar_select 0, %s12, %s10
  $region1: #{net_forward.1} parent=0
    #allocation2 [shape = 'u8[1024]{0}', space=vmem, size = 0x400, scoped, tag = 'output window, operand 0, single buffered']
    #allocation3 [shape = 's32[1]{0}', space=sflag, size = 0x4, scoped, tag = 'scoped memory for net_forward.1']
    %14 = vsyncpa [#allocation3], 0
    // Predicated region
    $region2: #{net_forward.1} parent=1 // pred_check
      _
    $region3: #{net_forward.1} parent=1 // pred_check_branch
      %16 = sbr.rel (0) target = $region5
    $region4: #{net_forward.1} parent=1 // pred_region
      _
    $region5: #{net_forward.1} parent=1 // pred_fallthru
      _
    // Predicated region
    $region6: #{net_forward.1} parent=1 // pred_check
      _
    $region7: #{net_forward.1} parent=1 // pred_check_branch
      %18 = sbr.rel (0) target = $region9
    $region8: #{net_forward.1} parent=1 // pred_region
      _
    $region9: #{net_forward.1} parent=1 // pred_fallthru
      _
    // Predicated region
    $region10: #{net_forward.1} parent=1 // pred_check
      _
    $region11: #{net_forward.1} parent=1 // pred_check_branch
      %20 = sbr.rel (0) target = $region13
    $region12: #{net_forward.1} parent=1 // pred_region
      _
    $region13: #{net_forward.1} parent=1 // pred_fallthru
      _
    // Predicated region
    $region14: #{net_forward.1} parent=1 // pred_check
      _
    $region15: #{net_forward.1} parent=1 // pred_check_branch
      %22 = sbr.rel (0) target = $region17
    $region16: #{net_forward.1} parent=1 // pred_region
      _
    $region17: #{net_forward.1} parent=1 // pred_fallthru
      _
    // Predicated region
    $region18: #{net_forward.1} parent=1 // pred_check
      _
    $region19: #{net_forward.1} parent=1 // pred_check_branch
      %24 = sbr.rel (0) target = $region21
    $region20: #{net_forward.1} parent=1 // pred_region
      _
    $region21: #{net_forward.1} parent=1 // pred_fallthru
      _
    // Predicated region
    $region22: #{net_forward.1} parent=1 // pred_check
      _
    $region23: #{net_forward.1} parent=1 // pred_check_branch
      %26 = sbr.rel (0) target = $region25
    $region24: #{net_forward.1} parent=1 // pred_region
      _
    $region25: #{net_forward.1} parent=1 // pred_fallthru
      _
    // Predicated region
    $region26: #{net_forward.1} parent=1 // pred_check
      _
    $region27: #{net_forward.1} parent=1 // pred_check_branch
      %28 = sbr.rel (0) target = $region29
    $region28: #{net_forward.1} parent=1 // pred_region
      _
    $region29: #{net_forward.1} parent=1 // pred_fallthru
      _
    // Predicated region
    $region30: #{net_forward.1} parent=1 // pred_check
      _
    $region31: #{net_forward.1} parent=1 // pred_check_branch
      %30 = sbr.rel (0) target = $region33
    $region32: #{net_forward.1} parent=1 // pred_region
      _
    $region33: #{net_forward.1} parent=1 // pred_fallthru
      _
    // Predicated region
    $region34: #{net_forward.1} parent=1 // pred_check
      _
    $region35: #{net_forward.1} parent=1 // pred_check_branch
      %32 = sbr.rel (0) target = $region37
    $region36: #{net_forward.1} parent=1 // pred_region
      _
    $region37: #{net_forward.1} parent=1 // pred_fallthru
      _
    %v34 = vld [vmem:[%s1] sm:$0x3]
    %v35 = vld [vmem:[%s0] sm:$0xf]
    %v37 = vlaneseq
    %v38 = vshrl.u32 %v37, 7
    %v39 = vsub.s32 0, %v38
    %v40 = vrot.slane %v34, %v39
    %v41 = vlaneseq
    %v42 = vshrl.u32 %v41, 7
    %v43 = vsub.s32 1, %v42
    %v44 = vrot.slane %v34, %v43
    %v49 = vunpack.c.l.s4 1983009808
    %v50 = vunpack.c.0.s8 %v49
    %v51 = vlaneseq
    %v52 = vshrl.u32 %v51, 7
    %v53 = vsub.s32 %v50, %v52
    %v54 = vrot.slane %v35, %v53
    %v55 = vcombine.high %v54, %v54
    %v58 = vmul.f32 %v40, %v54
    %v59 = vmul.f32 %v44, %v55
    %s60 = scalar_lea.vmem %s1, 2
    %v61 = vld [vmem:[%s60] sm:$0x3]
    %s62 = scalar_lea.vmem %s0, 4
    %v63 = vld [vmem:[%s62] sm:$0xf]
    %v65 = vlaneseq
    %v66 = vshrl.u32 %v65, 7
    %v67 = vsub.s32 0, %v66
    %v68 = vrot.slane %v61, %v67
    %v69 = vlaneseq
    %v70 = vshrl.u32 %v69, 7
    %v71 = vsub.s32 1, %v70
    %v72 = vrot.slane %v61, %v71
    %v77 = vunpack.c.l.s4 1983009808
    %v78 = vunpack.c.0.s8 %v77
    %v79 = vlaneseq
    %v80 = vshrl.u32 %v79, 7
    %v81 = vsub.s32 %v78, %v80
    %v82 = vrot.slane %v63, %v81
    %v83 = vcombine.high %v82, %v82
    %v86 = vmul.f32 %v68, %v82
    %v87 = vmul.f32 %v72, %v83
    %v88 = vadd.f32 %v58, %v86
    %v89 = vadd.f32 %v59, %v87
    %s90 = scalar_lea.vmem %s1, 4
    %v91 = vld [vmem:[%s90] sm:$0x3]
    %s92 = scalar_lea.vmem %s0, 8
    %v93 = vld [vmem:[%s92] sm:$0xf]
    %v95 = vlaneseq
    %v96 = vshrl.u32 %v95, 7
    %v97 = vsub.s32 0, %v96
    %v98 = vrot.slane %v91, %v97
    %v99 = vlaneseq
    %v100 = vshrl.u32 %v99, 7
    %v101 = vsub.s32 1, %v100
    %v102 = vrot.slane %v91, %v101
    %v107 = vunpack.c.l.s4 1983009808
    %v108 = vunpack.c.0.s8 %v107
    %v109 = vlaneseq
    %v110 = vshrl.u32 %v109, 7
    %v111 = vsub.s32 %v108, %v110
    %v112 = vrot.slane %v93, %v111
    %v113 = vcombine.high %v112, %v112
    %v116 = vmul.f32 %v98, %v112
    %v117 = vmul.f32 %v102, %v113
    %v118 = vadd.f32 %v88, %v116
    %v119 = vadd.f32 %v89, %v117
    %s120 = scalar_lea.vmem %s1, 6
    %v121 = vld [vmem:[%s120] sm:$0x3]
    %s122 = scalar_lea.vmem %s0, 12
    %v123 = vld [vmem:[%s122] sm:$0xf]
    %v125 = vlaneseq
    %v126 = vshrl.u32 %v125, 7
    %v127 = vsub.s32 0, %v126
    %v128 = vrot.slane %v121, %v127
    %v129 = vlaneseq
    %v130 = vshrl.u32 %v129, 7
    %v131 = vsub.s32 1, %v130
    %v132 = vrot.slane %v121, %v131
    %v137 = vunpack.c.l.s4 1983009808
    %v138 = vunpack.c.0.s8 %v137
    %v139 = vlaneseq
    %v140 = vshrl.u32 %v139, 7
    %v141 = vsub.s32 %v138, %v140
    %v142 = vrot.slane %v123, %v141
    %v143 = vcombine.high %v142, %v142
    %v146 = vmul.f32 %v128, %v142
    %v147 = vmul.f32 %v132, %v143
    %v148 = vadd.f32 %v118, %v146
    %v149 = vadd.f32 %v119, %v147
    %s150 = scalar_lea.vmem %s1, 8
    %v151 = vld [vmem:[%s150] sm:$0x3]
    %s152 = scalar_lea.vmem %s0, 16
    %v153 = vld [vmem:[%s152] sm:$0xf]
    %v155 = vlaneseq
    %v156 = vshrl.u32 %v155, 7
    %v157 = vsub.s32 0, %v156
    %v158 = vrot.slane %v151, %v157
    %v159 = vlaneseq
    %v160 = vshrl.u32 %v159, 7
    %v161 = vsub.s32 1, %v160
    %v162 = vrot.slane %v151, %v161
    %v167 = vunpack.c.l.s4 1983009808
    %v168 = vunpack.c.0.s8 %v167
    %v169 = vlaneseq
    %v170 = vshrl.u32 %v169, 7
    %v171 = vsub.s32 %v168, %v170
    %v172 = vrot.slane %v153, %v171
    %v173 = vcombine.high %v172, %v172
    %v176 = vmul.f32 %v158, %v172
    %v177 = vmul.f32 %v162, %v173
    %v178 = vadd.f32 %v148, %v176
    %v179 = vadd.f32 %v149, %v177
    %s180 = scalar_lea.vmem %s1, 10
    %v181 = vld [vmem:[%s180] sm:$0x3]
    %s182 = scalar_lea.vmem %s0, 20
    %v183 = vld [vmem:[%s182] sm:$0xf]
    %v185 = vlaneseq
    %v186 = vshrl.u32 %v185, 7
    %v187 = vsub.s32 0, %v186
    %v188 = vrot.slane %v181, %v187
    %v189 = vlaneseq
    %v190 = vshrl.u32 %v189, 7
    %v191 = vsub.s32 1, %v190
    %v192 = vrot.slane %v181, %v191
    %v197 = vunpack.c.l.s4 1983009808
    %v198 = vunpack.c.0.s8 %v197
    %v199 = vlaneseq
    %v200 = vshrl.u32 %v199, 7
    %v201 = vsub.s32 %v198, %v200
    %v202 = vrot.slane %v183, %v201
    %v203 = vcombine.high %v202, %v202
    %v206 = vmul.f32 %v188, %v202
    %v207 = vmul.f32 %v192, %v203
    %v208 = vadd.f32 %v178, %v206
    %v209 = vadd.f32 %v179, %v207
    %s210 = scalar_lea.vmem %s1, 12
    %v211 = vld [vmem:[%s210] sm:$0x3]
    %s212 = scalar_lea.vmem %s0, 24
    %v213 = vld [vmem:[%s212] sm:$0xf]
    %v215 = vlaneseq
    %v216 = vshrl.u32 %v215, 7
    %v217 = vsub.s32 0, %v216
    %v218 = vrot.slane %v211, %v217
    %v219 = vlaneseq
    %v220 = vshrl.u32 %v219, 7
    %v221 = vsub.s32 1, %v220
    %v222 = vrot.slane %v211, %v221
    %v227 = vunpack.c.l.s4 1983009808
    %v228 = vunpack.c.0.s8 %v227
    %v229 = vlaneseq
    %v230 = vshrl.u32 %v229, 7
    %v231 = vsub.s32 %v228, %v230
    %v232 = vrot.slane %v213, %v231
    %v233 = vcombine.high %v232, %v232
    %v236 = vmul.f32 %v218, %v232
    %v237 = vmul.f32 %v222, %v233
    %v238 = vadd.f32 %v208, %v236
    %v239 = vadd.f32 %v209, %v237
    %s240 = scalar_lea.vmem %s1, 14
    %v241 = vld [vmem:[%s240] sm:$0x3]
    %s242 = scalar_lea.vmem %s0, 28
    %v243 = vld [vmem:[%s242] sm:$0xf]
    %v245 = vlaneseq
    %v246 = vshrl.u32 %v245, 7
    %v247 = vsub.s32 0, %v246
    %v248 = vrot.slane %v241, %v247
    %v249 = vlaneseq
    %v250 = vshrl.u32 %v249, 7
    %v251 = vsub.s32 1, %v250
    %v252 = vrot.slane %v241, %v251
    %v257 = vunpack.c.l.s4 1983009808
    %v258 = vunpack.c.0.s8 %v257
    %v259 = vlaneseq
    %v260 = vshrl.u32 %v259, 7
    %v261 = vsub.s32 %v258, %v260
    %v262 = vrot.slane %v243, %v261
    %v263 = vcombine.high %v262, %v262
    %v266 = vmul.f32 %v248, %v262
    %v267 = vmul.f32 %v252, %v263
    %v268 = vadd.f32 %v238, %v266
    %v269 = vadd.f32 %v239, %v267
    %s270 = scalar_lea.vmem %s1, 16
    %v271 = vld [vmem:[%s270] sm:$0x3]
    %s272 = scalar_lea.vmem %s0, 32
    %v273 = vld [vmem:[%s272] sm:$0xf]
    %v275 = vlaneseq
    %v276 = vshrl.u32 %v275, 7
    %v277 = vsub.s32 0, %v276
    %v278 = vrot.slane %v271, %v277
    %v279 = vlaneseq
    %v280 = vshrl.u32 %v279, 7
    %v281 = vsub.s32 1, %v280
    %v282 = vrot.slane %v271, %v281
    %v287 = vunpack.c.l.s4 1983009808
    %v288 = vunpack.c.0.s8 %v287
    %v289 = vlaneseq
    %v290 = vshrl.u32 %v289, 7
    %v291 = vsub.s32 %v288, %v290
    %v292 = vrot.slane %v273, %v291
    %v293 = vcombine.high %v292, %v292
    %v296 = vmul.f32 %v278, %v292
    %v297 = vmul.f32 %v282, %v293
    %v298 = vadd.f32 %v268, %v296
    %v299 = vadd.f32 %v269, %v297
    %s300 = scalar_lea.vmem %s0, 36
    %v301 = vld [vmem:[%s300] sm:$0xf]
    %v304 = vunpack.c.l.s4 1983009808
    %v305 = vunpack.c.0.s8 %v304
    %v306 = vlaneseq
    %v307 = vshrl.u32 %v306, 7
    %v308 = vsub.s32 %v305, %v307
    %v309 = vrot.slane %v301, %v308
    %v310 = vcombine.high %v309, %v309
    %v313 = vmul.f32 %v40, %v309
    %v314 = vmul.f32 %v44, %v310
    %s315 = scalar_lea.vmem %s0, 40
    %v316 = vld [vmem:[%s315] sm:$0xf]
    %v319 = vunpack.c.l.s4 1983009808
    %v320 = vunpack.c.0.s8 %v319
    %v321 = vlaneseq
    %v322 = vshrl.u32 %v321, 7
    %v323 = vsub.s32 %v320, %v322
    %v324 = vrot.slane %v316, %v323
    %v325 = vcombine.high %v324, %v324
    %v328 = vmul.f32 %v68, %v324
    %v329 = vmul.f32 %v72, %v325
    %v330 = vadd.f32 %v313, %v328
    %v331 = vadd.f32 %v314, %v329
    %s332 = scalar_lea.vmem %s0, 44
    %v333 = vld [vmem:[%s332] sm:$0xf]
    %v336 = vunpack.c.l.s4 1983009808
    %v337 = vunpack.c.0.s8 %v336
    %v338 = vlaneseq
    %v339 = vshrl.u32 %v338, 7
    %v340 = vsub.s32 %v337, %v339
    %v341 = vrot.slane %v333, %v340
    %v342 = vcombine.high %v341, %v341
    %v345 = vmul.f32 %v98, %v341
    %v346 = vmul.f32 %v102, %v342
    %v347 = vadd.f32 %v330, %v345
    %v348 = vadd.f32 %v331, %v346
    %s349 = scalar_lea.vmem %s0, 48
    %v350 = vld [vmem:[%s349] sm:$0xf]
    %v353 = vunpack.c.l.s4 1983009808
    %v354 = vunpack.c.0.s8 %v353
    %v355 = vlaneseq
    %v356 = vshrl.u32 %v355, 7
    %v357 = vsub.s32 %v354, %v356
    %v358 = vrot.slane %v350, %v357
    %v359 = vcombine.high %v358, %v358
    %v362 = vmul.f32 %v128, %v358
    %v363 = vmul.f32 %v132, %v359
    %v364 = vadd.f32 %v347, %v362
    %v365 = vadd.f32 %v348, %v363
    %s366 = scalar_lea.vmem %s0, 52
    %v367 = vld [vmem:[%s366] sm:$0xf]
    %v370 = vunpack.c.l.s4 1983009808
    %v371 = vunpack.c.0.s8 %v370
    %v372 = vlaneseq
    %v373 = vshrl.u32 %v372, 7
    %v374 = vsub.s32 %v371, %v373
    %v375 = vrot.slane %v367, %v374
    %v376 = vcombine.high %v375, %v375
    %v379 = vmul.f32 %v158, %v375
    %v380 = vmul.f32 %v162, %v376
    %v381 = vadd.f32 %v364, %v379
    %v382 = vadd.f32 %v365, %v380
    %s383 = scalar_lea.vmem %s0, 56
    %v384 = vld [vmem:[%s383] sm:$0xf]
    %v387 = vunpack.c.l.s4 1983009808
    %v388 = vunpack.c.0.s8 %v387
    %v389 = vlaneseq
    %v390 = vshrl.u32 %v389, 7
    %v391 = vsub.s32 %v388, %v390
    %v392 = vrot.slane %v384, %v391
    %v393 = vcombine.high %v392, %v392
    %v396 = vmul.f32 %v188, %v392
    %v397 = vmul.f32 %v192, %v393
    %v398 = vadd.f32 %v381, %v396
    %v399 = vadd.f32 %v382, %v397
    %s400 = scalar_lea.vmem %s0, 60
    %v401 = vld [vmem:[%s400] sm:$0xf]
    %v404 = vunpack.c.l.s4 1983009808
    %v405 = vunpack.c.0.s8 %v404
    %v406 = vlaneseq
    %v407 = vshrl.u32 %v406, 7
    %v408 = vsub.s32 %v405, %v407
    %v409 = vrot.slane %v401, %v408
    %v410 = vcombine.high %v409, %v409
    %v413 = vmul.f32 %v218, %v409
    %v414 = vmul.f32 %v222, %v410
    %v415 = vadd.f32 %v398, %v413
    %v416 = vadd.f32 %v399, %v414
    %s417 = scalar_lea.vmem %s0, 64
    %v418 = vld [vmem:[%s417] sm:$0xf]
    %v421 = vunpack.c.l.s4 1983009808
    %v422 = vunpack.c.0.s8 %v421
    %v423 = vlaneseq
    %v424 = vshrl.u32 %v423, 7
    %v425 = vsub.s32 %v422, %v424
    %v426 = vrot.slane %v418, %v425
    %v427 = vcombine.high %v426, %v426
    %v430 = vmul.f32 %v248, %v426
    %v431 = vmul.f32 %v252, %v427
    %v432 = vadd.f32 %v415, %v430
    %v433 = vadd.f32 %v416, %v431
    %s434 = scalar_lea.vmem %s0, 68
    %v435 = vld [vmem:[%s434] sm:$0xf]
    %v438 = vunpack.c.l.s4 1983009808
    %v439 = vunpack.c.0.s8 %v438
    %v440 = vlaneseq
    %v441 = vshrl.u32 %v440, 7
    %v442 = vsub.s32 %v439, %v441
    %v443 = vrot.slane %v435, %v442
    %v444 = vcombine.high %v443, %v443
    %v447 = vmul.f32 %v278, %v443
    %v448 = vmul.f32 %v282, %v444
    %v449 = vadd.f32 %v432, %v447
    %v450 = vadd.f32 %v433, %v448
    %v451 = vmax.f32 %v298, %v449
    %v452 = vmax.f32 %v299, %v450
    %s453 = scalar_lea.vmem %s0, 72
    %v454 = vld [vmem:[%s453] sm:$0xf]
    %v457 = vunpack.c.l.s4 1983009808
    %v458 = vunpack.c.0.s8 %v457
    %v459 = vlaneseq
    %v460 = vshrl.u32 %v459, 7
    %v461 = vsub.s32 %v458, %v460
    %v462 = vrot.slane %v454, %v461
    %v463 = vcombine.high %v462, %v462
    %v466 = vmul.f32 %v40, %v462
    %v467 = vmul.f32 %v44, %v463
    %s468 = scalar_lea.vmem %s0, 76
    %v469 = vld [vmem:[%s468] sm:$0xf]
    %v472 = vunpack.c.l.s4 1983009808
    %v473 = vunpack.c.0.s8 %v472
    %v474 = vlaneseq
    %v475 = vshrl.u32 %v474, 7
    %v476 = vsub.s32 %v473, %v475
    %v477 = vrot.slane %v469, %v476
    %v478 = vcombine.high %v477, %v477
    %v481 = vmul.f32 %v68, %v477
    %v482 = vmul.f32 %v72, %v478
    %v483 = vadd.f32 %v466, %v481
    %v484 = vadd.f32 %v467, %v482
    %s485 = scalar_lea.vmem %s0, 80
    %v486 = vld [vmem:[%s485] sm:$0xf]
    %v489 = vunpack.c.l.s4 1983009808
    %v490 = vunpack.c.0.s8 %v489
    %v491 = vlaneseq
    %v492 = vshrl.u32 %v491, 7
    %v493 = vsub.s32 %v490, %v492
    %v494 = vrot.slane %v486, %v493
    %v495 = vcombine.high %v494, %v494
    %v498 = vmul.f32 %v98, %v494
    %v499 = vmul.f32 %v102, %v495
    %v500 = vadd.f32 %v483, %v498
    %v501 = vadd.f32 %v484, %v499
    %s502 = scalar_lea.vmem %s0, 84
    %v503 = vld [vmem:[%s502] sm:$0xf]
    %v506 = vunpack.c.l.s4 1983009808
    %v507 = vunpack.c.0.s8 %v506
    %v508 = vlaneseq
    %v509 = vshrl.u32 %v508, 7
    %v510 = vsub.s32 %v507, %v509
    %v511 = vrot.slane %v503, %v510
    %v512 = vcombine.high %v511, %v511
    %v515 = vmul.f32 %v128, %v511
    %v516 = vmul.f32 %v132, %v512
    %v517 = vadd.f32 %v500, %v515
    %v518 = vadd.f32 %v501, %v516
    %s519 = scalar_lea.vmem %s0, 88
    %v520 = vld [vmem:[%s519] sm:$0xf]
    %v523 = vunpack.c.l.s4 1983009808
    %v524 = vunpack.c.0.s8 %v523
    %v525 = vlaneseq
    %v526 = vshrl.u32 %v525, 7
    %v527 = vsub.s32 %v524, %v526
    %v528 = vrot.slane %v520, %v527
    %v529 = vcombine.high %v528, %v528
    %v532 = vmul.f32 %v158, %v528
    %v533 = vmul.f32 %v162, %v529
    %v534 = vadd.f32 %v517, %v532
    %v535 = vadd.f32 %v518, %v533
    %s536 = scalar_lea.vmem %s0, 92
    %v537 = vld [vmem:[%s536] sm:$0xf]
    %v540 = vunpack.c.l.s4 1983009808
    %v541 = vunpack.c.0.s8 %v540
    %v542 = vlaneseq
    %v543 = vshrl.u32 %v542, 7
    %v544 = vsub.s32 %v541, %v543
    %v545 = vrot.slane %v537, %v544
    %v546 = vcombine.high %v545, %v545
    %v549 = vmul.f32 %v188, %v545
    %v550 = vmul.f32 %v192, %v546
    %v551 = vadd.f32 %v534, %v549
    %v552 = vadd.f32 %v535, %v550
    %s553 = scalar_lea.vmem %s0, 96
    %v554 = vld [vmem:[%s553] sm:$0xf]
    %v557 = vunpack.c.l.s4 1983009808
    %v558 = vunpack.c.0.s8 %v557
    %v559 = vlaneseq
    %v560 = vshrl.u32 %v559, 7
    %v561 = vsub.s32 %v558, %v560
    %v562 = vrot.slane %v554, %v561
    %v563 = vcombine.high %v562, %v562
    %v566 = vmul.f32 %v218, %v562
    %v567 = vmul.f32 %v222, %v563
    %v568 = vadd.f32 %v551, %v566
    %v569 = vadd.f32 %v552, %v567
    %s570 = scalar_lea.vmem %s0, 100
    %v571 = vld [vmem:[%s570] sm:$0xf]
    %v574 = vunpack.c.l.s4 1983009808
    %v575 = vunpack.c.0.s8 %v574
    %v576 = vlaneseq
    %v577 = vshrl.u32 %v576, 7
    %v578 = vsub.s32 %v575, %v577
    %v579 = vrot.slane %v571, %v578
    %v580 = vcombine.high %v579, %v579
    %v583 = vmul.f32 %v248, %v579
    %v584 = vmul.f32 %v252, %v580
    %v585 = vadd.f32 %v568, %v583
    %v586 = vadd.f32 %v569, %v584
    %s587 = scalar_lea.vmem %s0, 104
    %v588 = vld [vmem:[%s587] sm:$0xf]
    %v591 = vunpack.c.l.s4 1983009808
    %v592 = vunpack.c.0.s8 %v591
    %v593 = vlaneseq
    %v594 = vshrl.u32 %v593, 7
    %v595 = vsub.s32 %v592, %v594
    %v596 = vrot.slane %v588, %v595
    %v597 = vcombine.high %v596, %v596
    %v600 = vmul.f32 %v278, %v596
    %v601 = vmul.f32 %v282, %v597
    %v602 = vadd.f32 %v585, %v600
    %v603 = vadd.f32 %v586, %v601
    %v604 = vmax.f32 %v451, %v602
    %v605 = vmax.f32 %v452, %v603
    %s606 = scalar_lea.vmem %s0, 108
    %v607 = vld [vmem:[%s606] sm:$0xf]
    %v610 = vunpack.c.l.s4 1983009808
    %v611 = vunpack.c.0.s8 %v610
    %v612 = vlaneseq
    %v613 = vshrl.u32 %v612, 7
    %v614 = vsub.s32 %v611, %v613
    %v615 = vrot.slane %v607, %v614
    %v616 = vcombine.high %v615, %v615
    %v619 = vmul.f32 %v40, %v615
    %v620 = vmul.f32 %v44, %v616
    %s621 = scalar_lea.vmem %s0, 112
    %v622 = vld [vmem:[%s621] sm:$0xf]
    %v625 = vunpack.c.l.s4 1983009808
    %v626 = vunpack.c.0.s8 %v625
    %v627 = vlaneseq
    %v628 = vshrl.u32 %v627, 7
    %v629 = vsub.s32 %v626, %v628
    %v630 = vrot.slane %v622, %v629
    %v631 = vcombine.high %v630, %v630
    %v634 = vmul.f32 %v68, %v630
    %v635 = vmul.f32 %v72, %v631
    %v636 = vadd.f32 %v619, %v634
    %v637 = vadd.f32 %v620, %v635
    %s638 = scalar_lea.vmem %s0, 116
    %v639 = vld [vmem:[%s638] sm:$0xf]
    %v642 = vunpack.c.l.s4 1983009808
    %v643 = vunpack.c.0.s8 %v642
    %v644 = vlaneseq
    %v645 = vshrl.u32 %v644, 7
    %v646 = vsub.s32 %v643, %v645
    %v647 = vrot.slane %v639, %v646
    %v648 = vcombine.high %v647, %v647
    %v651 = vmul.f32 %v98, %v647
    %v652 = vmul.f32 %v102, %v648
    %v653 = vadd.f32 %v636, %v651
    %v654 = vadd.f32 %v637, %v652
    %s655 = scalar_lea.vmem %s0, 120
    %v656 = vld [vmem:[%s655] sm:$0xf]
    %v659 = vunpack.c.l.s4 1983009808
    %v660 = vunpack.c.0.s8 %v659
    %v661 = vlaneseq
    %v662 = vshrl.u32 %v661, 7
    %v663 = vsub.s32 %v660, %v662
    %v664 = vrot.slane %v656, %v663
    %v665 = vcombine.high %v664, %v664
    %v668 = vmul.f32 %v128, %v664
    %v669 = vmul.f32 %v132, %v665
    %v670 = vadd.f32 %v653, %v668
    %v671 = vadd.f32 %v654, %v669
    %s672 = scalar_lea.vmem %s0, 124
    %v673 = vld [vmem:[%s672] sm:$0xf]
    %v676 = vunpack.c.l.s4 1983009808
    %v677 = vunpack.c.0.s8 %v676
    %v678 = vlaneseq
    %v679 = vshrl.u32 %v678, 7
    %v680 = vsub.s32 %v677, %v679
    %v681 = vrot.slane %v673, %v680
    %v682 = vcombine.high %v681, %v681
    %v685 = vmul.f32 %v158, %v681
    %v686 = vmul.f32 %v162, %v682
    %v687 = vadd.f32 %v670, %v685
    %v688 = vadd.f32 %v671, %v686
    %s689 = scalar_lea.vmem %s0, 128
    %v690 = vld [vmem:[%s689] sm:$0xf]
    %v693 = vunpack.c.l.s4 1983009808
    %v694 = vunpack.c.0.s8 %v693
    %v695 = vlaneseq
    %v696 = vshrl.u32 %v695, 7
    %v697 = vsub.s32 %v694, %v696
    %v698 = vrot.slane %v690, %v697
    %v699 = vcombine.high %v698, %v698
    %v702 = vmul.f32 %v188, %v698
    %v703 = vmul.f32 %v192, %v699
    %v704 = vadd.f32 %v687, %v702
    %v705 = vadd.f32 %v688, %v703
    %s706 = scalar_lea.vmem %s0, 132
    %v707 = vld [vmem:[%s706] sm:$0xf]
    %v710 = vunpack.c.l.s4 1983009808
    %v711 = vunpack.c.0.s8 %v710
    %v712 = vlaneseq
    %v713 = vshrl.u32 %v712, 7
    %v714 = vsub.s32 %v711, %v713
    %v715 = vrot.slane %v707, %v714
    %v716 = vcombine.high %v715, %v715
    %v719 = vmul.f32 %v218, %v715
    %v720 = vmul.f32 %v222, %v716
    %v721 = vadd.f32 %v704, %v719
    %v722 = vadd.f32 %v705, %v720
    %s723 = scalar_lea.vmem %s0, 136
    %v724 = vld [vmem:[%s723] sm:$0xf]
    %v727 = vunpack.c.l.s4 1983009808
    %v728 = vunpack.c.0.s8 %v727
    %v729 = vlaneseq
    %v730 = vshrl.u32 %v729, 7
    %v731 = vsub.s32 %v728, %v730
    %v732 = vrot.slane %v724, %v731
    %v733 = vcombine.high %v732, %v732
    %v736 = vmul.f32 %v248, %v732
    %v737 = vmul.f32 %v252, %v733
    %v738 = vadd.f32 %v721, %v736
    %v739 = vadd.f32 %v722, %v737
    %s740 = scalar_lea.vmem %s0, 140
    %v741 = vld [vmem:[%s740] sm:$0xf]
    %v744 = vunpack.c.l.s4 1983009808
    %v745 = vunpack.c.0.s8 %v744
    %v746 = vlaneseq
    %v747 = vshrl.u32 %v746, 7
    %v748 = vsub.s32 %v745, %v747
    %v749 = vrot.slane %v741, %v748
    %v750 = vcombine.high %v749, %v749
    %v753 = vmul.f32 %v278, %v749
    %v754 = vmul.f32 %v282, %v750
    %v755 = vadd.f32 %v738, %v753
    %v756 = vadd.f32 %v739, %v754
    %v757 = vmax.f32 %v604, %v755
    %v758 = vmax.f32 %v605, %v756
    %v759 = vld [vmem:[%s2] sm:$0x3]
    %v761 = vlaneseq
    %v762 = vshrl.u32 %v761, 7
    %v763 = vsub.s32 0, %v762
    %v764 = vrot.slane %v759, %v763
    %v765 = vlaneseq
    %v766 = vshrl.u32 %v765, 7
    %v767 = vsub.s32 1, %v766
    %v768 = vrot.slane %v759, %v767
    %v771 = vadd.f32 %v757, %v764
    %v772 = vadd.f32 %v758, %v768
    %vm773 = vcmask 1041408
    %v774 = vsel %vm773, %v771, 0.0
    %v775 = vrot.slane %v774, 4
    %v776 = vadd.f32 %v774, %v775
    %v777 = vrot.slane %v776, 2
    %v778 = vadd.f32 %v776, %v777
    %v779 = vrot.slane %v778, 1
    %v780 = vadd.f32 %v778, %v779
    %v781 = vsel %vm773, %v772, 0.0
    %v782 = vrot.slane %v781, 4
    %v783 = vadd.f32 %v781, %v782
    %v784 = vrot.slane %v783, 2
    %v785 = vadd.f32 %v783, %v784
    %v786 = vrot.slane %v785, 1
    %v787 = vadd.f32 %v785, %v786
    %v788 = vrcp.pop 2.0
    %v789 = vmul.f32 %v780, %v788
    %v790 = vmul.f32 %v787, %v788
    %v791 = vsub.f32 %v771, %v789
    %v792 = vsub.f32 %v772, %v790
    %v793 = vmul.f32 %v791, %v791
    %v794 = vmul.f32 %v792, %v792
    %v795 = vsel %vm773, %v793, 0.0
    %v796 = vrot.slane %v795, 4
    %v797 = vadd.f32 %v795, %v796
    %v798 = vrot.slane %v797, 2
    %v799 = vadd.f32 %v797, %v798
    %v800 = vrot.slane %v799, 1
    %v801 = vadd.f32 %v799, %v800
    %v802 = vsel %vm773, %v794, 0.0
    %v803 = vrot.slane %v802, 4
    %v804 = vadd.f32 %v802, %v803
    %v805 = vrot.slane %v804, 2
    %v806 = vadd.f32 %v804, %v805
    %v807 = vrot.slane %v806, 1
    %v808 = vadd.f32 %v806, %v807
    %v809 = vmul.f32 %v801, %v788
    %v810 = vmul.f32 %v808, %v788
    %v811 = vadd.f32 %v809, 1e-05
    %v812 = vadd.f32 %v810, 1e-05
    %v813 = vrsqrt.pop %v811
    %v814 = vrsqrt.pop %v812
    %v815 = vmul.f32 %v791, %v813
    %v816 = vmul.f32 %v792, %v814
    %v817 = vld [vmem:[%s3] sm:$0x3]
    %v819 = vlaneseq
    %v820 = vshrl.u32 %v819, 7
    %v821 = vsub.s32 0, %v820
    %v822 = vrot.slane %v817, %v821
    %v823 = vlaneseq
    %v824 = vshrl.u32 %v823, 7
    %v825 = vsub.s32 1, %v824
    %v826 = vrot.slane %v817, %v825
    %v829 = vmul.f32 %v815, %v822
    %v830 = vmul.f32 %v816, %v826
    %v831 = vld [vmem:[%s4] sm:$0x3]
    %v833 = vlaneseq
    %v834 = vshrl.u32 %v833, 7
    %v835 = vsub.s32 0, %v834
    %v836 = vrot.slane %v831, %v835
    %v837 = vlaneseq
    %v838 = vshrl.u32 %v837, 7
    %v839 = vsub.s32 1, %v838
    %v840 = vrot.slane %v831, %v839
    %v843 = vadd.f32 %v829, %v836
    %v844 = vadd.f32 %v830, %v840
    %v845 = vpack.c.bf16 %v843, %v843
    %v846 = vpack.c.bf16 %v844, %v844
    %v847 = vld [vmem:[%s5] sm:$0xf]
    %v848 = vld [vmem:[%s5 + $0x4] sm:$0xf]
    %v849 = vld [vmem:[%s5 + $0x8] sm:$0xf]
    %v850 = vld [vmem:[%s5 + $0xc] sm:$0xf]
    %v851 = vld [vmem:[%s5 + $0x10] sm:$0xf]
    %v852 = vld [vmem:[%s5 + $0x14] sm:$0xf]
    %v853 = vld [vmem:[%s5 + $0x18] sm:$0xf]
    %v854 = vld [vmem:[%s5 + $0x1c] sm:$0xf]
    %v855 = vld [vmem:[%s5 + $0x20] sm:$0xf]
    %v856 = vld [vmem:[%s5 + $0x24] sm:$0xf]
    %v857 = vld [vmem:[%s5 + $0x28] sm:$0xf]
    %v858 = vld [vmem:[%s5 + $0x2c] sm:$0xf]
    %v859 = vld [vmem:[%s5 + $0x30] sm:$0xf]
    %v860 = vld [vmem:[%s5 + $0x34] sm:$0xf]
    %v861 = vld [vmem:[%s5 + $0x38] sm:$0xf]
    %v862 = vld [vmem:[%s5 + $0x3c] sm:$0xf]
    %v863 = vld [vmem:[%s5 + $0x40] sm:$0xf]
    %v864 = vld [vmem:[%s5 + $0x44] sm:$0xf]
    %v865 = vld [vmem:[%s5 + $0x48] sm:$0xf]
    %v866 = vld [vmem:[%s5 + $0x4c] sm:$0xf]
    %v867 = vld [vmem:[%s5 + $0x50] sm:$0xf]
    %v868 = vld [vmem:[%s5 + $0x54] sm:$0xf]
    %v869 = vld [vmem:[%s5 + $0x58] sm:$0xf]
    %v870 = vld [vmem:[%s5 + $0x5c] sm:$0xf]
    %v871 = vld [vmem:[%s5 + $0x60] sm:$0xf]
    %v872 = vld [vmem:[%s5 + $0x64] sm:$0xf]
    %v873 = vld [vmem:[%s5 + $0x68] sm:$0xf]
    %v874 = vld [vmem:[%s5 + $0x6c] sm:$0xf]
    %v875 = vld [vmem:[%s5 + $0x70] sm:$0xf]
    %v876 = vld [vmem:[%s5 + $0x74] sm:$0xf]
    %v877 = vld [vmem:[%s5 + $0x78] sm:$0xf]
    %v878 = vld [vmem:[%s5 + $0x7c] sm:$0xf]
    %v879 = vld [vmem:[%s6] sm:$0x1]
    %v881 = vlaneseq
    %v882 = vshrl.u32 %v881, 7
    %v883 = vsub.s32 0, %v882
    %v884 = vrot.slane %v879, %v883
    %v918 = vunpack.c.l.b16 %v847
    %v919 = vunpack.c.l.b16 %v848
    %v920 = vunpack.c.l.b16 %v849
    %v921 = vunpack.c.l.b16 %v850
    %v922 = vunpack.c.l.b16 %v851
    %v923 = vunpack.c.l.b16 %v852
    %v924 = vunpack.c.l.b16 %v853
    %v925 = vunpack.c.l.b16 %v854
    %v926 = vunpack.c.l.b16 %v855
    %v927 = vunpack.c.l.b16 %v856
    %v928 = vunpack.c.l.b16 %v857
    %v929 = vunpack.c.l.b16 %v858
    %v930 = vunpack.c.l.b16 %v859
    %v931 = vunpack.c.l.b16 %v860
    %v932 = vunpack.c.l.b16 %v861
    %v933 = vunpack.c.l.b16 %v862
    %v934 = vunpack.c.l.b16 %v863
    %v935 = vunpack.c.l.b16 %v864
    %v936 = vunpack.c.l.b16 %v865
    %v937 = vunpack.c.l.b16 %v866
    %v938 = vunpack.c.l.b16 %v867
    %v939 = vunpack.c.l.b16 %v868
    %v940 = vunpack.c.l.b16 %v869
    %v941 = vunpack.c.l.b16 %v870
    %v942 = vunpack.c.l.b16 %v871
    %v943 = vunpack.c.l.b16 %v872
    %v944 = vunpack.c.l.b16 %v873
    %v945 = vunpack.c.l.b16 %v874
    %v946 = vunpack.c.l.b16 %v875
    %v947 = vunpack.c.l.b16 %v876
    %v948 = vunpack.c.l.b16 %v877
    %v949 = vunpack.c.l.b16 %v878
    %v950 = vpack.c.b16 %v919, %v918
    %v951 = vpack.c.b16 %v921, %v920
    %v952 = vpack.c.b16 %v923, %v922
    %v953 = vpack.c.b16 %v925, %v924
    %v954 = vpack.c.b16 %v927, %v926
    %v955 = vpack.c.b16 %v929, %v928
    %v956 = vpack.c.b16 %v931, %v930
    %v957 = vpack.c.b16 %v933, %v932
    %v958 = vpack.c.b16 %v935, %v934
    %v959 = vpack.c.b16 %v937, %v936
    %v960 = vpack.c.b16 %v939, %v938
    %v961 = vpack.c.b16 %v941, %v940
    %v962 = vpack.c.b16 %v943, %v942
    %v963 = vpack.c.b16 %v945, %v944
    %v964 = vpack.c.b16 %v947, %v946
    %v965 = vpack.c.b16 %v949, %v948
    %982 = vmatprep.subr.bf16.mxu0 0
    %983 = vmatpush1.bf16.msra.mxu0 %v957
    %984 = vmatprep.subr.bf16.mxu0 0
    %985 = vmatpush1.bf16.msra.mxu0 %v956
    %986 = vmatprep.subr.bf16.mxu0 0
    %987 = vmatpush1.bf16.msra.mxu0 %v955
    %988 = vmatprep.subr.bf16.mxu0 0
    %989 = vmatpush1.bf16.msra.mxu0 %v954
    %990 = vmatprep.subr.bf16.mxu0 0
    %991 = vmatpush1.bf16.msra.mxu0 %v953
    %992 = vmatprep.subr.bf16.mxu0 0
    %993 = vmatpush1.bf16.msra.mxu0 %v952
    %994 = vmatprep.subr.bf16.mxu0 0
    %995 = vmatpush1.bf16.msra.mxu0 %v951
    %996 = vmatprep.subr.bf16.mxu0 0
    %997 = vmatpush1.bf16.msra.mxu0 %v950
    %998 = vmatprep.subr.bf16.mxu0 0
    %999 = vmatpush2.bf16.msra.mxu0 %v965
    %1000 = vmatprep.subr.bf16.mxu0 0
    %1001 = vmatpush2.bf16.msra.mxu0 %v964
    %1002 = vmatprep.subr.bf16.mxu0 0
    %1003 = vmatpush2.bf16.msra.mxu0 %v963
    %1004 = vmatprep.subr.bf16.mxu0 0
    %1005 = vmatpush2.bf16.msra.mxu0 %v962
    %1006 = vmatprep.subr.bf16.mxu0 0
    %1007 = vmatpush2.bf16.msra.mxu0 %v961
    %1008 = vmatprep.subr.bf16.mxu0 0
    %1009 = vmatpush2.bf16.msra.mxu0 %v960
    %1010 = vmatprep.subr.bf16.mxu0 0
    %1011 = vmatpush2.bf16.msra.mxu0 %v959
    %1012 = vmatprep.subr.bf16.mxu0 0
    %1013 = vmatpush2.bf16.msra.mxu0 %v958
    %1014 = vmatprep.mubr.bf16.mxu0 %v846
    %1015 = vmatmul.mubr.bf16.gmra.mxu0 %v845
    %v1016 = vpop.f32.mrf.mxu0
    %v1017 = vadd.f32 %v884, %v1016
    %v1018 = vpop.f32.mrf.mxu0
    %v1019 = vpop.f32.mrf.mxu0
    %v1020 = vpop.f32.mrf.mxu0
    %1021 = vdwg.mxu0
    %v1022 = vmax.f32 %v1017, 0.0
    %v1023 = vpack.c.bf16 %v1022, %v1022
    %v1024 = vld [vmem:[%s7] sm:$0xf]
    %v1025 = vld [vmem:[%s7 + $0x4] sm:$0xf]
    %v1026 = vld [vmem:[%s7 + $0x8] sm:$0xf]
    %v1027 = vld [vmem:[%s7 + $0xc] sm:$0xf]
    %v1028 = vld [vmem:[%s8] sm:$0x1]
    %v1030 = vlaneseq
    %v1031 = vshrl.u32 %v1030, 7
    %v1032 = vsub.s32 0, %v1031
    %v1033 = vrot.slane %v1028, %v1032
    %v1039 = vunpack.c.l.b16 %v1024
    %v1040 = vunpack.c.l.b16 %v1025
    %v1041 = vunpack.c.l.b16 %v1026
    %v1042 = vunpack.c.l.b16 %v1027
    %v1043 = vpack.c.b16 %v1040, %v1039
    %v1044 = vpack.c.b16 %v1042, %v1041
    %vm1047 = vcmask 261120
    %v1049 = vsel %vm1047, %v1023, 0
    %1051 = vmatprep.subr.bf16.mxu0 0
    %1052 = vmatpush1.bf16.msra.mxu0 0
    %1053 = vmatprep.subr.bf16.mxu0 0
    %1054 = vmatpush1.bf16.msra.mxu0 0
    %1055 = vmatprep.subr.bf16.mxu0 0
    %1056 = vmatpush1.bf16.msra.mxu0 0
    %1057 = vmatprep.subr.bf16.mxu0 0
    %1058 = vmatpush1.bf16.msra.mxu0 0
    %1059 = vmatprep.subr.bf16.mxu0 0
    %1060 = vmatpush1.bf16.msra.mxu0 0
    %1061 = vmatprep.subr.bf16.mxu0 0
    %1062 = vmatpush1.bf16.msra.mxu0 0
    %1063 = vmatprep.subr.bf16.mxu0 0
    %1064 = vmatpush1.bf16.msra.mxu0 %v1044
    %1065 = vmatprep.subr.bf16.mxu0 0
    %1066 = vmatpush1.bf16.msra.mxu0 %v1043
    %1067 = vmatprep.subr.bf16.mxu0 0
    %1068 = vmatpush2.bf16.msra.mxu0 0
    %1069 = vmatprep.subr.bf16.mxu0 0
    %1070 = vmatpush2.bf16.msra.mxu0 0
    %1071 = vmatprep.subr.bf16.mxu0 0
    %1072 = vmatpush2.bf16.msra.mxu0 0
    %1073 = vmatprep.subr.bf16.mxu0 0
    %1074 = vmatpush2.bf16.msra.mxu0 0
    %1075 = vmatprep.subr.bf16.mxu0 0
    %1076 = vmatpush2.bf16.msra.mxu0 0
    %1077 = vmatprep.subr.bf16.mxu0 0
    %1078 = vmatpush2.bf16.msra.mxu0 0
    %1079 = vmatprep.subr.bf16.mxu0 0
    %1080 = vmatpush2.bf16.msra.mxu0 0
    %1081 = vmatprep.subr.bf16.mxu0 0
    %1082 = vmatpush2.bf16.msra.mxu0 0
    %1083 = vmatprep.mubr.bf16.mxu0 0
    %1084 = vmatmul.mubr.bf16.gmra.mxu0 %v1049
    %v1085 = vpop.f32.mrf.mxu0
    %v1086 = vadd.f32 %v1033, %v1085
    %v1087 = vpop.f32.mrf.mxu0
    %v1088 = vpop.f32.mrf.mxu0
    %v1089 = vpop.f32.mrf.mxu0
    %1090 = vdwg.mxu0
    %v1091 = vmax.f32 %v1086, 0.0
    %vm1092 = vcmask 254976
    %1093 = vst.msk [vmem:[#allocation2] sm:$0x3] %vm1092, %v1091
    // Predicated region
    $region38: #{net_forward.1} parent=1 // pred_check
      _
    $region39: #{net_forward.1} parent=1 // pred_check_branch
      %1095 = sbr.rel (0) target = $region41
    $region40: #{net_forward.1} parent=1 // pred_region
      %s1097 = ssub.s32 32, 32
      %1098 = vsyncadd [#allocation3], %s1097
      %s1100 = sshll.u32 [#allocation2], 4
      %s1101 = int_to_ptr.vmem [resolvable:$true] %s1100
      %1103 = dma.vmem_to_hbm [thread:$0]  %s1101, 32, %s9, [#allocation3]
    $region41: #{net_forward.1} parent=1 // pred_fallthru
      _
    // Predicated region
    $region42: #{net_forward.1} parent=1 // pred_check
      _
    $region43: #{net_forward.1} parent=1 // pred_check_branch
      %1105 = sbr.rel (0) target = $region45
    $region44: #{net_forward.1} parent=1 // pred_region
      %1106 = dma.done [#allocation3], 32
    $region45: #{net_forward.1} parent=1 // pred_fallthru
      _
    %1107 = vsyncpa [#allocation3], 1

</llo_original>
